<compile_context>
chip_gen: v6e
topology: v6e:2x2x1
jax: 0.10.0
libtpu: 0.0.40
codegen_flags: <defaults>
</compile_context>

<pallas_src>
import functools
import math

import jax
import jax.numpy as jnp
from jax.experimental import pallas as pl
from jax.experimental.pallas import tpu as pltpu

ANSWER_LEN = 2  # UniBoundaryPointer.answer_len


def _sigmoid(x):
    return 1.0 / (1.0 + jnp.exp(-x))


def _multi_hop_kernel(hr_ref, mask_ref, wr_ref, br_ref, wa_ref, ba_ref,
                      wf_ref, bf_ref, wih_ref, bih_ref, whh_ref, bhh_ref,
                      out_ref, *, num_hops):
    """One batch tile through the full multi-hop pointer recurrence.

    hr_ref   : (seq, tb, input)   compute dtype (f32 or bf16), seq-major (no host transpose)
    mask_ref : (tb, seq)          f32
    wr_ref   : (input, hidden)    compute dtype   br_ref : (1, hidden) f32
    wa_ref   : (hidden, hidden)   compute dtype   ba_ref : (1, hidden) f32
    wf_ref   : (1, hidden)        f32             bf_ref : (1, 1)      f32
    wih_ref  : (input, 4*hidden)  compute dtype   bih_ref: (1, 4*hidden) f32
    whh_ref  : (hidden, 4*hidden) compute dtype   bhh_ref: (1, 4*hidden) f32
    out_ref  : (2, tb, seq)       f32
    """
    seq, tb, input_size = hr_ref.shape
    hidden = wa_ref.shape[0]
    cdtype = wr_ref.dtype

    hr = hr_ref[...]                                   # (seq, tb, input)
    hr_f32 = hr.astype(jnp.float32)                    # hoisted once; used for the context sum
    mask = mask_ref[...]                               # (tb, seq) f32
    inv_mask_bias = (1.0 - mask) * 1e-6                # final additive mask term

    # Hop/step-invariant projection Wr @ Hr: one lane-dense 2-D MXU matmul for the whole tile.
    x2d = hr.reshape(seq * tb, input_size)
    wr_hr = jnp.dot(x2d, wr_ref[...], preferred_element_type=jnp.float32)
    wr_hr = (wr_hr + br_ref[...]).reshape(seq, tb, hidden)        # f32

    wf_row = wf_ref[...].reshape(1, 1, hidden)                    # hoisted broadcast operand

    h = jnp.zeros((tb, hidden), jnp.float32)
    c = jnp.zeros((tb, hidden), jnp.float32)
    betas = [None] * ANSWER_LEN

    # TODO(synk): the PyTorch early-break across hops compares consecutive betas with `==`
    # (data-dependent control flow); we always run all num_hops hops (the no-break path).
    for _hop in range(num_hops):
        for t in range(ANSWER_LEN):
            # attention: wa_ha = Linear_wa(h)
            wa_ha = jnp.dot(h.astype(cdtype), wa_ref[...],
                            preferred_element_type=jnp.float32) + ba_ref[...]      # (tb, hidden)
            f = jnp.tanh(wr_hr + wa_ha[None, :, :])                                # (seq, tb, hidden)

            # Linear_wf has out_features == 1: VPU multiply + lane reduce (not an N=1 MXU matmul).
            logits_sb = jnp.sum(f * wf_row, axis=-1) + bf_ref[...]                 # (seq, tb)
            logits = jnp.transpose(logits_sb)                                      # (tb, seq) lane-dense

            # masked softmax, vectorised across the batch tile (seq on the lane axis).
            z = logits * mask
            e = jnp.exp(z - jnp.max(z, axis=-1, keepdims=True)) * mask
            denom = jnp.sum(e, axis=-1, keepdims=True) + 1e-6
            # approx=True (EUP) is the production choice; exact kept for tight f32 parity.
            beta = e * pl.reciprocal(denom, approx=False)                          # (tb, seq)
            betas[t] = beta

            # context vector: ctx[b, :] = sum_s beta[b, s] * Hr[s, b, :]
            beta_sb = jnp.transpose(beta)                                          # (seq, tb)
            ctx = jnp.sum(beta_sb[:, :, None] * hr_f32, axis=0)                    # (tb, input) f32

            # LSTMCell (PyTorch gate order: input, forget, cell, output)
            gates = (jnp.dot(ctx.astype(cdtype), wih_ref[...],
                             preferred_element_type=jnp.float32) + bih_ref[...] +
                     jnp.dot(h.astype(cdtype), whh_ref[...],
                             preferred_element_type=jnp.float32) + bhh_ref[...])   # (tb, 4H)
            i_g = _sigmoid(gates[:, 0 * hidden:1 * hidden])
            f_g = _sigmoid(gates[:, 1 * hidden:2 * hidden])
            g_g = jnp.tanh(gates[:, 2 * hidden:3 * hidden])
            o_g = _sigmoid(gates[:, 3 * hidden:4 * hidden])
            c = f_g * c + i_g * g_g
            h = o_g * jnp.tanh(c)

    # TODO(synk): torch.nn.Dropout is identity at inference; GRU mode and
    # enable_layer_norm=True variants of the module are not implemented here.
    out_ref[0, :, :] = betas[0] + inv_mask_bias
    out_ref[1, :, :] = betas[1] + inv_mask_bias


def _pick_batch_tile(batch, max_tile=64):
    if batch % 8 != 0:
        return batch
    tb = 8
    while tb * 2 <= min(batch, max_tile) and batch % (tb * 2) == 0:
        tb *= 2
    return tb


def _vmem_limit_bytes(seq, tb, input_size, hidden, cdtype):
    itm = jnp.dtype(cdtype).itemsize
    tile_in = seq * tb * input_size * itm                 # Hr tile (double-buffered)
    tile_f32 = seq * tb * input_size * 4                  # f32 copy used for the context sum
    work = seq * tb * hidden * 4 * 4                      # wr_hr / f / temporaries
    weights = (input_size * hidden + hidden * hidden + hidden
               + input_size * 4 * hidden + hidden * 4 * hidden) * itm + 64 * 1024
    io = tb * seq * 4 * (ANSWER_LEN + 1)                  # mask + output tile
    need = 2 * (tile_in + io) + tile_f32 + work + weights
    # generous floor, capped well below v7x's 64 MiB physical VMEM
    return int(min(max(2 * need, 16 * 1024 * 1024), 48 * 1024 * 1024))


def multi_hop_bd_pointer(hr, hr_mask, params, *, num_hops, batch_tile=None,
                         compute_dtype=jnp.float32):
    """hr: (seq, batch, input) f32, hr_mask: (batch, seq). Returns (2, batch, seq) f32."""
    seq, batch, input_size = hr.shape
    hidden = params["wa"].shape[0]

    tb = _pick_batch_tile(batch) if batch_tile is None else batch_tile
    assert batch % tb == 0 and (tb == batch or tb % 8 == 0), (batch, tb)
    grid = (batch // tb,)

    cdtype = jnp.dtype(compute_dtype)
    f32 = lambda a: a.astype(jnp.float32)

    hr_c = hr.astype(cdtype)
    mask = hr_mask.astype(jnp.float32)
    wr, wa = params["wr"].astype(cdtype), params["wa"].astype(cdtype)
    wih, whh = params["wih"].astype(cdtype), params["whh"].astype(cdtype)
    wf = f32(params["wf"]).reshape(1, hidden)
    br, ba = f32(params["br"]).reshape(1, hidden), f32(params["ba"]).reshape(1, hidden)
    bf = f32(params["bf"]).reshape(1, 1)
    bih = f32(params["bih"]).reshape(1, 4 * hidden)
    bhh = f32(params["bhh"]).reshape(1, 4 * hidden)

    def resident(shape):  # weights: same block every grid step -> stay VMEM-resident
        return pl.BlockSpec(shape, lambda b, _n=len(shape): (0,) * _n)

    in_specs = [
        pl.BlockSpec((seq, tb, input_size), lambda b: (0, b, 0)),   # Hr, batch-tiled in place
        pl.BlockSpec((tb, seq), lambda b: (b, 0)),                  # mask
        resident(wr.shape), resident(br.shape),
        resident(wa.shape), resident(ba.shape),
        resident(wf.shape), resident(bf.shape),
        resident(wih.shape), resident(bih.shape),
        resident(whh.shape), resident(bhh.shape),
    ]
    out_spec = pl.BlockSpec((ANSWER_LEN, tb, seq), lambda b: (0, b, 0))

    kernel = functools.partial(_multi_hop_kernel, num_hops=num_hops)
    return pl.pallas_call(
        kernel,
        out_shape=jax.ShapeDtypeStruct((ANSWER_LEN, batch, seq), jnp.float32),
        grid_spec=pltpu.PrefetchScalarGridSpec(
            num_scalar_prefetch=0, grid=grid,
            in_specs=in_specs, out_specs=out_spec),
        compiler_params=pltpu.CompilerParams(
            dimension_semantics=("parallel",),
            vmem_limit_bytes=_vmem_limit_bytes(seq, tb, input_size, hidden, cdtype)),
    )(hr_c, mask, wr, br, wa, ba, wf, bf, wih, bih, whh, bhh)


def init_params(key, input_size, hidden_size):
    """Deterministic init mirroring the module: uniform +-1/sqrt(fan_in) weights, zero biases
    (UniBoundaryPointer.reset_parameters zeroes every bias)."""
    H = hidden_size
    ks = jax.random.split(key, 5)
    u = lambda k, shape, fan: jax.random.uniform(k, shape, jnp.float32,
                                                 -1.0 / math.sqrt(fan), 1.0 / math.sqrt(fan))
    return dict(
        wr=u(ks[0], (input_size, H), input_size), br=jnp.zeros((H,), jnp.float32),
        wa=u(ks[1], (H, H), H), ba=jnp.zeros((H,), jnp.float32),
        wf=u(ks[2], (1, H), H), bf=jnp.zeros((1,), jnp.float32),
        wih=u(ks[3], (input_size, 4 * H), input_size), bih=jnp.zeros((4 * H,), jnp.float32),
        whh=u(ks[4], (H, 4 * H), H), bhh=jnp.zeros((4 * H,), jnp.float32),
    )


def reference(hr, hr_mask, params, *, num_hops):
    """Pure-JAX f32 reference of the PyTorch forward (LSTM mode, no layer-norm, eval dropout)."""
    hp = jax.lax.Precision.HIGHEST
    seq, batch, _ = hr.shape
    H = params["wa"].shape[0]
    m = hr_mask.astype(jnp.float32)

    wr_hr = jnp.einsum("sbi,ih->sbh", hr, params["wr"], precision=hp) + params["br"]
    h = jnp.zeros((batch, H), jnp.float32)
    c = jnp.zeros((batch, H), jnp.float32)
    betas = [None] * ANSWER_LEN
    for _hop in range(num_hops):
        for t in range(ANSWER_LEN):
            wa_ha = jnp.einsum("bh,hk->bk", h, params["wa"], precision=hp) + params["ba"]
            f = jnp.tanh(wr_hr + wa_ha[None, :, :])
            logits = (jnp.einsum("sbh,h->sb", f, params["wf"][0], precision=hp)
                      + params["bf"][0]).T                                   # (batch, seq)
            z = logits * m
            e = jnp.exp(z - jnp.max(z, axis=-1, keepdims=True)) * m
            beta = e / (jnp.sum(e, axis=-1, keepdims=True) + 1e-6)
            betas[t] = beta
            ctx = jnp.einsum("bs,sbi->bi", beta, hr, precision=hp)
            gates = (jnp.einsum("bi,ig->bg", ctx, params["wih"], precision=hp) + params["bih"]
                     + jnp.einsum("bh,hg->bg", h, params["whh"], precision=hp) + params["bhh"])
            i_g = _sigmoid(gates[:, 0 * H:1 * H])
            f_g = _sigmoid(gates[:, 1 * H:2 * H])
            g_g = jnp.tanh(gates[:, 2 * H:3 * H])
            o_g = _sigmoid(gates[:, 3 * H:4 * H])
            c = f_g * c + i_g * g_g
            h = o_g * jnp.tanh(c)
    return jnp.stack(betas, axis=0) + ((1.0 - m) * 1e-6)[None]


if __name__ == "__main__":
    seq_len, batch, input_size, hidden_size = 8, 32, 16, 32
    num_hops = 2

    key = jax.random.PRNGKey(0)
    kx, kl, kp = jax.random.split(key, 3)
    hr = jax.random.normal(kx, (seq_len, batch, input_size), jnp.float32)
    lengths = jax.random.randint(kl, (batch,), 3, seq_len + 1)
    hr_mask = (jnp.arange(seq_len)[None, :] < lengths[:, None]).astype(jnp.float32)

    params = init_params(kp, input_size, hidden_size)

    # f32 path (exact module semantics); batch_tile=16 -> grid of 2 pipelined batch tiles.
    out = jax.block_until_ready(
        multi_hop_bd_pointer(hr, hr_mask, params, num_hops=num_hops, batch_tile=16))
    ref = reference(hr, hr_mask, params, num_hops=num_hops)

    assert out.shape == (ANSWER_LEN, batch, seq_len)
    assert bool(jnp.all(jnp.isfinite(out)))
    assert bool(jnp.allclose(out, ref, atol=2e-3, rtol=2e-3)), float(jnp.max(jnp.abs(out - ref)))

    # bf16 matmul-operand path (perf option): sanity tolerance vs the f32 reference.
    out_bf16 = jax.block_until_ready(
        multi_hop_bd_pointer(hr, hr_mask, params, num_hops=num_hops, batch_tile=16,
                             compute_dtype=jnp.bfloat16))
    assert bool(jnp.all(jnp.isfinite(out_bf16)))
    assert bool(jnp.allclose(out_bf16, ref, atol=1e-1, rtol=1e-1))

    print("KERNEL_OK")
</pallas_src>

<mosaic_0001>
module attributes {stable_mosaic.version = 11 : i64} {
  func.func @_multi_hop_kernel(%arg0: i32, %arg1: memref<8x16x16xf32, #tpu.memory_space<vmem>>, %arg2: memref<16x8xf32, #tpu.memory_space<vmem>>, %arg3: memref<16x32xf32, #tpu.memory_space<vmem>>, %arg4: memref<1x32xf32, #tpu.memory_space<vmem>>, %arg5: memref<32x32xf32, #tpu.memory_space<vmem>>, %arg6: memref<1x32xf32, #tpu.memory_space<vmem>>, %arg7: memref<1x32xf32, #tpu.memory_space<vmem>>, %arg8: memref<1x1xf32, #tpu.memory_space<vmem>>, %arg9: memref<16x128xf32, #tpu.memory_space<vmem>>, %arg10: memref<1x128xf32, #tpu.memory_space<vmem>>, %arg11: memref<32x128xf32, #tpu.memory_space<vmem>>, %arg12: memref<1x128xf32, #tpu.memory_space<vmem>>, %arg13: memref<2x16x8xf32, #tpu.memory_space<vmem>>) attributes {dimension_semantics = [#tpu.dimension_semantics<parallel>], iteration_bounds = array<i64: 2>, scalar_prefetch = 0 : i64, scratch_operands = 0 : i64, tpu.core_type = #tpu.core_type<tc>, window_params = [{transform_indices = @transform_0, window_bounds = array<i64: 8, 16, 16>}, {transform_indices = @transform_1, window_bounds = array<i64: 16, 8>}, {pipeline_mode = #tpu.pipeline_mode<synchronous>, transform_indices = @transform_2, window_bounds = array<i64: 16, 32>}, {pipeline_mode = #tpu.pipeline_mode<synchronous>, transform_indices = @transform_3, window_bounds = array<i64: 1, 32>}, {pipeline_mode = #tpu.pipeline_mode<synchronous>, transform_indices = @transform_4, window_bounds = array<i64: 32, 32>}, {pipeline_mode = #tpu.pipeline_mode<synchronous>, transform_indices = @transform_5, window_bounds = array<i64: 1, 32>}, {pipeline_mode = #tpu.pipeline_mode<synchronous>, transform_indices = @transform_6, window_bounds = array<i64: 1, 32>}, {pipeline_mode = #tpu.pipeline_mode<synchronous>, transform_indices = @transform_7, window_bounds = array<i64: 1, 1>}, {pipeline_mode = #tpu.pipeline_mode<synchronous>, transform_indices = @transform_8, window_bounds = array<i64: 16, 128>}, {pipeline_mode = #tpu.pipeline_mode<synchronous>, transform_indices = @transform_9, window_bounds = array<i64: 1, 128>}, {pipeline_mode = #tpu.pipeline_mode<synchronous>, transform_indices = @transform_10, window_bounds = array<i64: 32, 128>}, {pipeline_mode = #tpu.pipeline_mode<synchronous>, transform_indices = @transform_11, window_bounds = array<i64: 1, 128>}, {transform_indices = @transform_12, window_bounds = array<i64: 2, 16, 8>}]} {
    %c0 = arith.constant 0 : index
    %c0_0 = arith.constant 0 : index
    %c0_1 = arith.constant 0 : index
    %0 = vector.load %arg1[%c0, %c0_0, %c0_1] : memref<8x16x16xf32, #tpu.memory_space<vmem>>, vector<8x16x16xf32>
    %c0_2 = arith.constant 0 : index
    %c0_3 = arith.constant 0 : index
    %1 = vector.load %arg2[%c0_2, %c0_3] : memref<16x8xf32, #tpu.memory_space<vmem>>, vector<16x8xf32>
    %cst = arith.constant 1.000000e+00 : f32
    %2 = vector.broadcast %cst : f32 to vector<16x8xf32>
    %3 = arith.subf %2, %1 : vector<16x8xf32>
    %cst_4 = arith.constant 9.99999997E-7 : f32
    %4 = vector.broadcast %cst_4 : f32 to vector<16x8xf32>
    %5 = arith.mulf %3, %4 : vector<16x8xf32>
    %6 = vector.shape_cast %0 : vector<8x16x16xf32> to vector<128x16xf32>
    %c0_5 = arith.constant 0 : index
    %c0_6 = arith.constant 0 : index
    %7 = vector.load %arg3[%c0_5, %c0_6] : memref<16x32xf32, #tpu.memory_space<vmem>>, vector<16x32xf32>
    %cst_7 = arith.constant dense<0.000000e+00> : vector<128x32xf32>
    %8 = tpu.matmul %6, %7, %cst_7 {dimension_numbers = #tpu.dot_dimension_numbers<[1], [0], [0], [1], [0, 0, 1, 1], [], []>} : vector<128x16xf32>, vector<16x32xf32>, vector<128x32xf32> -> vector<128x32xf32>
    %c0_8 = arith.constant 0 : index
    %c0_9 = arith.constant 0 : index
    %9 = vector.load %arg4[%c0_8, %c0_9] : memref<1x32xf32, #tpu.memory_space<vmem>>, vector<1x32xf32>
    %10 = vector.broadcast %9 : vector<1x32xf32> to vector<128x32xf32>
    %11 = arith.addf %8, %10 : vector<128x32xf32>
    %12 = vector.shape_cast %11 : vector<128x32xf32> to vector<8x16x32xf32>
    %c0_10 = arith.constant 0 : index
    %c0_11 = arith.constant 0 : index
    %13 = vector.load %arg7[%c0_10, %c0_11] : memref<1x32xf32, #tpu.memory_space<vmem>>, vector<1x32xf32>
    %14 = vector.shape_cast %13 : vector<1x32xf32> to vector<1x1x32xf32>
    %cst_12 = arith.constant 0.000000e+00 : f32
    %15 = vector.broadcast %cst_12 : f32 to vector<16x32xf32>
    %cst_13 = arith.constant 0.000000e+00 : f32
    %16 = vector.broadcast %cst_13 : f32 to vector<16x32xf32>
    %c0_14 = arith.constant 0 : index
    %c0_15 = arith.constant 0 : index
    %17 = vector.load %arg5[%c0_14, %c0_15] : memref<32x32xf32, #tpu.memory_space<vmem>>, vector<32x32xf32>
    %cst_16 = arith.constant dense<0.000000e+00> : vector<16x32xf32>
    %18 = tpu.matmul %15, %17, %cst_16 {dimension_numbers = #tpu.dot_dimension_numbers<[1], [0], [0], [1], [0, 0, 1, 1], [], []>} : vector<16x32xf32>, vector<32x32xf32>, vector<16x32xf32> -> vector<16x32xf32>
    %c0_17 = arith.constant 0 : index
    %c0_18 = arith.constant 0 : index
    %19 = vector.load %arg6[%c0_17, %c0_18] : memref<1x32xf32, #tpu.memory_space<vmem>>, vector<1x32xf32>
    %20 = vector.broadcast %19 : vector<1x32xf32> to vector<16x32xf32>
    %21 = arith.addf %18, %20 : vector<16x32xf32>
    %22 = vector.shape_cast %21 : vector<16x32xf32> to vector<1x16x32xf32>
    %23 = vector.broadcast %22 : vector<1x16x32xf32> to vector<8x16x32xf32>
    %24 = arith.addf %12, %23 : vector<8x16x32xf32>
    %25 = math.tanh %24 : vector<8x16x32xf32>
    %26 = vector.broadcast %14 : vector<1x1x32xf32> to vector<8x16x32xf32>
    %27 = arith.mulf %25, %26 : vector<8x16x32xf32>
    %cst_19 = arith.constant dense<0.000000e+00> : vector<8x16xf32>
    %28 = vector.multi_reduction <add>, %27, %cst_19 [2] : vector<8x16x32xf32> to vector<8x16xf32>
    %c0_20 = arith.constant 0 : index
    %c0_21 = arith.constant 0 : index
    %29 = vector.load %arg8[%c0_20, %c0_21] : memref<1x1xf32, #tpu.memory_space<vmem>>, vector<1x1xf32>
    %30 = vector.broadcast %29 : vector<1x1xf32> to vector<8x16xf32>
    %31 = arith.addf %28, %30 : vector<8x16xf32>
    %32 = tpu.transpose %31, [1, 0] : vector<8x16xf32> -> vector<16x8xf32>
    %33 = arith.mulf %32, %1 : vector<16x8xf32>
    %cst_22 = arith.constant dense<0xFF800000> : vector<16xf32>
    %34 = vector.multi_reduction <maximumf>, %33, %cst_22 [1] : vector<16x8xf32> to vector<16xf32>
    %35 = vector.shape_cast %34 : vector<16xf32> to vector<16x1xf32>
    %36 = vector.broadcast %35 : vector<16x1xf32> to vector<16x8xf32>
    %37 = arith.subf %33, %36 : vector<16x8xf32>
    %38 = math.exp %37 : vector<16x8xf32>
    %39 = arith.mulf %38, %1 : vector<16x8xf32>
    %cst_23 = arith.constant dense<0.000000e+00> : vector<16xf32>
    %40 = vector.multi_reduction <add>, %39, %cst_23 [1] : vector<16x8xf32> to vector<16xf32>
    %41 = vector.shape_cast %40 : vector<16xf32> to vector<16x1xf32>
    %cst_24 = arith.constant 9.99999997E-7 : f32
    %42 = vector.broadcast %cst_24 : f32 to vector<16x1xf32>
    %43 = arith.addf %41, %42 : vector<16x1xf32>
    %44 = tpu.reciprocal %43 : vector<16x1xf32> -> vector<16x1xf32>
    %45 = vector.broadcast %44 : vector<16x1xf32> to vector<16x8xf32>
    %46 = arith.mulf %39, %45 : vector<16x8xf32>
    %47 = tpu.transpose %46, [1, 0] : vector<16x8xf32> -> vector<8x16xf32>
    %48 = vector.shape_cast %47 : vector<8x16xf32> to vector<8x16x1xf32>
    %49 = vector.broadcast %48 : vector<8x16x1xf32> to vector<8x16x16xf32>
    %50 = arith.mulf %49, %0 : vector<8x16x16xf32>
    %cst_25 = arith.constant dense<0.000000e+00> : vector<16x16xf32>
    %51 = vector.multi_reduction <add>, %50, %cst_25 [0] : vector<8x16x16xf32> to vector<16x16xf32>
    %c0_26 = arith.constant 0 : index
    %c0_27 = arith.constant 0 : index
    %52 = vector.load %arg9[%c0_26, %c0_27] : memref<16x128xf32, #tpu.memory_space<vmem>>, vector<16x128xf32>
    %cst_28 = arith.constant dense<0.000000e+00> : vector<16x128xf32>
    %53 = tpu.matmul %51, %52, %cst_28 {dimension_numbers = #tpu.dot_dimension_numbers<[1], [0], [0], [1], [0, 0, 1, 1], [], []>} : vector<16x16xf32>, vector<16x128xf32>, vector<16x128xf32> -> vector<16x128xf32>
    %c0_29 = arith.constant 0 : index
    %c0_30 = arith.constant 0 : index
    %54 = vector.load %arg10[%c0_29, %c0_30] : memref<1x128xf32, #tpu.memory_space<vmem>>, vector<1x128xf32>
    %55 = vector.broadcast %54 : vector<1x128xf32> to vector<16x128xf32>
    %56 = arith.addf %53, %55 : vector<16x128xf32>
    %c0_31 = arith.constant 0 : index
    %c0_32 = arith.constant 0 : index
    %57 = vector.load %arg11[%c0_31, %c0_32] : memref<32x128xf32, #tpu.memory_space<vmem>>, vector<32x128xf32>
    %cst_33 = arith.constant dense<0.000000e+00> : vector<16x128xf32>
    %58 = tpu.matmul %15, %57, %cst_33 {dimension_numbers = #tpu.dot_dimension_numbers<[1], [0], [0], [1], [0, 0, 1, 1], [], []>} : vector<16x32xf32>, vector<32x128xf32>, vector<16x128xf32> -> vector<16x128xf32>
    %59 = arith.addf %56, %58 : vector<16x128xf32>
    %c0_34 = arith.constant 0 : index
    %c0_35 = arith.constant 0 : index
    %60 = vector.load %arg12[%c0_34, %c0_35] : memref<1x128xf32, #tpu.memory_space<vmem>>, vector<1x128xf32>
    %61 = vector.broadcast %60 : vector<1x128xf32> to vector<16x128xf32>
    %62 = arith.addf %59, %61 : vector<16x128xf32>
    %63 = vector.extract_strided_slice %62 {offsets = [0, 0], sizes = [16, 32], strides = [1, 1]} : vector<16x128xf32> to vector<16x32xf32>
    %cst_36 = arith.constant 0.000000e+00 : f32
    %64 = vector.broadcast %cst_36 : f32 to vector<16x32xf32>
    %65 = arith.subf %64, %63 : vector<16x32xf32>
    %66 = math.exp %65 : vector<16x32xf32>
    %cst_37 = arith.constant 1.000000e+00 : f32
    %67 = vector.broadcast %cst_37 : f32 to vector<16x32xf32>
    %68 = arith.addf %67, %66 : vector<16x32xf32>
    %cst_38 = arith.constant 1.000000e+00 : f32
    %69 = vector.broadcast %cst_38 : f32 to vector<16x32xf32>
    %70 = arith.divf %69, %68 : vector<16x32xf32>
    %71 = vector.extract_strided_slice %62 {offsets = [0, 32], sizes = [16, 32], strides = [1, 1]} : vector<16x128xf32> to vector<16x32xf32>
    %cst_39 = arith.constant 0.000000e+00 : f32
    %72 = vector.broadcast %cst_39 : f32 to vector<16x32xf32>
    %73 = arith.subf %72, %71 : vector<16x32xf32>
    %74 = math.exp %73 : vector<16x32xf32>
    %cst_40 = arith.constant 1.000000e+00 : f32
    %75 = vector.broadcast %cst_40 : f32 to vector<16x32xf32>
    %76 = arith.addf %75, %74 : vector<16x32xf32>
    %cst_41 = arith.constant 1.000000e+00 : f32
    %77 = vector.broadcast %cst_41 : f32 to vector<16x32xf32>
    %78 = arith.divf %77, %76 : vector<16x32xf32>
    %79 = vector.extract_strided_slice %62 {offsets = [0, 64], sizes = [16, 32], strides = [1, 1]} : vector<16x128xf32> to vector<16x32xf32>
    %80 = math.tanh %79 : vector<16x32xf32>
    %81 = vector.extract_strided_slice %62 {offsets = [0, 96], sizes = [16, 32], strides = [1, 1]} : vector<16x128xf32> to vector<16x32xf32>
    %cst_42 = arith.constant 0.000000e+00 : f32
    %82 = vector.broadcast %cst_42 : f32 to vector<16x32xf32>
    %83 = arith.subf %82, %81 : vector<16x32xf32>
    %84 = math.exp %83 : vector<16x32xf32>
    %cst_43 = arith.constant 1.000000e+00 : f32
    %85 = vector.broadcast %cst_43 : f32 to vector<16x32xf32>
    %86 = arith.addf %85, %84 : vector<16x32xf32>
    %cst_44 = arith.constant 1.000000e+00 : f32
    %87 = vector.broadcast %cst_44 : f32 to vector<16x32xf32>
    %88 = arith.divf %87, %86 : vector<16x32xf32>
    %89 = arith.mulf %78, %16 : vector<16x32xf32>
    %90 = arith.mulf %70, %80 : vector<16x32xf32>
    %91 = arith.addf %89, %90 : vector<16x32xf32>
    %92 = math.tanh %91 : vector<16x32xf32>
    %93 = arith.mulf %88, %92 : vector<16x32xf32>
    %c0_45 = arith.constant 0 : index
    %c0_46 = arith.constant 0 : index
    %94 = vector.load %arg5[%c0_45, %c0_46] : memref<32x32xf32, #tpu.memory_space<vmem>>, vector<32x32xf32>
    %cst_47 = arith.constant dense<0.000000e+00> : vector<16x32xf32>
    %95 = tpu.matmul %93, %94, %cst_47 {dimension_numbers = #tpu.dot_dimension_numbers<[1], [0], [0], [1], [0, 0, 1, 1], [], []>} : vector<16x32xf32>, vector<32x32xf32>, vector<16x32xf32> -> vector<16x32xf32>
    %c0_48 = arith.constant 0 : index
    %c0_49 = arith.constant 0 : index
    %96 = vector.load %arg6[%c0_48, %c0_49] : memref<1x32xf32, #tpu.memory_space<vmem>>, vector<1x32xf32>
    %97 = vector.broadcast %96 : vector<1x32xf32> to vector<16x32xf32>
    %98 = arith.addf %95, %97 : vector<16x32xf32>
    %99 = vector.shape_cast %98 : vector<16x32xf32> to vector<1x16x32xf32>
    %100 = vector.broadcast %99 : vector<1x16x32xf32> to vector<8x16x32xf32>
    %101 = arith.addf %12, %100 : vector<8x16x32xf32>
    %102 = math.tanh %101 : vector<8x16x32xf32>
    %103 = vector.broadcast %14 : vector<1x1x32xf32> to vector<8x16x32xf32>
    %104 = arith.mulf %102, %103 : vector<8x16x32xf32>
    %cst_50 = arith.constant dense<0.000000e+00> : vector<8x16xf32>
    %105 = vector.multi_reduction <add>, %104, %cst_50 [2] : vector<8x16x32xf32> to vector<8x16xf32>
    %c0_51 = arith.constant 0 : index
    %c0_52 = arith.constant 0 : index
    %106 = vector.load %arg8[%c0_51, %c0_52] : memref<1x1xf32, #tpu.memory_space<vmem>>, vector<1x1xf32>
    %107 = vector.broadcast %106 : vector<1x1xf32> to vector<8x16xf32>
    %108 = arith.addf %105, %107 : vector<8x16xf32>
    %109 = tpu.transpose %108, [1, 0] : vector<8x16xf32> -> vector<16x8xf32>
    %110 = arith.mulf %109, %1 : vector<16x8xf32>
    %cst_53 = arith.constant dense<0xFF800000> : vector<16xf32>
    %111 = vector.multi_reduction <maximumf>, %110, %cst_53 [1] : vector<16x8xf32> to vector<16xf32>
    %112 = vector.shape_cast %111 : vector<16xf32> to vector<16x1xf32>
    %113 = vector.broadcast %112 : vector<16x1xf32> to vector<16x8xf32>
    %114 = arith.subf %110, %113 : vector<16x8xf32>
    %115 = math.exp %114 : vector<16x8xf32>
    %116 = arith.mulf %115, %1 : vector<16x8xf32>
    %cst_54 = arith.constant dense<0.000000e+00> : vector<16xf32>
    %117 = vector.multi_reduction <add>, %116, %cst_54 [1] : vector<16x8xf32> to vector<16xf32>
    %118 = vector.shape_cast %117 : vector<16xf32> to vector<16x1xf32>
    %cst_55 = arith.constant 9.99999997E-7 : f32
    %119 = vector.broadcast %cst_55 : f32 to vector<16x1xf32>
    %120 = arith.addf %118, %119 : vector<16x1xf32>
    %121 = tpu.reciprocal %120 : vector<16x1xf32> -> vector<16x1xf32>
    %122 = vector.broadcast %121 : vector<16x1xf32> to vector<16x8xf32>
    %123 = arith.mulf %116, %122 : vector<16x8xf32>
    %124 = tpu.transpose %123, [1, 0] : vector<16x8xf32> -> vector<8x16xf32>
    %125 = vector.shape_cast %124 : vector<8x16xf32> to vector<8x16x1xf32>
    %126 = vector.broadcast %125 : vector<8x16x1xf32> to vector<8x16x16xf32>
    %127 = arith.mulf %126, %0 : vector<8x16x16xf32>
    %cst_56 = arith.constant dense<0.000000e+00> : vector<16x16xf32>
    %128 = vector.multi_reduction <add>, %127, %cst_56 [0] : vector<8x16x16xf32> to vector<16x16xf32>
    %c0_57 = arith.constant 0 : index
    %c0_58 = arith.constant 0 : index
    %129 = vector.load %arg9[%c0_57, %c0_58] : memref<16x128xf32, #tpu.memory_space<vmem>>, vector<16x128xf32>
    %cst_59 = arith.constant dense<0.000000e+00> : vector<16x128xf32>
    %130 = tpu.matmul %128, %129, %cst_59 {dimension_numbers = #tpu.dot_dimension_numbers<[1], [0], [0], [1], [0, 0, 1, 1], [], []>} : vector<16x16xf32>, vector<16x128xf32>, vector<16x128xf32> -> vector<16x128xf32>
    %c0_60 = arith.constant 0 : index
    %c0_61 = arith.constant 0 : index
    %131 = vector.load %arg10[%c0_60, %c0_61] : memref<1x128xf32, #tpu.memory_space<vmem>>, vector<1x128xf32>
    %132 = vector.broadcast %131 : vector<1x128xf32> to vector<16x128xf32>
    %133 = arith.addf %130, %132 : vector<16x128xf32>
    %c0_62 = arith.constant 0 : index
    %c0_63 = arith.constant 0 : index
    %134 = vector.load %arg11[%c0_62, %c0_63] : memref<32x128xf32, #tpu.memory_space<vmem>>, vector<32x128xf32>
    %cst_64 = arith.constant dense<0.000000e+00> : vector<16x128xf32>
    %135 = tpu.matmul %93, %134, %cst_64 {dimension_numbers = #tpu.dot_dimension_numbers<[1], [0], [0], [1], [0, 0, 1, 1], [], []>} : vector<16x32xf32>, vector<32x128xf32>, vector<16x128xf32> -> vector<16x128xf32>
    %136 = arith.addf %133, %135 : vector<16x128xf32>
    %c0_65 = arith.constant 0 : index
    %c0_66 = arith.constant 0 : index
    %137 = vector.load %arg12[%c0_65, %c0_66] : memref<1x128xf32, #tpu.memory_space<vmem>>, vector<1x128xf32>
    %138 = vector.broadcast %137 : vector<1x128xf32> to vector<16x128xf32>
    %139 = arith.addf %136, %138 : vector<16x128xf32>
    %140 = vector.extract_strided_slice %139 {offsets = [0, 0], sizes = [16, 32], strides = [1, 1]} : vector<16x128xf32> to vector<16x32xf32>
    %cst_67 = arith.constant 0.000000e+00 : f32
    %141 = vector.broadcast %cst_67 : f32 to vector<16x32xf32>
    %142 = arith.subf %141, %140 : vector<16x32xf32>
    %143 = math.exp %142 : vector<16x32xf32>
    %cst_68 = arith.constant 1.000000e+00 : f32
    %144 = vector.broadcast %cst_68 : f32 to vector<16x32xf32>
    %145 = arith.addf %144, %143 : vector<16x32xf32>
    %cst_69 = arith.constant 1.000000e+00 : f32
    %146 = vector.broadcast %cst_69 : f32 to vector<16x32xf32>
    %147 = arith.divf %146, %145 : vector<16x32xf32>
    %148 = vector.extract_strided_slice %139 {offsets = [0, 32], sizes = [16, 32], strides = [1, 1]} : vector<16x128xf32> to vector<16x32xf32>
    %cst_70 = arith.constant 0.000000e+00 : f32
    %149 = vector.broadcast %cst_70 : f32 to vector<16x32xf32>
    %150 = arith.subf %149, %148 : vector<16x32xf32>
    %151 = math.exp %150 : vector<16x32xf32>
    %cst_71 = arith.constant 1.000000e+00 : f32
    %152 = vector.broadcast %cst_71 : f32 to vector<16x32xf32>
    %153 = arith.addf %152, %151 : vector<16x32xf32>
    %cst_72 = arith.constant 1.000000e+00 : f32
    %154 = vector.broadcast %cst_72 : f32 to vector<16x32xf32>
    %155 = arith.divf %154, %153 : vector<16x32xf32>
    %156 = vector.extract_strided_slice %139 {offsets = [0, 64], sizes = [16, 32], strides = [1, 1]} : vector<16x128xf32> to vector<16x32xf32>
    %157 = math.tanh %156 : vector<16x32xf32>
    %158 = vector.extract_strided_slice %139 {offsets = [0, 96], sizes = [16, 32], strides = [1, 1]} : vector<16x128xf32> to vector<16x32xf32>
    %cst_73 = arith.constant 0.000000e+00 : f32
    %159 = vector.broadcast %cst_73 : f32 to vector<16x32xf32>
    %160 = arith.subf %159, %158 : vector<16x32xf32>
    %161 = math.exp %160 : vector<16x32xf32>
    %cst_74 = arith.constant 1.000000e+00 : f32
    %162 = vector.broadcast %cst_74 : f32 to vector<16x32xf32>
    %163 = arith.addf %162, %161 : vector<16x32xf32>
    %cst_75 = arith.constant 1.000000e+00 : f32
    %164 = vector.broadcast %cst_75 : f32 to vector<16x32xf32>
    %165 = arith.divf %164, %163 : vector<16x32xf32>
    %166 = arith.mulf %155, %91 : vector<16x32xf32>
    %167 = arith.mulf %147, %157 : vector<16x32xf32>
    %168 = arith.addf %166, %167 : vector<16x32xf32>
    %169 = math.tanh %168 : vector<16x32xf32>
    %170 = arith.mulf %165, %169 : vector<16x32xf32>
    %c0_76 = arith.constant 0 : index
    %c0_77 = arith.constant 0 : index
    %171 = vector.load %arg5[%c0_76, %c0_77] : memref<32x32xf32, #tpu.memory_space<vmem>>, vector<32x32xf32>
    %cst_78 = arith.constant dense<0.000000e+00> : vector<16x32xf32>
    %172 = tpu.matmul %170, %171, %cst_78 {dimension_numbers = #tpu.dot_dimension_numbers<[1], [0], [0], [1], [0, 0, 1, 1], [], []>} : vector<16x32xf32>, vector<32x32xf32>, vector<16x32xf32> -> vector<16x32xf32>
    %c0_79 = arith.constant 0 : index
    %c0_80 = arith.constant 0 : index
    %173 = vector.load %arg6[%c0_79, %c0_80] : memref<1x32xf32, #tpu.memory_space<vmem>>, vector<1x32xf32>
    %174 = vector.broadcast %173 : vector<1x32xf32> to vector<16x32xf32>
    %175 = arith.addf %172, %174 : vector<16x32xf32>
    %176 = vector.shape_cast %175 : vector<16x32xf32> to vector<1x16x32xf32>
    %177 = vector.broadcast %176 : vector<1x16x32xf32> to vector<8x16x32xf32>
    %178 = arith.addf %12, %177 : vector<8x16x32xf32>
    %179 = math.tanh %178 : vector<8x16x32xf32>
    %180 = vector.broadcast %14 : vector<1x1x32xf32> to vector<8x16x32xf32>
    %181 = arith.mulf %179, %180 : vector<8x16x32xf32>
    %cst_81 = arith.constant dense<0.000000e+00> : vector<8x16xf32>
    %182 = vector.multi_reduction <add>, %181, %cst_81 [2] : vector<8x16x32xf32> to vector<8x16xf32>
    %c0_82 = arith.constant 0 : index
    %c0_83 = arith.constant 0 : index
    %183 = vector.load %arg8[%c0_82, %c0_83] : memref<1x1xf32, #tpu.memory_space<vmem>>, vector<1x1xf32>
    %184 = vector.broadcast %183 : vector<1x1xf32> to vector<8x16xf32>
    %185 = arith.addf %182, %184 : vector<8x16xf32>
    %186 = tpu.transpose %185, [1, 0] : vector<8x16xf32> -> vector<16x8xf32>
    %187 = arith.mulf %186, %1 : vector<16x8xf32>
    %cst_84 = arith.constant dense<0xFF800000> : vector<16xf32>
    %188 = vector.multi_reduction <maximumf>, %187, %cst_84 [1] : vector<16x8xf32> to vector<16xf32>
    %189 = vector.shape_cast %188 : vector<16xf32> to vector<16x1xf32>
    %190 = vector.broadcast %189 : vector<16x1xf32> to vector<16x8xf32>
    %191 = arith.subf %187, %190 : vector<16x8xf32>
    %192 = math.exp %191 : vector<16x8xf32>
    %193 = arith.mulf %192, %1 : vector<16x8xf32>
    %cst_85 = arith.constant dense<0.000000e+00> : vector<16xf32>
    %194 = vector.multi_reduction <add>, %193, %cst_85 [1] : vector<16x8xf32> to vector<16xf32>
    %195 = vector.shape_cast %194 : vector<16xf32> to vector<16x1xf32>
    %cst_86 = arith.constant 9.99999997E-7 : f32
    %196 = vector.broadcast %cst_86 : f32 to vector<16x1xf32>
    %197 = arith.addf %195, %196 : vector<16x1xf32>
    %198 = tpu.reciprocal %197 : vector<16x1xf32> -> vector<16x1xf32>
    %199 = vector.broadcast %198 : vector<16x1xf32> to vector<16x8xf32>
    %200 = arith.mulf %193, %199 : vector<16x8xf32>
    %201 = tpu.transpose %200, [1, 0] : vector<16x8xf32> -> vector<8x16xf32>
    %202 = vector.shape_cast %201 : vector<8x16xf32> to vector<8x16x1xf32>
    %203 = vector.broadcast %202 : vector<8x16x1xf32> to vector<8x16x16xf32>
    %204 = arith.mulf %203, %0 : vector<8x16x16xf32>
    %cst_87 = arith.constant dense<0.000000e+00> : vector<16x16xf32>
    %205 = vector.multi_reduction <add>, %204, %cst_87 [0] : vector<8x16x16xf32> to vector<16x16xf32>
    %c0_88 = arith.constant 0 : index
    %c0_89 = arith.constant 0 : index
    %206 = vector.load %arg9[%c0_88, %c0_89] : memref<16x128xf32, #tpu.memory_space<vmem>>, vector<16x128xf32>
    %cst_90 = arith.constant dense<0.000000e+00> : vector<16x128xf32>
    %207 = tpu.matmul %205, %206, %cst_90 {dimension_numbers = #tpu.dot_dimension_numbers<[1], [0], [0], [1], [0, 0, 1, 1], [], []>} : vector<16x16xf32>, vector<16x128xf32>, vector<16x128xf32> -> vector<16x128xf32>
    %c0_91 = arith.constant 0 : index
    %c0_92 = arith.constant 0 : index
    %208 = vector.load %arg10[%c0_91, %c0_92] : memref<1x128xf32, #tpu.memory_space<vmem>>, vector<1x128xf32>
    %209 = vector.broadcast %208 : vector<1x128xf32> to vector<16x128xf32>
    %210 = arith.addf %207, %209 : vector<16x128xf32>
    %c0_93 = arith.constant 0 : index
    %c0_94 = arith.constant 0 : index
    %211 = vector.load %arg11[%c0_93, %c0_94] : memref<32x128xf32, #tpu.memory_space<vmem>>, vector<32x128xf32>
    %cst_95 = arith.constant dense<0.000000e+00> : vector<16x128xf32>
    %212 = tpu.matmul %170, %211, %cst_95 {dimension_numbers = #tpu.dot_dimension_numbers<[1], [0], [0], [1], [0, 0, 1, 1], [], []>} : vector<16x32xf32>, vector<32x128xf32>, vector<16x128xf32> -> vector<16x128xf32>
    %213 = arith.addf %210, %212 : vector<16x128xf32>
    %c0_96 = arith.constant 0 : index
    %c0_97 = arith.constant 0 : index
    %214 = vector.load %arg12[%c0_96, %c0_97] : memref<1x128xf32, #tpu.memory_space<vmem>>, vector<1x128xf32>
    %215 = vector.broadcast %214 : vector<1x128xf32> to vector<16x128xf32>
    %216 = arith.addf %213, %215 : vector<16x128xf32>
    %217 = vector.extract_strided_slice %216 {offsets = [0, 0], sizes = [16, 32], strides = [1, 1]} : vector<16x128xf32> to vector<16x32xf32>
    %cst_98 = arith.constant 0.000000e+00 : f32
    %218 = vector.broadcast %cst_98 : f32 to vector<16x32xf32>
    %219 = arith.subf %218, %217 : vector<16x32xf32>
    %220 = math.exp %219 : vector<16x32xf32>
    %cst_99 = arith.constant 1.000000e+00 : f32
    %221 = vector.broadcast %cst_99 : f32 to vector<16x32xf32>
    %222 = arith.addf %221, %220 : vector<16x32xf32>
    %cst_100 = arith.constant 1.000000e+00 : f32
    %223 = vector.broadcast %cst_100 : f32 to vector<16x32xf32>
    %224 = arith.divf %223, %222 : vector<16x32xf32>
    %225 = vector.extract_strided_slice %216 {offsets = [0, 32], sizes = [16, 32], strides = [1, 1]} : vector<16x128xf32> to vector<16x32xf32>
    %cst_101 = arith.constant 0.000000e+00 : f32
    %226 = vector.broadcast %cst_101 : f32 to vector<16x32xf32>
    %227 = arith.subf %226, %225 : vector<16x32xf32>
    %228 = math.exp %227 : vector<16x32xf32>
    %cst_102 = arith.constant 1.000000e+00 : f32
    %229 = vector.broadcast %cst_102 : f32 to vector<16x32xf32>
    %230 = arith.addf %229, %228 : vector<16x32xf32>
    %cst_103 = arith.constant 1.000000e+00 : f32
    %231 = vector.broadcast %cst_103 : f32 to vector<16x32xf32>
    %232 = arith.divf %231, %230 : vector<16x32xf32>
    %233 = vector.extract_strided_slice %216 {offsets = [0, 64], sizes = [16, 32], strides = [1, 1]} : vector<16x128xf32> to vector<16x32xf32>
    %234 = math.tanh %233 : vector<16x32xf32>
    %235 = vector.extract_strided_slice %216 {offsets = [0, 96], sizes = [16, 32], strides = [1, 1]} : vector<16x128xf32> to vector<16x32xf32>
    %cst_104 = arith.constant 0.000000e+00 : f32
    %236 = vector.broadcast %cst_104 : f32 to vector<16x32xf32>
    %237 = arith.subf %236, %235 : vector<16x32xf32>
    %238 = math.exp %237 : vector<16x32xf32>
    %cst_105 = arith.constant 1.000000e+00 : f32
    %239 = vector.broadcast %cst_105 : f32 to vector<16x32xf32>
    %240 = arith.addf %239, %238 : vector<16x32xf32>
    %cst_106 = arith.constant 1.000000e+00 : f32
    %241 = vector.broadcast %cst_106 : f32 to vector<16x32xf32>
    %242 = arith.divf %241, %240 : vector<16x32xf32>
    %243 = arith.mulf %232, %168 : vector<16x32xf32>
    %244 = arith.mulf %224, %234 : vector<16x32xf32>
    %245 = arith.addf %243, %244 : vector<16x32xf32>
    %246 = math.tanh %245 : vector<16x32xf32>
    %247 = arith.mulf %242, %246 : vector<16x32xf32>
    %c0_107 = arith.constant 0 : index
    %c0_108 = arith.constant 0 : index
    %248 = vector.load %arg5[%c0_107, %c0_108] : memref<32x32xf32, #tpu.memory_space<vmem>>, vector<32x32xf32>
    %cst_109 = arith.constant dense<0.000000e+00> : vector<16x32xf32>
    %249 = tpu.matmul %247, %248, %cst_109 {dimension_numbers = #tpu.dot_dimension_numbers<[1], [0], [0], [1], [0, 0, 1, 1], [], []>} : vector<16x32xf32>, vector<32x32xf32>, vector<16x32xf32> -> vector<16x32xf32>
    %c0_110 = arith.constant 0 : index
    %c0_111 = arith.constant 0 : index
    %250 = vector.load %arg6[%c0_110, %c0_111] : memref<1x32xf32, #tpu.memory_space<vmem>>, vector<1x32xf32>
    %251 = vector.broadcast %250 : vector<1x32xf32> to vector<16x32xf32>
    %252 = arith.addf %249, %251 : vector<16x32xf32>
    %253 = vector.shape_cast %252 : vector<16x32xf32> to vector<1x16x32xf32>
    %254 = vector.broadcast %253 : vector<1x16x32xf32> to vector<8x16x32xf32>
    %255 = arith.addf %12, %254 : vector<8x16x32xf32>
    %256 = math.tanh %255 : vector<8x16x32xf32>
    %257 = vector.broadcast %14 : vector<1x1x32xf32> to vector<8x16x32xf32>
    %258 = arith.mulf %256, %257 : vector<8x16x32xf32>
    %cst_112 = arith.constant dense<0.000000e+00> : vector<8x16xf32>
    %259 = vector.multi_reduction <add>, %258, %cst_112 [2] : vector<8x16x32xf32> to vector<8x16xf32>
    %c0_113 = arith.constant 0 : index
    %c0_114 = arith.constant 0 : index
    %260 = vector.load %arg8[%c0_113, %c0_114] : memref<1x1xf32, #tpu.memory_space<vmem>>, vector<1x1xf32>
    %261 = vector.broadcast %260 : vector<1x1xf32> to vector<8x16xf32>
    %262 = arith.addf %259, %261 : vector<8x16xf32>
    %263 = tpu.transpose %262, [1, 0] : vector<8x16xf32> -> vector<16x8xf32>
    %264 = arith.mulf %263, %1 : vector<16x8xf32>
    %cst_115 = arith.constant dense<0xFF800000> : vector<16xf32>
    %265 = vector.multi_reduction <maximumf>, %264, %cst_115 [1] : vector<16x8xf32> to vector<16xf32>
    %266 = vector.shape_cast %265 : vector<16xf32> to vector<16x1xf32>
    %267 = vector.broadcast %266 : vector<16x1xf32> to vector<16x8xf32>
    %268 = arith.subf %264, %267 : vector<16x8xf32>
    %269 = math.exp %268 : vector<16x8xf32>
    %270 = arith.mulf %269, %1 : vector<16x8xf32>
    %cst_116 = arith.constant dense<0.000000e+00> : vector<16xf32>
    %271 = vector.multi_reduction <add>, %270, %cst_116 [1] : vector<16x8xf32> to vector<16xf32>
    %272 = vector.shape_cast %271 : vector<16xf32> to vector<16x1xf32>
    %cst_117 = arith.constant 9.99999997E-7 : f32
    %273 = vector.broadcast %cst_117 : f32 to vector<16x1xf32>
    %274 = arith.addf %272, %273 : vector<16x1xf32>
    %275 = tpu.reciprocal %274 : vector<16x1xf32> -> vector<16x1xf32>
    %276 = vector.broadcast %275 : vector<16x1xf32> to vector<16x8xf32>
    %277 = arith.mulf %270, %276 : vector<16x8xf32>
    %278 = arith.addf %200, %5 : vector<16x8xf32>
    %c0_118 = arith.constant 0 : index
    %c0_119 = arith.constant 0 : index
    %c0_120 = arith.constant 0 : index
    %279 = vector.load %arg13[%c0_118, %c0_119, %c0_120] : memref<2x16x8xf32, #tpu.memory_space<vmem>>, vector<1x16x8xf32>
    %280 = vector.shape_cast %279 : vector<1x16x8xf32> to vector<16x8xf32>
    %281 = vector.shape_cast %278 : vector<16x8xf32> to vector<1x16x8xf32>
    tpu.vector_store %arg13[%c0_118, %c0_119, %c0_120], %281 {strides = array<i32>} : memref<2x16x8xf32, #tpu.memory_space<vmem>>, vector<1x16x8xf32>,
    %282 = arith.addf %277, %5 : vector<16x8xf32>
    %c1 = arith.constant 1 : index
    %c0_121 = arith.constant 0 : index
    %c0_122 = arith.constant 0 : index
    %283 = vector.load %arg13[%c1, %c0_121, %c0_122] : memref<2x16x8xf32, #tpu.memory_space<vmem>>, vector<1x16x8xf32>
    %284 = vector.shape_cast %283 : vector<1x16x8xf32> to vector<16x8xf32>
    %285 = vector.shape_cast %282 : vector<16x8xf32> to vector<1x16x8xf32>
    tpu.vector_store %arg13[%c1, %c0_121, %c0_122], %285 {strides = array<i32>} : memref<2x16x8xf32, #tpu.memory_space<vmem>>, vector<1x16x8xf32>,
    return
  }
  func.func @transform_0(%arg0: i32) -> (i32, i32, i32) {
    %c0_i32 = arith.constant 0 : i32
    %c0_i32_0 = arith.constant 0 : i32
    %c0_i32_1 = arith.constant 0 : i32
    return %c0_i32, %arg0, %c0_i32_0 : i32, i32, i32
  }
  func.func @transform_1(%arg0: i32) -> (i32, i32) {
    %c0_i32 = arith.constant 0 : i32
    %c0_i32_0 = arith.constant 0 : i32
    return %arg0, %c0_i32 : i32, i32
  }
  func.func @transform_2(%arg0: i32) -> (i32, i32) {
    %c0_i32 = arith.constant 0 : i32
    %c0_i32_0 = arith.constant 0 : i32
    %c0_i32_1 = arith.constant 0 : i32
    return %c0_i32, %c0_i32_0 : i32, i32
  }
  func.func @transform_3(%arg0: i32) -> (i32, i32) {
    %c0_i32 = arith.constant 0 : i32
    %c0_i32_0 = arith.constant 0 : i32
    %c0_i32_1 = arith.constant 0 : i32
    return %c0_i32, %c0_i32_0 : i32, i32
  }
  func.func @transform_4(%arg0: i32) -> (i32, i32) {
    %c0_i32 = arith.constant 0 : i32
    %c0_i32_0 = arith.constant 0 : i32
    %c0_i32_1 = arith.constant 0 : i32
    return %c0_i32, %c0_i32_0 : i32, i32
  }
  func.func @transform_5(%arg0: i32) -> (i32, i32) {
    %c0_i32 = arith.constant 0 : i32
    %c0_i32_0 = arith.constant 0 : i32
    %c0_i32_1 = arith.constant 0 : i32
    return %c0_i32, %c0_i32_0 : i32, i32
  }
  func.func @transform_6(%arg0: i32) -> (i32, i32) {
    %c0_i32 = arith.constant 0 : i32
    %c0_i32_0 = arith.constant 0 : i32
    %c0_i32_1 = arith.constant 0 : i32
    return %c0_i32, %c0_i32_0 : i32, i32
  }
  func.func @transform_7(%arg0: i32) -> (i32, i32) {
    %c0_i32 = arith.constant 0 : i32
    %c0_i32_0 = arith.constant 0 : i32
    %c0_i32_1 = arith.constant 0 : i32
    return %c0_i32, %c0_i32_0 : i32, i32
  }
  func.func @transform_8(%arg0: i32) -> (i32, i32) {
    %c0_i32 = arith.constant 0 : i32
    %c0_i32_0 = arith.constant 0 : i32
    %c0_i32_1 = arith.constant 0 : i32
    return %c0_i32, %c0_i32_0 : i32, i32
  }
  func.func @transform_9(%arg0: i32) -> (i32, i32) {
    %c0_i32 = arith.constant 0 : i32
    %c0_i32_0 = arith.constant 0 : i32
    %c0_i32_1 = arith.constant 0 : i32
    return %c0_i32, %c0_i32_0 : i32, i32
  }
  func.func @transform_10(%arg0: i32) -> (i32, i32) {
    %c0_i32 = arith.constant 0 : i32
    %c0_i32_0 = arith.constant 0 : i32
    %c0_i32_1 = arith.constant 0 : i32
    return %c0_i32, %c0_i32_0 : i32, i32
  }
  func.func @transform_11(%arg0: i32) -> (i32, i32) {
    %c0_i32 = arith.constant 0 : i32
    %c0_i32_0 = arith.constant 0 : i32
    %c0_i32_1 = arith.constant 0 : i32
    return %c0_i32, %c0_i32_0 : i32, i32
  }
  func.func @transform_12(%arg0: i32) -> (i32, i32, i32) {
    %c0_i32 = arith.constant 0 : i32
    %c0_i32_0 = arith.constant 0 : i32
    %c0_i32_1 = arith.constant 0 : i32
    return %c0_i32, %arg0, %c0_i32_0 : i32, i32, i32
  }
}

</mosaic_0001>

<llo_original>
// kernel: tpu_custom_call.1
$region0: #{tpu_custom_call.1}
  #allocation0 [shape = 'u32[]', space=smem, size = 0x4, offset = 0x4, fixed_abs, tag = 'smem constant byte address 0x4 - core index']
  #allocation1 [shape = 'u32[144,128]{1,0:T(1,128)}', space=vmem, size = 0x12000, scoped, tag = 'internal scratch']
  #allocation2 [shape = 'f32[1,1]{1,0:T(1,128)S(1)}', space=vmem, size = 0x200, scoped, tag = 'scoped memory for tpu_custom_call.1']
  %s0 = inlined_call_operand.vmem [shape: f32[8,32,16], index: 0, kind: input, shape index: {}]
  %s1 = inlined_call_operand.vmem [shape: f32[32,8], index: 1, kind: input, shape index: {}]
  %s2 = inlined_call_operand.vmem [shape: f32[16,32], index: 2, kind: input, shape index: {}]
  %s3 = inlined_call_operand.vmem [shape: f32[1,32], index: 3, kind: input, shape index: {}]
  %s4 = inlined_call_operand.vmem [shape: f32[32,32], index: 4, kind: input, shape index: {}]
  %s5 = inlined_call_operand.vmem [shape: f32[1,32], index: 5, kind: input, shape index: {}]
  %s6 = inlined_call_operand.vmem [shape: f32[1,32], index: 6, kind: input, shape index: {}]
  %s7 = inlined_call_operand.<no memory space> [shape: f32[1,1], index: 7, kind: input, shape index: {}]
  %s8 = inlined_call_operand.vmem [shape: f32[16,128], index: 8, kind: input, shape index: {}]
  %s9 = inlined_call_operand.vmem [shape: f32[1,128], index: 9, kind: input, shape index: {}]
  %s10 = inlined_call_operand.vmem [shape: f32[32,128], index: 10, kind: input, shape index: {}]
  %s11 = inlined_call_operand.vmem [shape: f32[1,128], index: 11, kind: input, shape index: {}]
  %s12 = inlined_call_operand.vmem [shape: f32[2,32,8], index: 12, kind: output, shape index: {}]
  %s13 = sld [smem:[#allocation0]]
  $region153: #{tpu_custom_call.1} parent=0
    _
  %s15 = ssub.s32 1, %s13
  %s16 = scalar_select 0, %s15, %s13
  %v17 = vstv %s7
  %18 = vst [vmem:[#allocation2] sm:$0x1] %v17
  $region1: #{tpu_custom_call.1} parent=0
    #allocation3 [shape = 'u8[131072]{0}', space=vmem, size = 0x20000, scoped, tag = 'input window, operand 0']
    #allocation4 [shape = 'u8[32768]{0}', space=vmem, size = 0x8000, scoped, tag = 'output window, operand 0']
    loop: start=0, step=1, limit=4
    $region2: #{tpu_custom_call.1} parent=1 // loop_pre_header
      _
    $region3: #{tpu_custom_call.1} parent=1 // loop_header
      %s20 = sphi 0, %s24
      %p21 = scmp.ge.s32.totalorder %s20, 4
      %s30 = sphi 0, %s32
      %s33 = sphi 0, %s30
      %s34 = sphi 0, %s33
      %s50 = sphi 0, %s34
      %s56 = sphi 0, %s58
      %s59 = sphi 0, %s56
      %s60 = sphi 0, %s59
      %s76 = sphi 0, %s60
      %s80 = sphi 0, %s80
      %s82 = sphi 0, %s80
      %s83 = sphi 0, %s82
      %s97 = sphi 0, %s83
      %s101 = sphi 0, %s101
      %s103 = sphi 0, %s101
      %s104 = sphi 0, %s103
      %s118 = sphi 0, %s104
      %s122 = sphi 0, %s122
      %s124 = sphi 0, %s122
      %s125 = sphi 0, %s124
      %s139 = sphi 0, %s125
      %s143 = sphi 0, %s143
      %s145 = sphi 0, %s143
      %s146 = sphi 0, %s145
      %s160 = sphi 0, %s146
      %s164 = sphi 0, %s164
      %s166 = sphi 0, %s164
      %s167 = sphi 0, %s166
      %s181 = sphi 0, %s167
      %s185 = sphi 0, %s185
      %s187 = sphi 0, %s185
      %s188 = sphi 0, %s187
      %s202 = sphi 0, %s188
      %s206 = sphi 0, %s206
      %s208 = sphi 0, %s206
      %s209 = sphi 0, %s208
      %s223 = sphi 0, %s209
      %s227 = sphi 0, %s227
      %s229 = sphi 0, %s227
      %s230 = sphi 0, %s229
      %s244 = sphi 0, %s230
      %s248 = sphi 0, %s248
      %s250 = sphi 0, %s248
      %s251 = sphi 0, %s250
      %s265 = sphi 0, %s251
      %s269 = sphi 0, %s269
      %s271 = sphi 0, %s269
      %s272 = sphi 0, %s271
      %s286 = sphi 0, %s272
      %s292 = sphi 0, %s294
      %s295 = sphi 0, %s292
      %s296 = sphi 0, %s295
      %s312 = sphi 0, %s296
    $region4: #{tpu_custom_call.1} parent=1 // loop_header_branch
      %23 = sbr.rel (%p21) target = $region8
    $region5: #{tpu_custom_call.1} parent=1 // loop_body
      %s25 = ssub.s32 %s20, 1
      %s26 = ssub.s32 %s20, 2
      %s27 = sadd.s32 %s20, 1
      %s28 = ssub.s32 %s20, %s27
      %p29 = scmp.eq.s32.totalorder %s28, 0
      %s31 = sadd.s32 %s30, 1
      %s32 = scalar_select %p29, %s30, %s31
      %p35 = pneg %p29
      %p36 = scmp.eq.s32.totalorder %s20, 1
      %p37 = por %p35, %p36
      %p38 = scmp.ne.s32.totalorder %s30, %s33
      %p39 = scmp.eq.s32.totalorder %s20, 0
      %p40 = por %p38, %p39
      %p41 = scmp.ne.s32.totalorder %s30, %s33
      %p42 = scmp.eq.s32.totalorder %s25, 1
      %p43 = por %p41, %p42
      %p44 = scmp.ne.s32.totalorder %s33, %s34
      %p45 = scmp.eq.s32.totalorder %s25, 0
      %p46 = por %p44, %p45
      %p47 = scmp.ne.s32.totalorder %s33, %s34
      %p48 = scmp.eq.s32.totalorder %s26, 1
      %p49 = por %p47, %p48
      %p51 = scmp.ne.s32.totalorder %s34, %s50
      %p52 = scmp.eq.s32.totalorder %s26, 0
      %p53 = por %p51, %p52
      %s54 = ssub.s32 %s20, %s27
      %p55 = scmp.eq.s32.totalorder %s54, 0
      %s57 = sadd.s32 %s56, 1
      %s58 = scalar_select %p55, %s56, %s57
      %p61 = pneg %p55
      %p62 = scmp.eq.s32.totalorder %s20, 1
      %p63 = por %p61, %p62
      %p64 = scmp.ne.s32.totalorder %s56, %s59
      %p65 = scmp.eq.s32.totalorder %s20, 0
      %p66 = por %p64, %p65
      %p67 = scmp.ne.s32.totalorder %s56, %s59
      %p68 = scmp.eq.s32.totalorder %s25, 1
      %p69 = por %p67, %p68
      %p70 = scmp.ne.s32.totalorder %s59, %s60
      %p71 = scmp.eq.s32.totalorder %s25, 0
      %p72 = por %p70, %p71
      %p73 = scmp.ne.s32.totalorder %s59, %s60
      %p74 = scmp.eq.s32.totalorder %s26, 1
      %p75 = por %p73, %p74
      %p77 = scmp.ne.s32.totalorder %s60, %s76
      %p78 = scmp.eq.s32.totalorder %s26, 0
      %p79 = por %p77, %p78
      %s81 = sadd.s32 %s80, 1
      %p84 = scmp.eq.s32.totalorder %s20, 1
      %p85 = scmp.ne.s32.totalorder %s80, %s82
      %p86 = scmp.eq.s32.totalorder %s20, 0
      %p87 = por %p85, %p86
      %p88 = scmp.ne.s32.totalorder %s80, %s82
      %p89 = scmp.eq.s32.totalorder %s25, 1
      %p90 = por %p88, %p89
      %p91 = scmp.ne.s32.totalorder %s82, %s83
      %p92 = scmp.eq.s32.totalorder %s25, 0
      %p93 = por %p91, %p92
      %p94 = scmp.ne.s32.totalorder %s82, %s83
      %p95 = scmp.eq.s32.totalorder %s26, 1
      %p96 = por %p94, %p95
      %p98 = scmp.ne.s32.totalorder %s83, %s97
      %p99 = scmp.eq.s32.totalorder %s26, 0
      %p100 = por %p98, %p99
      %s102 = sadd.s32 %s101, 1
      %p105 = scmp.eq.s32.totalorder %s20, 1
      %p106 = scmp.ne.s32.totalorder %s101, %s103
      %p107 = scmp.eq.s32.totalorder %s20, 0
      %p108 = por %p106, %p107
      %p109 = scmp.ne.s32.totalorder %s101, %s103
      %p110 = scmp.eq.s32.totalorder %s25, 1
      %p111 = por %p109, %p110
      %p112 = scmp.ne.s32.totalorder %s103, %s104
      %p113 = scmp.eq.s32.totalorder %s25, 0
      %p114 = por %p112, %p113
      %p115 = scmp.ne.s32.totalorder %s103, %s104
      %p116 = scmp.eq.s32.totalorder %s26, 1
      %p117 = por %p115, %p116
      %p119 = scmp.ne.s32.totalorder %s104, %s118
      %p120 = scmp.eq.s32.totalorder %s26, 0
      %p121 = por %p119, %p120
      %s123 = sadd.s32 %s122, 1
      %p126 = scmp.eq.s32.totalorder %s20, 1
      %p127 = scmp.ne.s32.totalorder %s122, %s124
      %p128 = scmp.eq.s32.totalorder %s20, 0
      %p129 = por %p127, %p128
      %p130 = scmp.ne.s32.totalorder %s122, %s124
      %p131 = scmp.eq.s32.totalorder %s25, 1
      %p132 = por %p130, %p131
      %p133 = scmp.ne.s32.totalorder %s124, %s125
      %p134 = scmp.eq.s32.totalorder %s25, 0
      %p135 = por %p133, %p134
      %p136 = scmp.ne.s32.totalorder %s124, %s125
      %p137 = scmp.eq.s32.totalorder %s26, 1
      %p138 = por %p136, %p137
      %p140 = scmp.ne.s32.totalorder %s125, %s139
      %p141 = scmp.eq.s32.totalorder %s26, 0
      %p142 = por %p140, %p141
      %s144 = sadd.s32 %s143, 1
      %p147 = scmp.eq.s32.totalorder %s20, 1
      %p148 = scmp.ne.s32.totalorder %s143, %s145
      %p149 = scmp.eq.s32.totalorder %s20, 0
      %p150 = por %p148, %p149
      %p151 = scmp.ne.s32.totalorder %s143, %s145
      %p152 = scmp.eq.s32.totalorder %s25, 1
      %p153 = por %p151, %p152
      %p154 = scmp.ne.s32.totalorder %s145, %s146
      %p155 = scmp.eq.s32.totalorder %s25, 0
      %p156 = por %p154, %p155
      %p157 = scmp.ne.s32.totalorder %s145, %s146
      %p158 = scmp.eq.s32.totalorder %s26, 1
      %p159 = por %p157, %p158
      %p161 = scmp.ne.s32.totalorder %s146, %s160
      %p162 = scmp.eq.s32.totalorder %s26, 0
      %p163 = por %p161, %p162
      %s165 = sadd.s32 %s164, 1
      %p168 = scmp.eq.s32.totalorder %s20, 1
      %p169 = scmp.ne.s32.totalorder %s164, %s166
      %p170 = scmp.eq.s32.totalorder %s20, 0
      %p171 = por %p169, %p170
      %p172 = scmp.ne.s32.totalorder %s164, %s166
      %p173 = scmp.eq.s32.totalorder %s25, 1
      %p174 = por %p172, %p173
      %p175 = scmp.ne.s32.totalorder %s166, %s167
      %p176 = scmp.eq.s32.totalorder %s25, 0
      %p177 = por %p175, %p176
      %p178 = scmp.ne.s32.totalorder %s166, %s167
      %p179 = scmp.eq.s32.totalorder %s26, 1
      %p180 = por %p178, %p179
      %p182 = scmp.ne.s32.totalorder %s167, %s181
      %p183 = scmp.eq.s32.totalorder %s26, 0
      %p184 = por %p182, %p183
      %s186 = sadd.s32 %s185, 1
      %p189 = scmp.eq.s32.totalorder %s20, 1
      %p190 = scmp.ne.s32.totalorder %s185, %s187
      %p191 = scmp.eq.s32.totalorder %s20, 0
      %p192 = por %p190, %p191
      %p193 = scmp.ne.s32.totalorder %s185, %s187
      %p194 = scmp.eq.s32.totalorder %s25, 1
      %p195 = por %p193, %p194
      %p196 = scmp.ne.s32.totalorder %s187, %s188
      %p197 = scmp.eq.s32.totalorder %s25, 0
      %p198 = por %p196, %p197
      %p199 = scmp.ne.s32.totalorder %s187, %s188
      %p200 = scmp.eq.s32.totalorder %s26, 1
      %p201 = por %p199, %p200
      %p203 = scmp.ne.s32.totalorder %s188, %s202
      %p204 = scmp.eq.s32.totalorder %s26, 0
      %p205 = por %p203, %p204
      %s207 = sadd.s32 %s206, 1
      %p210 = scmp.eq.s32.totalorder %s20, 1
      %p211 = scmp.ne.s32.totalorder %s206, %s208
      %p212 = scmp.eq.s32.totalorder %s20, 0
      %p213 = por %p211, %p212
      %p214 = scmp.ne.s32.totalorder %s206, %s208
      %p215 = scmp.eq.s32.totalorder %s25, 1
      %p216 = por %p214, %p215
      %p217 = scmp.ne.s32.totalorder %s208, %s209
      %p218 = scmp.eq.s32.totalorder %s25, 0
      %p219 = por %p217, %p218
      %p220 = scmp.ne.s32.totalorder %s208, %s209
      %p221 = scmp.eq.s32.totalorder %s26, 1
      %p222 = por %p220, %p221
      %p224 = scmp.ne.s32.totalorder %s209, %s223
      %p225 = scmp.eq.s32.totalorder %s26, 0
      %p226 = por %p224, %p225
      %s228 = sadd.s32 %s227, 1
      %p231 = scmp.eq.s32.totalorder %s20, 1
      %p232 = scmp.ne.s32.totalorder %s227, %s229
      %p233 = scmp.eq.s32.totalorder %s20, 0
      %p234 = por %p232, %p233
      %p235 = scmp.ne.s32.totalorder %s227, %s229
      %p236 = scmp.eq.s32.totalorder %s25, 1
      %p237 = por %p235, %p236
      %p238 = scmp.ne.s32.totalorder %s229, %s230
      %p239 = scmp.eq.s32.totalorder %s25, 0
      %p240 = por %p238, %p239
      %p241 = scmp.ne.s32.totalorder %s229, %s230
      %p242 = scmp.eq.s32.totalorder %s26, 1
      %p243 = por %p241, %p242
      %p245 = scmp.ne.s32.totalorder %s230, %s244
      %p246 = scmp.eq.s32.totalorder %s26, 0
      %p247 = por %p245, %p246
      %s249 = sadd.s32 %s248, 1
      %p252 = scmp.eq.s32.totalorder %s20, 1
      %p253 = scmp.ne.s32.totalorder %s248, %s250
      %p254 = scmp.eq.s32.totalorder %s20, 0
      %p255 = por %p253, %p254
      %p256 = scmp.ne.s32.totalorder %s248, %s250
      %p257 = scmp.eq.s32.totalorder %s25, 1
      %p258 = por %p256, %p257
      %p259 = scmp.ne.s32.totalorder %s250, %s251
      %p260 = scmp.eq.s32.totalorder %s25, 0
      %p261 = por %p259, %p260
      %p262 = scmp.ne.s32.totalorder %s250, %s251
      %p263 = scmp.eq.s32.totalorder %s26, 1
      %p264 = por %p262, %p263
      %p266 = scmp.ne.s32.totalorder %s251, %s265
      %p267 = scmp.eq.s32.totalorder %s26, 0
      %p268 = por %p266, %p267
      %s270 = sadd.s32 %s269, 1
      %p273 = scmp.eq.s32.totalorder %s20, 1
      %p274 = scmp.ne.s32.totalorder %s269, %s271
      %p275 = scmp.eq.s32.totalorder %s20, 0
      %p276 = por %p274, %p275
      %p277 = scmp.ne.s32.totalorder %s269, %s271
      %p278 = scmp.eq.s32.totalorder %s25, 1
      %p279 = por %p277, %p278
      %p280 = scmp.ne.s32.totalorder %s271, %s272
      %p281 = scmp.eq.s32.totalorder %s25, 0
      %p282 = por %p280, %p281
      %p283 = scmp.ne.s32.totalorder %s271, %s272
      %p284 = scmp.eq.s32.totalorder %s26, 1
      %p285 = por %p283, %p284
      %p287 = scmp.ne.s32.totalorder %s272, %s286
      %p288 = scmp.eq.s32.totalorder %s26, 0
      %p289 = por %p287, %p288
      %s290 = ssub.s32 %s20, %s27
      %p291 = scmp.eq.s32.totalorder %s290, 0
      %s293 = sadd.s32 %s292, 1
      %s294 = scalar_select %p291, %s292, %s293
      %p297 = pneg %p291
      %p298 = scmp.eq.s32.totalorder %s20, 1
      %p299 = por %p297, %p298
      %p300 = scmp.ne.s32.totalorder %s292, %s295
      %p301 = scmp.eq.s32.totalorder %s20, 0
      %p302 = por %p300, %p301
      %p303 = scmp.ne.s32.totalorder %s292, %s295
      %p304 = scmp.eq.s32.totalorder %s25, 1
      %p305 = por %p303, %p304
      %p306 = scmp.ne.s32.totalorder %s295, %s296
      %p307 = scmp.eq.s32.totalorder %s25, 0
      %p308 = por %p306, %p307
      %p309 = scmp.ne.s32.totalorder %s295, %s296
      %p310 = scmp.eq.s32.totalorder %s26, 1
      %p311 = por %p309, %p310
      %p313 = scmp.ne.s32.totalorder %s296, %s312
      %p314 = scmp.eq.s32.totalorder %s26, 0
      %p315 = por %p313, %p314
      %p316 = scmp.le.s32.totalorder 1, %s20
      %p317 = scmp.lt.s32.totalorder %s20, 3
      %p318 = pnand %p316, %p317
      %p319 = pneg %p318
      // Predicated region
      $region9: #{tpu_custom_call.1} parent=5 // pred_check
        _
      $region10: #{tpu_custom_call.1} parent=5 // pred_check_branch
        %321 = sbr.rel (%p318) target = $region12
      $region11: #{tpu_custom_call.1} parent=5 // pred_region
        %s322 = ssub.s32 %s20, 1
        // Predicated region
        $region13: #{tpu_custom_call.1} parent=11 // pred_check
          %p323 = pneg %p93
        $region14: #{tpu_custom_call.1} parent=11 // pred_check_branch
          %325 = sbr.rel (%p323) target = $region16
        $region15: #{tpu_custom_call.1} parent=11 // pred_region
          _
        $region16: #{tpu_custom_call.1} parent=11 // pred_fallthru
          _
        // Predicated region
        $region17: #{tpu_custom_call.1} parent=11 // pred_check
          %p326 = pneg %p114
        $region18: #{tpu_custom_call.1} parent=11 // pred_check_branch
          %328 = sbr.rel (%p326) target = $region20
        $region19: #{tpu_custom_call.1} parent=11 // pred_region
          _
        $region20: #{tpu_custom_call.1} parent=11 // pred_fallthru
          _
        // Predicated region
        $region21: #{tpu_custom_call.1} parent=11 // pred_check
          %p329 = pneg %p135
        $region22: #{tpu_custom_call.1} parent=11 // pred_check_branch
          %331 = sbr.rel (%p329) target = $region24
        $region23: #{tpu_custom_call.1} parent=11 // pred_region
          _
        $region24: #{tpu_custom_call.1} parent=11 // pred_fallthru
          _
        // Predicated region
        $region25: #{tpu_custom_call.1} parent=11 // pred_check
          %p332 = pneg %p156
        $region26: #{tpu_custom_call.1} parent=11 // pred_check_branch
          %334 = sbr.rel (%p332) target = $region28
        $region27: #{tpu_custom_call.1} parent=11 // pred_region
          _
        $region28: #{tpu_custom_call.1} parent=11 // pred_fallthru
          _
        // Predicated region
        $region29: #{tpu_custom_call.1} parent=11 // pred_check
          %p335 = pneg %p177
        $region30: #{tpu_custom_call.1} parent=11 // pred_check_branch
          %337 = sbr.rel (%p335) target = $region32
        $region31: #{tpu_custom_call.1} parent=11 // pred_region
          _
        $region32: #{tpu_custom_call.1} parent=11 // pred_fallthru
          _
        // Predicated region
        $region33: #{tpu_custom_call.1} parent=11 // pred_check
          %p338 = pneg %p198
        $region34: #{tpu_custom_call.1} parent=11 // pred_check_branch
          %340 = sbr.rel (%p338) target = $region36
        $region35: #{tpu_custom_call.1} parent=11 // pred_region
          _
        $region36: #{tpu_custom_call.1} parent=11 // pred_fallthru
          _
        // Predicated region
        $region37: #{tpu_custom_call.1} parent=11 // pred_check
          %p341 = pneg %p219
        $region38: #{tpu_custom_call.1} parent=11 // pred_check_branch
          %343 = sbr.rel (%p341) target = $region40
        $region39: #{tpu_custom_call.1} parent=11 // pred_region
          _
        $region40: #{tpu_custom_call.1} parent=11 // pred_fallthru
          _
        // Predicated region
        $region41: #{tpu_custom_call.1} parent=11 // pred_check
          %p344 = pneg %p240
        $region42: #{tpu_custom_call.1} parent=11 // pred_check_branch
          %346 = sbr.rel (%p344) target = $region44
        $region43: #{tpu_custom_call.1} parent=11 // pred_region
          _
        $region44: #{tpu_custom_call.1} parent=11 // pred_fallthru
          _
        // Predicated region
        $region45: #{tpu_custom_call.1} parent=11 // pred_check
          %p347 = pneg %p261
        $region46: #{tpu_custom_call.1} parent=11 // pred_check_branch
          %349 = sbr.rel (%p347) target = $region48
        $region47: #{tpu_custom_call.1} parent=11 // pred_region
          _
        $region48: #{tpu_custom_call.1} parent=11 // pred_fallthru
          _
        // Predicated region
        $region49: #{tpu_custom_call.1} parent=11 // pred_check
          %p350 = pneg %p282
        $region50: #{tpu_custom_call.1} parent=11 // pred_check_branch
          %352 = sbr.rel (%p350) target = $region52
        $region51: #{tpu_custom_call.1} parent=11 // pred_region
          _
        $region52: #{tpu_custom_call.1} parent=11 // pred_fallthru
          _
      $region12: #{tpu_custom_call.1} parent=5 // pred_fallthru
        _
      %p353 = scmp.lt.s32.totalorder %s20, 2
      // Predicated region
      $region53: #{tpu_custom_call.1} parent=5 // pred_check
        %p354 = pneg %p353
      $region54: #{tpu_custom_call.1} parent=5 // pred_check_branch
        %356 = sbr.rel (%p354) target = $region56
      $region55: #{tpu_custom_call.1} parent=5 // pred_region
        // Predicated region
        $region57: #{tpu_custom_call.1} parent=55 // pred_check
          %p357 = pneg %p40
        $region58: #{tpu_custom_call.1} parent=55 // pred_check_branch
          %359 = sbr.rel (%p357) target = $region60
        $region59: #{tpu_custom_call.1} parent=55 // pred_region
          %s360 = sand.u32 %s30, 1
          %s361 = sand.u32 %s30, 1
          %s362 = smul.addr %s361, 128
          %s363 = scalar_lea.vmem [#allocation3], %s362
          %s364 = smul.u32 2, %s20
          %s365 = smul.addr %s364, 8
          %s366 = scalar_lea.vmem %s0, %s365
          // Predicated region
          $region61: #{tpu_custom_call.1} parent=59 // pred_check
            _
          $region62: #{tpu_custom_call.1} parent=59 // pred_check_branch
            %368 = sbr.rel (0) target = $region64
          $region63: #{tpu_custom_call.1} parent=59 // pred_region
            // Predicated region
            $region65: #{tpu_custom_call.1} parent=63 // pred_check
              _
            $region66: #{tpu_custom_call.1} parent=63 // pred_check_branch
              %370 = sbr.rel (0) target = $region68
            $region67: #{tpu_custom_call.1} parent=63 // pred_region
              // Predicated region
              $region80: #{tpu_custom_call.1} parent=67 // pred_check
                _
              $region81: #{tpu_custom_call.1} parent=67 // pred_check_branch
                %416 = sbr.rel (0) target = $region83
              $region82: #{tpu_custom_call.1} parent=67 // pred_region
                loop: start=0, step=1, limit=1
                $region84: #{tpu_custom_call.1} parent=82 // loop_pre_header
                  _
                $region85: #{tpu_custom_call.1} parent=82 // loop_header
                  %s418 = sphi 0, %s422
                  %p419 = scmp.ge.s32.totalorder %s418, 1
                  %s423 = sphi %s366, %s366
                  %s424 = sphi %s363, %s363
                $region86: #{tpu_custom_call.1} parent=82 // loop_header_branch
                  %421 = sbr.rel (%p419) target = $region90
                $region87: #{tpu_custom_call.1} parent=82 // loop_body
                  %v425 = vld [vmem:[%s423] sm:$0xff]
                  %426 = vst [vmem:[%s424] sm:$0xff] %v425
                  %v427 = vld [vmem:[%s423 + $0x8] sm:$0xff]
                  %428 = vst [vmem:[%s424 + $0x8] sm:$0xff] %v427
                  %v429 = vld [vmem:[%s423 + $0x20] sm:$0xff]
                  %430 = vst [vmem:[%s424 + $0x10] sm:$0xff] %v429
                  %v431 = vld [vmem:[%s423 + $0x28] sm:$0xff]
                  %432 = vst [vmem:[%s424 + $0x18] sm:$0xff] %v431
                  %v433 = vld [vmem:[%s423 + $0x40] sm:$0xff]
                  %434 = vst [vmem:[%s424 + $0x20] sm:$0xff] %v433
                  %v435 = vld [vmem:[%s423 + $0x48] sm:$0xff]
                  %436 = vst [vmem:[%s424 + $0x28] sm:$0xff] %v435
                  %v437 = vld [vmem:[%s423 + $0x60] sm:$0xff]
                  %438 = vst [vmem:[%s424 + $0x30] sm:$0xff] %v437
                  %v439 = vld [vmem:[%s423 + $0x68] sm:$0xff]
                  %440 = vst [vmem:[%s424 + $0x38] sm:$0xff] %v439
                  %v441 = vld [vmem:[%s423 + $0x80] sm:$0xff]
                  %442 = vst [vmem:[%s424 + $0x40] sm:$0xff] %v441
                  %v443 = vld [vmem:[%s423 + $0x88] sm:$0xff]
                  %444 = vst [vmem:[%s424 + $0x48] sm:$0xff] %v443
                  %v445 = vld [vmem:[%s423 + $0xa0] sm:$0xff]
                  %446 = vst [vmem:[%s424 + $0x50] sm:$0xff] %v445
                  %v447 = vld [vmem:[%s423 + $0xa8] sm:$0xff]
                  %448 = vst [vmem:[%s424 + $0x58] sm:$0xff] %v447
                  %v449 = vld [vmem:[%s423 + $0xc0] sm:$0xff]
                  %450 = vst [vmem:[%s424 + $0x60] sm:$0xff] %v449
                  %v451 = vld [vmem:[%s423 + $0xc8] sm:$0xff]
                  %452 = vst [vmem:[%s424 + $0x68] sm:$0xff] %v451
                  %v453 = vld [vmem:[%s423 + $0xe0] sm:$0xff]
                  %454 = vst [vmem:[%s424 + $0x70] sm:$0xff] %v453
                  %v455 = vld [vmem:[%s423 + $0xe8] sm:$0xff]
                  %456 = vst [vmem:[%s424 + $0x78] sm:$0xff] %v455
                $region88: #{tpu_custom_call.1} parent=82 // loop_footer
                  %s422 = sadd.s32 1, %s418
                $region89: #{tpu_custom_call.1} parent=82 // loop_footer_branch
                  %417 = sbr.rel target = $region85
                $region90: #{tpu_custom_call.1} parent=82 // loop_exit
                  _
              $region83: #{tpu_custom_call.1} parent=67 // pred_fallthru
                _
              // Predicated region
              $region91: #{tpu_custom_call.1} parent=67 // pred_check
                _
              $region92: #{tpu_custom_call.1} parent=67 // pred_check_branch
                %458 = sbr.rel target = $region94
              $region93: #{tpu_custom_call.1} parent=67 // pred_region
                _
              $region94: #{tpu_custom_call.1} parent=67 // pred_fallthru
                _
            $region68: #{tpu_custom_call.1} parent=63 // pred_fallthru
              _
            // Predicated region
            $region69: #{tpu_custom_call.1} parent=63 // pred_check
              _
            $region70: #{tpu_custom_call.1} parent=63 // pred_check_branch
              %372 = sbr.rel target = $region72
            $region71: #{tpu_custom_call.1} parent=63 // pred_region
              %s374 = ssub.s32 256, 1
              loop: start=0, step=1, limit=1
              $region73: #{tpu_custom_call.1} parent=71 // loop_pre_header
                _
              $region74: #{tpu_custom_call.1} parent=71 // loop_header
                %s376 = sphi 0, %s380
                %p377 = scmp.ge.s32.totalorder %s376, 1
                %s381 = sphi %s366, %s366
                %s382 = sphi %s363, %s363
              $region75: #{tpu_custom_call.1} parent=71 // loop_header_branch
                %379 = sbr.rel (%p377) target = $region79
              $region76: #{tpu_custom_call.1} parent=71 // loop_body
                %v383 = vld [vmem:[%s381] sm:%s374]
                %384 = vst [vmem:[%s382] sm:%s374] %v383
                %v385 = vld [vmem:[%s381 + $0x8] sm:%s374]
                %386 = vst [vmem:[%s382 + $0x8] sm:%s374] %v385
                %v387 = vld [vmem:[%s381 + $0x20] sm:%s374]
                %388 = vst [vmem:[%s382 + $0x10] sm:%s374] %v387
                %v389 = vld [vmem:[%s381 + $0x28] sm:%s374]
                %390 = vst [vmem:[%s382 + $0x18] sm:%s374] %v389
                %v391 = vld [vmem:[%s381 + $0x40] sm:%s374]
                %392 = vst [vmem:[%s382 + $0x20] sm:%s374] %v391
                %v393 = vld [vmem:[%s381 + $0x48] sm:%s374]
                %394 = vst [vmem:[%s382 + $0x28] sm:%s374] %v393
                %v395 = vld [vmem:[%s381 + $0x60] sm:%s374]
                %396 = vst [vmem:[%s382 + $0x30] sm:%s374] %v395
                %v397 = vld [vmem:[%s381 + $0x68] sm:%s374]
                %398 = vst [vmem:[%s382 + $0x38] sm:%s374] %v397
                %v399 = vld [vmem:[%s381 + $0x80] sm:%s374]
                %400 = vst [vmem:[%s382 + $0x40] sm:%s374] %v399
                %v401 = vld [vmem:[%s381 + $0x88] sm:%s374]
                %402 = vst [vmem:[%s382 + $0x48] sm:%s374] %v401
                %v403 = vld [vmem:[%s381 + $0xa0] sm:%s374]
                %404 = vst [vmem:[%s382 + $0x50] sm:%s374] %v403
                %v405 = vld [vmem:[%s381 + $0xa8] sm:%s374]
                %406 = vst [vmem:[%s382 + $0x58] sm:%s374] %v405
                %v407 = vld [vmem:[%s381 + $0xc0] sm:%s374]
                %408 = vst [vmem:[%s382 + $0x60] sm:%s374] %v407
                %v409 = vld [vmem:[%s381 + $0xc8] sm:%s374]
                %410 = vst [vmem:[%s382 + $0x68] sm:%s374] %v409
                %v411 = vld [vmem:[%s381 + $0xe0] sm:%s374]
                %412 = vst [vmem:[%s382 + $0x70] sm:%s374] %v411
                %v413 = vld [vmem:[%s381 + $0xe8] sm:%s374]
                %414 = vst [vmem:[%s382 + $0x78] sm:%s374] %v413
              $region77: #{tpu_custom_call.1} parent=71 // loop_footer
                %s380 = sadd.s32 1, %s376
              $region78: #{tpu_custom_call.1} parent=71 // loop_footer_branch
                %375 = sbr.rel target = $region74
              $region79: #{tpu_custom_call.1} parent=71 // loop_exit
                _
            $region72: #{tpu_custom_call.1} parent=63 // pred_fallthru
              _
          $region64: #{tpu_custom_call.1} parent=59 // pred_fallthru
            _
          %459 = vnop
        $region60: #{tpu_custom_call.1} parent=55 // pred_fallthru
          _
        // Predicated region
        $region95: #{tpu_custom_call.1} parent=55 // pred_check
          %p460 = pneg %p66
        $region96: #{tpu_custom_call.1} parent=55 // pred_check_branch
          %462 = sbr.rel (%p460) target = $region98
        $region97: #{tpu_custom_call.1} parent=55 // pred_region
          %s463 = smul.u32 2, %s20
          %p464 = scmp.lt.s32.totalorder %s463, 3
          %s465 = scalar_select %p464, %s463, 3
          %s466 = smul.addr %s465, 8
          %s467 = scalar_lea.vmem %s1, %s466
          %s468 = smul.u32 2, %s20
        $region98: #{tpu_custom_call.1} parent=55 // pred_fallthru
          _
      $region56: #{tpu_custom_call.1} parent=5 // pred_fallthru
        _
      %p469 = scmp.le.s32.totalorder 1, %s20
      %p470 = scmp.lt.s32.totalorder %s20, 3
      %p471 = pnand %p469, %p470
      %p472 = pneg %p471
      // Predicated region
      $region99: #{tpu_custom_call.1} parent=5 // pred_check
        _
      $region100: #{tpu_custom_call.1} parent=5 // pred_check_branch
        %474 = sbr.rel (%p471) target = $region102
      $region101: #{tpu_custom_call.1} parent=5 // pred_region
        %s475 = ssub.s32 %s20, 1
        %s476 = sand.u32 %s33, 1
        %s477 = sand.u32 %s33, 1
        %s478 = smul.addr %s477, 128
        %s479 = scalar_lea.vmem [#allocation3], %s478
        // Predicated region
        $region103: #{tpu_custom_call.1} parent=101 // pred_check
          %p480 = pneg %p46
        $region104: #{tpu_custom_call.1} parent=101 // pred_check_branch
          %482 = sbr.rel (%p480) target = $region106
        $region105: #{tpu_custom_call.1} parent=101 // pred_region
          _
        $region106: #{tpu_custom_call.1} parent=101 // pred_fallthru
          _
        %s483 = sand.u32 %s33, 1
        %s484 = sand.u32 %s33, 1
        %s485 = smul.addr %s484, 128
        %s486 = scalar_lea.vmem [#allocation3], %s485
        %p487 = pneg %p46
        %p488 = pneg %p43
        %s489 = smul.u32 2, %s25
        %p490 = scmp.lt.s32.totalorder %s489, 3
        %s491 = scalar_select %p490, %s489, 3
        %s492 = smul.addr %s491, 8
        %s493 = scalar_lea.vmem %s1, %s492
        %p494 = pneg %p72
        %p495 = pneg %p69
        %p496 = pneg %p93
        %p497 = pneg %p90
        %p498 = pneg %p114
        %p499 = pneg %p111
        %p500 = pneg %p135
        %p501 = pneg %p132
        %p502 = pneg %p156
        %p503 = pneg %p153
        %p504 = pneg %p177
        %p505 = pneg %p174
        %p506 = pneg %p198
        %p507 = pneg %p195
        %p508 = pneg %p219
        %p509 = pneg %p216
        %p510 = pneg %p240
        %p511 = pneg %p237
        %p512 = pneg %p261
        %p513 = pneg %p258
        %p514 = pneg %p282
        %p515 = pneg %p279
        %p516 = pneg %p308
        %p517 = pneg %p305
        %s518 = sand.u32 %s295, 1
        %s519 = sand.u32 %s295, 1
        %s520 = smul.addr %s519, 32
        %s521 = scalar_lea.vmem [#allocation4], %s520
        %s522 = smul.u32 2, %s25
        %s523 = smul.u32 2, %s25
        %p524 = scmp.lt.s32.totalorder %s523, 3
        %s525 = scalar_select %p524, %s523, 3
        %s526 = smul.addr %s525, 8
        %s527 = scalar_lea.vmem %s1, %s526
        %s528 = smul.u32 2, %s25
        %s529 = smul.u32 2, %s25
        %v530 = vld [vmem:[%s479] sm:$0xff]
        %v531 = vld [vmem:[%s479 + $0x8] sm:$0xff]
        %v532 = vld [vmem:[%s479 + $0x10] sm:$0xff]
        %v533 = vld [vmem:[%s479 + $0x18] sm:$0xff]
        %v534 = vld [vmem:[%s479 + $0x20] sm:$0xff]
        %v535 = vld [vmem:[%s479 + $0x28] sm:$0xff]
        %v536 = vld [vmem:[%s479 + $0x30] sm:$0xff]
        %v537 = vld [vmem:[%s479 + $0x38] sm:$0xff]
        %v538 = vld [vmem:[%s479 + $0x40] sm:$0xff]
        %v539 = vld [vmem:[%s479 + $0x48] sm:$0xff]
        %v540 = vld [vmem:[%s479 + $0x50] sm:$0xff]
        %v541 = vld [vmem:[%s479 + $0x58] sm:$0xff]
        %v542 = vld [vmem:[%s479 + $0x60] sm:$0xff]
        %v543 = vld [vmem:[%s479 + $0x68] sm:$0xff]
        %v544 = vld [vmem:[%s479 + $0x70] sm:$0xff]
        %v545 = vld [vmem:[%s479 + $0x78] sm:$0xff]
        %v546 = vld [vmem:[%s527] sm:$0xff]
        %v547 = vld [vmem:[%s527 + $0x8] sm:$0xff]
        %v548 = vsub.f32 1.0, %v546
        %v549 = vsub.f32 1.0, %v547
        %v550 = vmul.f32 %v548, 1e-06
        %v551 = vmul.f32 %v549, 1e-06
        %v552 = vld [vmem:[%s2] sm:$0xff]
        %v553 = vld [vmem:[%s2 + $0x8] sm:$0xff]
        %v554 = vld [vmem:[%s3] sm:$0x1]
        %v556 = vlaneseq
        %v557 = vshrl.u32 %v556, 7
        %v558 = vsub.s32 0, %v557
        %v559 = vrot.slane %v554, %v558
        %vm561 = vcmask 130048
        %v563 = vsel %vm561, %v530, 0
        %v566 = vsel %vm561, %v531, 0
        %v569 = vsel %vm561, %v532, 0
        %v572 = vsel %vm561, %v533, 0
        %v575 = vsel %vm561, %v534, 0
        %v578 = vsel %vm561, %v535, 0
        %v581 = vsel %vm561, %v536, 0
        %v584 = vsel %vm561, %v537, 0
        %v587 = vsel %vm561, %v538, 0
        %v590 = vsel %vm561, %v539, 0
        %v593 = vsel %vm561, %v540, 0
        %v596 = vsel %vm561, %v541, 0
        %v599 = vsel %vm561, %v542, 0
        %v602 = vsel %vm561, %v543, 0
        %v605 = vsel %vm561, %v544, 0
        %v608 = vsel %vm561, %v545, 0
        %610 = vmatprep.subr.mxu0 0.0
        %611 = vmatpush1.msra.mxu0 0.0
        %612 = vmatprep.subr.mxu0 0.0
        %613 = vmatpush1.msra.mxu0 0.0
        %614 = vmatprep.subr.mxu0 0.0
        %615 = vmatpush1.msra.mxu0 0.0
        %616 = vmatprep.subr.mxu0 0.0
        %617 = vmatpush1.msra.mxu0 0.0
        %618 = vmatprep.subr.mxu0 0.0
        %619 = vmatpush1.msra.mxu0 0.0
        %620 = vmatprep.subr.mxu0 0.0
        %621 = vmatpush1.msra.mxu0 0.0
        %622 = vmatprep.subr.mxu0 0.0
        %623 = vmatpush1.msra.mxu0 0.0
        %624 = vmatprep.subr.mxu0 0.0
        %625 = vmatpush1.msra.mxu0 0.0
        %626 = vmatprep.subr.mxu0 0.0
        %627 = vmatpush1.msra.mxu0 0.0
        %628 = vmatprep.subr.mxu0 0.0
        %629 = vmatpush1.msra.mxu0 0.0
        %630 = vmatprep.subr.mxu0 0.0
        %631 = vmatpush1.msra.mxu0 0.0
        %632 = vmatprep.subr.mxu0 0.0
        %633 = vmatpush1.msra.mxu0 0.0
        %634 = vmatprep.subr.mxu0 0.0
        %635 = vmatpush1.msra.mxu0 0.0
        %636 = vmatprep.subr.mxu0 0.0
        %637 = vmatpush1.msra.mxu0 0.0
        %638 = vmatprep.subr.mxu0 0.0
        %639 = vmatpush1.msra.mxu0 %v553
        %640 = vmatprep.subr.mxu0 0.0
        %641 = vmatpush1.msra.mxu0 %v552
        %642 = vmatprep.subr.mxu0 0.0
        %643 = vmatpush2.msra.mxu0 0.0
        %644 = vmatprep.subr.mxu0 0.0
        %645 = vmatpush2.msra.mxu0 0.0
        %646 = vmatprep.subr.mxu0 0.0
        %647 = vmatpush2.msra.mxu0 0.0
        %648 = vmatprep.subr.mxu0 0.0
        %649 = vmatpush2.msra.mxu0 0.0
        %650 = vmatprep.subr.mxu0 0.0
        %651 = vmatpush2.msra.mxu0 0.0
        %652 = vmatprep.subr.mxu0 0.0
        %653 = vmatpush2.msra.mxu0 0.0
        %654 = vmatprep.subr.mxu0 0.0
        %655 = vmatpush2.msra.mxu0 0.0
        %656 = vmatprep.subr.mxu0 0.0
        %657 = vmatpush2.msra.mxu0 0.0
        %658 = vmatprep.subr.mxu0 0.0
        %659 = vmatpush2.msra.mxu0 0.0
        %660 = vmatprep.subr.mxu0 0.0
        %661 = vmatpush2.msra.mxu0 0.0
        %662 = vmatprep.subr.mxu0 0.0
        %663 = vmatpush2.msra.mxu0 0.0
        %664 = vmatprep.subr.mxu0 0.0
        %665 = vmatpush2.msra.mxu0 0.0
        %666 = vmatprep.subr.mxu0 0.0
        %667 = vmatpush2.msra.mxu0 0.0
        %668 = vmatprep.subr.mxu0 0.0
        %669 = vmatpush2.msra.mxu0 0.0
        %670 = vmatprep.subr.mxu0 0.0
        %671 = vmatpush2.msra.mxu0 0.0
        %672 = vmatprep.subr.mxu0 0.0
        %673 = vmatpush2.msra.mxu0 0.0
        %674 = vmatprep.mubr.f32.mxu0 0.0
        %675 = vmatmul.mubr.f32.gmra.mxu0 %v563
        %v676 = vpop.f32.mrf.mxu0
        %v677 = vadd.f32 %v559, %v676
        %v678 = vpop.f32.mrf.mxu0
        %679 = vmatprep.mubr.f32.mxu0 0.0
        %680 = vmatmul.mubr.f32.gmra.mxu0 %v566
        %v681 = vpop.f32.mrf.mxu0
        %v682 = vadd.f32 %v559, %v681
        %v683 = vpop.f32.mrf.mxu0
        %684 = vmatprep.mubr.f32.mxu0 0.0
        %685 = vmatmul.mubr.f32.gmra.mxu0 %v569
        %v686 = vpop.f32.mrf.mxu0
        %v687 = vadd.f32 %v559, %v686
        %v688 = vpop.f32.mrf.mxu0
        %689 = vmatprep.mubr.f32.mxu0 0.0
        %690 = vmatmul.mubr.f32.gmra.mxu0 %v572
        %v691 = vpop.f32.mrf.mxu0
        %v692 = vadd.f32 %v559, %v691
        %v693 = vpop.f32.mrf.mxu0
        %694 = vmatprep.mubr.f32.mxu0 0.0
        %695 = vmatmul.mubr.f32.gmra.mxu0 %v575
        %v696 = vpop.f32.mrf.mxu0
        %v697 = vadd.f32 %v559, %v696
        %v698 = vpop.f32.mrf.mxu0
        %699 = vmatprep.mubr.f32.mxu0 0.0
        %700 = vmatmul.mubr.f32.gmra.mxu0 %v578
        %v701 = vpop.f32.mrf.mxu0
        %v702 = vadd.f32 %v559, %v701
        %v703 = vpop.f32.mrf.mxu0
        %704 = vmatprep.mubr.f32.mxu0 0.0
        %705 = vmatmul.mubr.f32.gmra.mxu0 %v581
        %v706 = vpop.f32.mrf.mxu0
        %v707 = vadd.f32 %v559, %v706
        %v708 = vpop.f32.mrf.mxu0
        %709 = vmatprep.mubr.f32.mxu0 0.0
        %710 = vmatmul.mubr.f32.gmra.mxu0 %v584
        %v711 = vpop.f32.mrf.mxu0
        %v712 = vadd.f32 %v559, %v711
        %v713 = vpop.f32.mrf.mxu0
        %714 = vmatprep.mubr.f32.mxu0 0.0
        %715 = vmatmul.mubr.f32.gmra.mxu0 %v587
        %v716 = vpop.f32.mrf.mxu0
        %v717 = vadd.f32 %v559, %v716
        %v718 = vpop.f32.mrf.mxu0
        %719 = vmatprep.mubr.f32.mxu0 0.0
        %720 = vmatmul.mubr.f32.gmra.mxu0 %v590
        %v721 = vpop.f32.mrf.mxu0
        %v722 = vadd.f32 %v559, %v721
        %v723 = vpop.f32.mrf.mxu0
        %724 = vmatprep.mubr.f32.mxu0 0.0
        %725 = vmatmul.mubr.f32.gmra.mxu0 %v593
        %v726 = vpop.f32.mrf.mxu0
        %v727 = vadd.f32 %v559, %v726
        %v728 = vpop.f32.mrf.mxu0
        %729 = vmatprep.mubr.f32.mxu0 0.0
        %730 = vmatmul.mubr.f32.gmra.mxu0 %v596
        %v731 = vpop.f32.mrf.mxu0
        %v732 = vadd.f32 %v559, %v731
        %v733 = vpop.f32.mrf.mxu0
        %734 = vmatprep.mubr.f32.mxu0 0.0
        %735 = vmatmul.mubr.f32.gmra.mxu0 %v599
        %v736 = vpop.f32.mrf.mxu0
        %v737 = vadd.f32 %v559, %v736
        %v738 = vpop.f32.mrf.mxu0
        %739 = vmatprep.mubr.f32.mxu0 0.0
        %740 = vmatmul.mubr.f32.gmra.mxu0 %v602
        %v741 = vpop.f32.mrf.mxu0
        %v742 = vadd.f32 %v559, %v741
        %v743 = vpop.f32.mrf.mxu0
        %744 = vmatprep.mubr.f32.mxu0 0.0
        %745 = vmatmul.mubr.f32.gmra.mxu0 %v605
        %v746 = vpop.f32.mrf.mxu0
        %v747 = vadd.f32 %v559, %v746
        %v748 = vpop.f32.mrf.mxu0
        %749 = vmatprep.mubr.f32.mxu0 0.0
        %750 = vmatmul.mubr.f32.gmra.mxu0 %v608
        %v751 = vpop.f32.mrf.mxu0
        %v752 = vadd.f32 %v559, %v751
        %v753 = vpop.f32.mrf.mxu0
        %754 = vdwg.mxu0
        %v755 = vld [vmem:[%s6] sm:$0x1]
        %v756 = vld [vmem:[%s4] sm:$0xff]
        %v757 = vld [vmem:[%s4 + $0x8] sm:$0xff]
        %v758 = vld [vmem:[%s4 + $0x10] sm:$0xff]
        %v759 = vld [vmem:[%s4 + $0x18] sm:$0xff]
        %v760 = vld [vmem:[%s5] sm:$0x1]
        %v762 = vlaneseq
        %v763 = vshrl.u32 %v762, 7
        %v764 = vsub.s32 0, %v763
        %v765 = vrot.slane %v760, %v764
        %vm767 = vcmask 261120
        %v769 = vsel %vm767, 0.0, 0
        %771 = vmatprep.subr.mxu0 0.0
        %772 = vmatpush1.msra.mxu0 0.0
        %773 = vmatprep.subr.mxu0 0.0
        %774 = vmatpush1.msra.mxu0 0.0
        %775 = vmatprep.subr.mxu0 0.0
        %776 = vmatpush1.msra.mxu0 0.0
        %777 = vmatprep.subr.mxu0 0.0
        %778 = vmatpush1.msra.mxu0 0.0
        %779 = vmatprep.subr.mxu0 0.0
        %780 = vmatpush1.msra.mxu0 0.0
        %781 = vmatprep.subr.mxu0 0.0
        %782 = vmatpush1.msra.mxu0 0.0
        %783 = vmatprep.subr.mxu0 0.0
        %784 = vmatpush1.msra.mxu0 0.0
        %785 = vmatprep.subr.mxu0 0.0
        %786 = vmatpush1.msra.mxu0 0.0
        %787 = vmatprep.subr.mxu0 0.0
        %788 = vmatpush1.msra.mxu0 0.0
        %789 = vmatprep.subr.mxu0 0.0
        %790 = vmatpush1.msra.mxu0 0.0
        %791 = vmatprep.subr.mxu0 0.0
        %792 = vmatpush1.msra.mxu0 0.0
        %793 = vmatprep.subr.mxu0 0.0
        %794 = vmatpush1.msra.mxu0 0.0
        %795 = vmatprep.subr.mxu0 0.0
        %796 = vmatpush1.msra.mxu0 %v759
        %797 = vmatprep.subr.mxu0 0.0
        %798 = vmatpush1.msra.mxu0 %v758
        %799 = vmatprep.subr.mxu0 0.0
        %800 = vmatpush1.msra.mxu0 %v757
        %801 = vmatprep.subr.mxu0 0.0
        %802 = vmatpush1.msra.mxu0 %v756
        %803 = vmatprep.subr.mxu0 0.0
        %804 = vmatpush2.msra.mxu0 0.0
        %805 = vmatprep.subr.mxu0 0.0
        %806 = vmatpush2.msra.mxu0 0.0
        %807 = vmatprep.subr.mxu0 0.0
        %808 = vmatpush2.msra.mxu0 0.0
        %809 = vmatprep.subr.mxu0 0.0
        %810 = vmatpush2.msra.mxu0 0.0
        %811 = vmatprep.subr.mxu0 0.0
        %812 = vmatpush2.msra.mxu0 0.0
        %813 = vmatprep.subr.mxu0 0.0
        %814 = vmatpush2.msra.mxu0 0.0
        %815 = vmatprep.subr.mxu0 0.0
        %816 = vmatpush2.msra.mxu0 0.0
        %817 = vmatprep.subr.mxu0 0.0
        %818 = vmatpush2.msra.mxu0 0.0
        %819 = vmatprep.subr.mxu0 0.0
        %820 = vmatpush2.msra.mxu0 0.0
        %821 = vmatprep.subr.mxu0 0.0
        %822 = vmatpush2.msra.mxu0 0.0
        %823 = vmatprep.subr.mxu0 0.0
        %824 = vmatpush2.msra.mxu0 0.0
        %825 = vmatprep.subr.mxu0 0.0
        %826 = vmatpush2.msra.mxu0 0.0
        %827 = vmatprep.subr.mxu0 0.0
        %828 = vmatpush2.msra.mxu0 0.0
        %829 = vmatprep.subr.mxu0 0.0
        %830 = vmatpush2.msra.mxu0 0.0
        %831 = vmatprep.subr.mxu0 0.0
        %832 = vmatpush2.msra.mxu0 0.0
        %833 = vmatprep.subr.mxu0 0.0
        %834 = vmatpush2.msra.mxu0 0.0
        %835 = vmatprep.mubr.f32.mxu0 0.0
        %836 = vmatmul.mubr.f32.gmra.mxu0 %v769
        %v837 = vpop.f32.mrf.mxu0
        %v838 = vadd.f32 %v765, %v837
        %v839 = vpop.f32.mrf.mxu0
        %840 = vmatprep.mubr.f32.mxu0 0.0
        %841 = vmatmul.mubr.f32.gmra.mxu0 %v769
        %v842 = vpop.f32.mrf.mxu0
        %v843 = vadd.f32 %v765, %v842
        %v844 = vpop.f32.mrf.mxu0
        %845 = vdwg.mxu0
        %v846 = vadd.f32 %v677, %v838
        %v847 = vadd.f32 %v682, %v843
        %v848 = vadd.f32 %v687, %v838
        %v849 = vadd.f32 %v692, %v843
        %v850 = vadd.f32 %v697, %v838
        %v851 = vadd.f32 %v702, %v843
        %v852 = vadd.f32 %v707, %v838
        %v853 = vadd.f32 %v712, %v843
        %v854 = vadd.f32 %v717, %v838
        %v855 = vadd.f32 %v722, %v843
        %v856 = vadd.f32 %v727, %v838
        %v857 = vadd.f32 %v732, %v843
        %v858 = vadd.f32 %v737, %v838
        %v859 = vadd.f32 %v742, %v843
        %v860 = vadd.f32 %v747, %v838
        %v861 = vadd.f32 %v752, %v843
        %v862 = vtanh.pop %v846
        %v863 = vtanh.pop %v847
        %v864 = vtanh.pop %v848
        %v865 = vtanh.pop %v849
        %v866 = vtanh.pop %v850
        %v867 = vtanh.pop %v851
        %v868 = vtanh.pop %v852
        %v869 = vtanh.pop %v853
        %v870 = vtanh.pop %v854
        %v871 = vtanh.pop %v855
        %v872 = vtanh.pop %v856
        %v873 = vtanh.pop %v857
        %v874 = vtanh.pop %v858
        %v875 = vtanh.pop %v859
        %v876 = vtanh.pop %v860
        %v877 = vtanh.pop %v861
        %v879 = vlaneseq
        %v880 = vshrl.u32 %v879, 7
        %v881 = vsub.s32 0, %v880
        %v882 = vrot.slane %v755, %v881
        %v884 = vmul.f32 %v862, %v882
        %v885 = vmul.f32 %v863, %v882
        %v886 = vmul.f32 %v864, %v882
        %v887 = vmul.f32 %v865, %v882
        %v888 = vmul.f32 %v866, %v882
        %v889 = vmul.f32 %v867, %v882
        %v890 = vmul.f32 %v868, %v882
        %v891 = vmul.f32 %v869, %v882
        %v892 = vmul.f32 %v870, %v882
        %v893 = vmul.f32 %v871, %v882
        %v894 = vmul.f32 %v872, %v882
        %v895 = vmul.f32 %v873, %v882
        %v896 = vmul.f32 %v874, %v882
        %v897 = vmul.f32 %v875, %v882
        %v898 = vmul.f32 %v876, %v882
        %v899 = vmul.f32 %v877, %v882
        %v900 = vsel %vm767, %v884, 0.0
        %901 = vadd.xlane.f32.xlu0 %v900
        %v902 = vpop.xlane.xlu0 %901
        %v903 = vsel %vm767, %v885, 0.0
        %904 = vadd.xlane.f32.xlu0 %v903
        %v905 = vpop.xlane.xlu0 %904
        %v906 = vsel %vm767, %v886, 0.0
        %907 = vadd.xlane.f32.xlu0 %v906
        %v908 = vpop.xlane.xlu0 %907
        %v909 = vsel %vm767, %v887, 0.0
        %910 = vadd.xlane.f32.xlu0 %v909
        %v911 = vpop.xlane.xlu0 %910
        %v912 = vsel %vm767, %v888, 0.0
        %913 = vadd.xlane.f32.xlu0 %v912
        %v914 = vpop.xlane.xlu0 %913
        %v915 = vsel %vm767, %v889, 0.0
        %916 = vadd.xlane.f32.xlu0 %v915
        %v917 = vpop.xlane.xlu0 %916
        %v918 = vsel %vm767, %v890, 0.0
        %919 = vadd.xlane.f32.xlu0 %v918
        %v920 = vpop.xlane.xlu0 %919
        %v921 = vsel %vm767, %v891, 0.0
        %922 = vadd.xlane.f32.xlu0 %v921
        %v923 = vpop.xlane.xlu0 %922
        %v924 = vsel %vm767, %v892, 0.0
        %925 = vadd.xlane.f32.xlu0 %v924
        %v926 = vpop.xlane.xlu0 %925
        %v927 = vsel %vm767, %v893, 0.0
        %928 = vadd.xlane.f32.xlu0 %v927
        %v929 = vpop.xlane.xlu0 %928
        %v930 = vsel %vm767, %v894, 0.0
        %931 = vadd.xlane.f32.xlu0 %v930
        %v932 = vpop.xlane.xlu0 %931
        %v933 = vsel %vm767, %v895, 0.0
        %934 = vadd.xlane.f32.xlu0 %v933
        %v935 = vpop.xlane.xlu0 %934
        %v936 = vsel %vm767, %v896, 0.0
        %937 = vadd.xlane.f32.xlu0 %v936
        %v938 = vpop.xlane.xlu0 %937
        %v939 = vsel %vm767, %v897, 0.0
        %940 = vadd.xlane.f32.xlu0 %v939
        %v941 = vpop.xlane.xlu0 %940
        %v942 = vsel %vm767, %v898, 0.0
        %943 = vadd.xlane.f32.xlu0 %v942
        %v944 = vpop.xlane.xlu0 %943
        %v945 = vsel %vm767, %v899, 0.0
        %946 = vadd.xlane.f32.xlu0 %v945
        %v947 = vpop.xlane.xlu0 %946
        %v948 = vld [vmem:[#allocation2] sm:$0x1]
        %v950 = vlaneseq
        %v951 = vshrl.u32 %v950, 7
        %v952 = vsub.s32 0, %v951
        %v953 = vrot.slane %v948, %v952
        %954 = vset.pattern.permute.xlu0 0
        %955 = vperm.xlu0 %954, %v953
        %v956 = vpop.permute.xlu0 %955
        %v958 = vadd.f32 %v902, %v956
        %v959 = vadd.f32 %v905, %v956
        %v960 = vadd.f32 %v908, %v956
        %v961 = vadd.f32 %v911, %v956
        %v962 = vadd.f32 %v914, %v956
        %v963 = vadd.f32 %v917, %v956
        %v964 = vadd.f32 %v920, %v956
        %v965 = vadd.f32 %v923, %v956
        %v966 = vadd.f32 %v926, %v956
        %v967 = vadd.f32 %v929, %v956
        %v968 = vadd.f32 %v932, %v956
        %v969 = vadd.f32 %v935, %v956
        %v970 = vadd.f32 %v938, %v956
        %v971 = vadd.f32 %v941, %v956
        %v972 = vadd.f32 %v944, %v956
        %v973 = vadd.f32 %v947, %v956
        %v990 = vlaneseq
        %v991 = vand.u32 %v990, 127
        %v992 = vlaneseq
        %v993 = vshrl.u32 %v992, 7
        %v994 = vsub.s32 %v991, %v993
        %v995 = vrot.slane %v958, %v994
        %v996 = vadd.s32 %v991, 4294967288
        %v997 = vlaneseq
        %v998 = vshrl.u32 %v997, 7
        %v999 = vsub.s32 %v996, %v998
        %v1000 = vrot.slane %v959, %v999
        %vm1001 = vcmask 130112
        %v1002 = vsel %vm1001, %v1000, %v995
        %v1003 = vlaneseq
        %v1004 = vshrl.u32 %v1003, 7
        %v1005 = vsub.s32 %v991, %v1004
        %v1006 = vrot.slane %v960, %v1005
        %v1007 = vlaneseq
        %v1008 = vshrl.u32 %v1007, 7
        %v1009 = vsub.s32 %v996, %v1008
        %v1010 = vrot.slane %v961, %v1009
        %v1011 = vsel %vm1001, %v1010, %v1006
        %v1012 = vlaneseq
        %v1013 = vshrl.u32 %v1012, 7
        %v1014 = vsub.s32 %v991, %v1013
        %v1015 = vrot.slane %v962, %v1014
        %v1016 = vlaneseq
        %v1017 = vshrl.u32 %v1016, 7
        %v1018 = vsub.s32 %v996, %v1017
        %v1019 = vrot.slane %v963, %v1018
        %v1020 = vsel %vm1001, %v1019, %v1015
        %v1021 = vlaneseq
        %v1022 = vshrl.u32 %v1021, 7
        %v1023 = vsub.s32 %v991, %v1022
        %v1024 = vrot.slane %v964, %v1023
        %v1025 = vlaneseq
        %v1026 = vshrl.u32 %v1025, 7
        %v1027 = vsub.s32 %v996, %v1026
        %v1028 = vrot.slane %v965, %v1027
        %v1029 = vsel %vm1001, %v1028, %v1024
        %v1030 = vlaneseq
        %v1031 = vshrl.u32 %v1030, 7
        %v1032 = vsub.s32 %v991, %v1031
        %v1033 = vrot.slane %v966, %v1032
        %v1034 = vlaneseq
        %v1035 = vshrl.u32 %v1034, 7
        %v1036 = vsub.s32 %v996, %v1035
        %v1037 = vrot.slane %v967, %v1036
        %v1038 = vsel %vm1001, %v1037, %v1033
        %v1039 = vlaneseq
        %v1040 = vshrl.u32 %v1039, 7
        %v1041 = vsub.s32 %v991, %v1040
        %v1042 = vrot.slane %v968, %v1041
        %v1043 = vlaneseq
        %v1044 = vshrl.u32 %v1043, 7
        %v1045 = vsub.s32 %v996, %v1044
        %v1046 = vrot.slane %v969, %v1045
        %v1047 = vsel %vm1001, %v1046, %v1042
        %v1048 = vlaneseq
        %v1049 = vshrl.u32 %v1048, 7
        %v1050 = vsub.s32 %v991, %v1049
        %v1051 = vrot.slane %v970, %v1050
        %v1052 = vlaneseq
        %v1053 = vshrl.u32 %v1052, 7
        %v1054 = vsub.s32 %v996, %v1053
        %v1055 = vrot.slane %v971, %v1054
        %v1056 = vsel %vm1001, %v1055, %v1051
        %v1057 = vlaneseq
        %v1058 = vshrl.u32 %v1057, 7
        %v1059 = vsub.s32 %v991, %v1058
        %v1060 = vrot.slane %v972, %v1059
        %v1061 = vlaneseq
        %v1062 = vshrl.u32 %v1061, 7
        %v1063 = vsub.s32 %v996, %v1062
        %v1064 = vrot.slane %v973, %v1063
        %v1065 = vsel %vm1001, %v1064, %v1060
        %vm1066 = vcmask 1041409
        %v1067 = vsel %vm1066, %v1011, %v1002
        %vm1068 = vcmask 1042434
        %v1069 = vsel %vm1068, %v1020, %v1067
        %vm1070 = vcmask 1043459
        %v1071 = vsel %vm1070, %v1029, %v1069
        %vm1072 = vcmask 1044484
        %v1073 = vsel %vm1072, %v1038, %v1071
        %vm1074 = vcmask 1045509
        %v1075 = vsel %vm1074, %v1047, %v1073
        %vm1076 = vcmask 1046534
        %v1077 = vsel %vm1076, %v1056, %v1075
        %vm1078 = vcmask 1047559
        %v1079 = vsel %vm1078, %v1065, %v1077
        %1081 = vxpose.xlu0.b32.start [1/16] %v1079, 128
        %1082 = vxpose.xlu0.b32.cont [2/16] 0.0, 128
        %1083 = vxpose.xlu0.b32.cont [3/16] 0.0, 128
        %1084 = vxpose.xlu0.b32.cont [4/16] 0.0, 128
        %1085 = vxpose.xlu0.b32.cont [5/16] 0.0, 128
        %1086 = vxpose.xlu0.b32.cont [6/16] 0.0, 128
        %1087 = vxpose.xlu0.b32.cont [7/16] 0.0, 128
        %1088 = vxpose.xlu0.b32.cont [8/16] 0.0, 128
        %1089 = vxpose.xlu0.b32.cont [9/16] 0.0, 128
        %1090 = vxpose.xlu0.b32.cont [10/16] 0.0, 128
        %1091 = vxpose.xlu0.b32.cont [11/16] 0.0, 128
        %1092 = vxpose.xlu0.b32.cont [12/16] 0.0, 128
        %1093 = vxpose.xlu0.b32.cont [13/16] 0.0, 128
        %1094 = vxpose.xlu0.b32.cont [14/16] 0.0, 128
        %1095 = vxpose.xlu0.b32.cont [15/16] 0.0, 128
        %1096 = vxpose.xlu0.b32.end [16/16] 0.0, 128
        %v1097 = vpop.trf.xlu0
        %v1098 = vpop.trf.xlu0
        %v1099 = vpop.trf.xlu0
        %v1100 = vpop.trf.xlu0
        %v1101 = vpop.trf.xlu0
        %v1102 = vpop.trf.xlu0
        %v1103 = vpop.trf.xlu0
        %v1104 = vpop.trf.xlu0
        %v1105 = vpop.trf.xlu0
        %v1106 = vpop.trf.xlu0
        %v1107 = vpop.trf.xlu0
        %v1108 = vpop.trf.xlu0
        %v1109 = vpop.trf.xlu0
        %v1110 = vpop.trf.xlu0
        %v1111 = vpop.trf.xlu0
        %v1112 = vpop.trf.xlu0
        %v1113 = vmul.f32 %v1097, %v546
        %v1114 = vmul.f32 %v1098, %v547
        %vm1115 = vcmask 64512
        %v1116 = vsel %vm1115, %v1113, -inf
        %1117 = vmax.xlane.f32.xlu0 %v1116
        %v1118 = vpop.xlane.xlu0 %1117
        %v1119 = vsel %vm1115, %v1114, -inf
        %1120 = vmax.xlane.f32.xlu0 %v1119
        %v1121 = vpop.xlane.xlu0 %1120
        %v1122 = vsub.f32 %v1113, %v1118
        %v1123 = vsub.f32 %v1114, %v1121
        %v1124 = vmul.f32 %v1122, 1.442695
        %v1125 = vpow.pop %v1124
        %v1126 = vmul.f32 %v1123, 1.442695
        %v1127 = vpow.pop %v1126
        %v1128 = vmul.f32 %v1125, %v546
        %v1129 = vmul.f32 %v1127, %v547
        %v1130 = vsel %vm1115, %v1128, 0.0
        %1131 = vadd.xlane.f32.xlu0 %v1130
        %v1132 = vpop.xlane.xlu0 %1131
        %v1133 = vsel %vm1115, %v1129, 0.0
        %1134 = vadd.xlane.f32.xlu0 %v1133
        %v1135 = vpop.xlane.xlu0 %1134
        %v1136 = vadd.f32 %v1132, 1e-06
        %v1137 = vadd.f32 %v1135, 1e-06
        %v1138 = vrcp.pop %v1136
        %v1139 = vrcp.pop %v1137
        %v1140 = vmul.f32 %v1128, %v1138
        %v1141 = vmul.f32 %v1129, %v1139
        %1142 = vxpose.xlu0.b32.start [1/16] %v1140, 128
        %1143 = vxpose.xlu0.b32.cont [2/16] %v1141, 128
        %1144 = vxpose.xlu0.b32.cont [3/16] 0.0, 128
        %1145 = vxpose.xlu0.b32.cont [4/16] 0.0, 128
        %1146 = vxpose.xlu0.b32.cont [5/16] 0.0, 128
        %1147 = vxpose.xlu0.b32.cont [6/16] 0.0, 128
        %1148 = vxpose.xlu0.b32.cont [7/16] 0.0, 128
        %1149 = vxpose.xlu0.b32.cont [8/16] 0.0, 128
        %1150 = vxpose.xlu0.b32.cont [9/16] 0.0, 128
        %1151 = vxpose.xlu0.b32.cont [10/16] 0.0, 128
        %1152 = vxpose.xlu0.b32.cont [11/16] 0.0, 128
        %1153 = vxpose.xlu0.b32.cont [12/16] 0.0, 128
        %1154 = vxpose.xlu0.b32.cont [13/16] 0.0, 128
        %1155 = vxpose.xlu0.b32.cont [14/16] 0.0, 128
        %1156 = vxpose.xlu0.b32.cont [15/16] 0.0, 128
        %1157 = vxpose.xlu0.b32.end [16/16] 0.0, 128
        %v1158 = vpop.trf.xlu0
        %v1159 = vpop.trf.xlu0
        %v1160 = vpop.trf.xlu0
        %v1161 = vpop.trf.xlu0
        %v1162 = vpop.trf.xlu0
        %v1163 = vpop.trf.xlu0
        %v1164 = vpop.trf.xlu0
        %v1165 = vpop.trf.xlu0
        %v1166 = vpop.trf.xlu0
        %v1167 = vpop.trf.xlu0
        %v1168 = vpop.trf.xlu0
        %v1169 = vpop.trf.xlu0
        %v1170 = vpop.trf.xlu0
        %v1171 = vpop.trf.xlu0
        %v1172 = vpop.trf.xlu0
        %v1173 = vpop.trf.xlu0
        %v1174 = vlaneseq
        %v1175 = vshrl.u32 %v1174, 7
        %v1176 = vsub.s32 0, %v1175
        %v1177 = vrot.slane %v1158, %v1176
        %1179 = vbcast.lane.b32.xlu0 %v1177, 256
        %v1180 = vpop.permute.xlu0 %1179
        %s1182 = sor.u32 256, 8
        %1183 = vbcast.lane.b32.xlu0 %v1177, %s1182
        %v1184 = vpop.permute.xlu0 %1183
        %v1185 = vlaneseq
        %v1186 = vshrl.u32 %v1185, 7
        %v1187 = vsub.s32 1, %v1186
        %v1188 = vrot.slane %v1158, %v1187
        %1190 = vbcast.lane.b32.xlu0 %v1188, 256
        %v1191 = vpop.permute.xlu0 %1190
        %s1193 = sor.u32 256, 8
        %1194 = vbcast.lane.b32.xlu0 %v1188, %s1193
        %v1195 = vpop.permute.xlu0 %1194
        %v1196 = vlaneseq
        %v1197 = vshrl.u32 %v1196, 7
        %v1198 = vsub.s32 2, %v1197
        %v1199 = vrot.slane %v1158, %v1198
        %1201 = vbcast.lane.b32.xlu0 %v1199, 256
        %v1202 = vpop.permute.xlu0 %1201
        %s1204 = sor.u32 256, 8
        %1205 = vbcast.lane.b32.xlu0 %v1199, %s1204
        %v1206 = vpop.permute.xlu0 %1205
        %v1207 = vlaneseq
        %v1208 = vshrl.u32 %v1207, 7
        %v1209 = vsub.s32 3, %v1208
        %v1210 = vrot.slane %v1158, %v1209
        %1212 = vbcast.lane.b32.xlu0 %v1210, 256
        %v1213 = vpop.permute.xlu0 %1212
        %s1215 = sor.u32 256, 8
        %1216 = vbcast.lane.b32.xlu0 %v1210, %s1215
        %v1217 = vpop.permute.xlu0 %1216
        %v1218 = vlaneseq
        %v1219 = vshrl.u32 %v1218, 7
        %v1220 = vsub.s32 4, %v1219
        %v1221 = vrot.slane %v1158, %v1220
        %1223 = vbcast.lane.b32.xlu0 %v1221, 256
        %v1224 = vpop.permute.xlu0 %1223
        %s1226 = sor.u32 256, 8
        %1227 = vbcast.lane.b32.xlu0 %v1221, %s1226
        %v1228 = vpop.permute.xlu0 %1227
        %v1229 = vlaneseq
        %v1230 = vshrl.u32 %v1229, 7
        %v1231 = vsub.s32 5, %v1230
        %v1232 = vrot.slane %v1158, %v1231
        %1234 = vbcast.lane.b32.xlu0 %v1232, 256
        %v1235 = vpop.permute.xlu0 %1234
        %s1237 = sor.u32 256, 8
        %1238 = vbcast.lane.b32.xlu0 %v1232, %s1237
        %v1239 = vpop.permute.xlu0 %1238
        %v1240 = vlaneseq
        %v1241 = vshrl.u32 %v1240, 7
        %v1242 = vsub.s32 6, %v1241
        %v1243 = vrot.slane %v1158, %v1242
        %1245 = vbcast.lane.b32.xlu0 %v1243, 256
        %v1246 = vpop.permute.xlu0 %1245
        %s1248 = sor.u32 256, 8
        %1249 = vbcast.lane.b32.xlu0 %v1243, %s1248
        %v1250 = vpop.permute.xlu0 %1249
        %v1251 = vlaneseq
        %v1252 = vshrl.u32 %v1251, 7
        %v1253 = vsub.s32 7, %v1252
        %v1254 = vrot.slane %v1158, %v1253
        %1256 = vbcast.lane.b32.xlu0 %v1254, 256
        %v1257 = vpop.permute.xlu0 %1256
        %s1259 = sor.u32 256, 8
        %1260 = vbcast.lane.b32.xlu0 %v1254, %s1259
        %v1261 = vpop.permute.xlu0 %1260
        %v1262 = vmul.f32 %v1180, %v530
        %v1263 = vmul.f32 %v1184, %v531
        %v1264 = vmul.f32 %v1191, %v532
        %v1265 = vmul.f32 %v1195, %v533
        %v1266 = vmul.f32 %v1202, %v534
        %v1267 = vmul.f32 %v1206, %v535
        %v1268 = vmul.f32 %v1213, %v536
        %v1269 = vmul.f32 %v1217, %v537
        %v1270 = vmul.f32 %v1224, %v538
        %v1271 = vmul.f32 %v1228, %v539
        %v1272 = vmul.f32 %v1235, %v540
        %v1273 = vmul.f32 %v1239, %v541
        %v1274 = vmul.f32 %v1246, %v542
        %v1275 = vmul.f32 %v1250, %v543
        %v1276 = vmul.f32 %v1257, %v544
        %v1277 = vmul.f32 %v1261, %v545
        %v1278 = vsel %vm561, %v1262, 0.0
        %v1279 = vsel %vm561, %v1264, 0.0
        %v1280 = vadd.f32 %v1278, %v1279
        %v1281 = vsel %vm561, %v1266, 0.0
        %v1282 = vadd.f32 %v1280, %v1281
        %v1283 = vsel %vm561, %v1268, 0.0
        %v1284 = vadd.f32 %v1282, %v1283
        %v1285 = vsel %vm561, %v1270, 0.0
        %v1286 = vadd.f32 %v1284, %v1285
        %v1287 = vsel %vm561, %v1272, 0.0
        %v1288 = vadd.f32 %v1286, %v1287
        %v1289 = vsel %vm561, %v1274, 0.0
        %v1290 = vadd.f32 %v1288, %v1289
        %v1291 = vsel %vm561, %v1276, 0.0
        %v1292 = vadd.f32 %v1290, %v1291
        %v1293 = vsel %vm561, %v1263, 0.0
        %v1294 = vsel %vm561, %v1265, 0.0
        %v1295 = vadd.f32 %v1293, %v1294
        %v1296 = vsel %vm561, %v1267, 0.0
        %v1297 = vadd.f32 %v1295, %v1296
        %v1298 = vsel %vm561, %v1269, 0.0
        %v1299 = vadd.f32 %v1297, %v1298
        %v1300 = vsel %vm561, %v1271, 0.0
        %v1301 = vadd.f32 %v1299, %v1300
        %v1302 = vsel %vm561, %v1273, 0.0
        %v1303 = vadd.f32 %v1301, %v1302
        %v1304 = vsel %vm561, %v1275, 0.0
        %v1305 = vadd.f32 %v1303, %v1304
        %v1306 = vsel %vm561, %v1277, 0.0
        %v1307 = vadd.f32 %v1305, %v1306
        %v1308 = vld [vmem:[%s8] sm:$0xff]
        %v1309 = vld [vmem:[%s8 + $0x8] sm:$0xff]
        %v1310 = vld [vmem:[%s9] sm:$0x1]
        %v1312 = vlaneseq
        %v1313 = vshrl.u32 %v1312, 7
        %v1314 = vsub.s32 0, %v1313
        %v1315 = vrot.slane %v1310, %v1314
        %v1318 = vsel %vm561, %v1292, 0
        %v1321 = vsel %vm561, %v1307, 0
        %1323 = vmatprep.subr.mxu0 0.0
        %1324 = vmatpush1.msra.mxu0 0.0
        %1325 = vmatprep.subr.mxu0 0.0
        %1326 = vmatpush1.msra.mxu0 0.0
        %1327 = vmatprep.subr.mxu0 0.0
        %1328 = vmatpush1.msra.mxu0 0.0
        %1329 = vmatprep.subr.mxu0 0.0
        %1330 = vmatpush1.msra.mxu0 0.0
        %1331 = vmatprep.subr.mxu0 0.0
        %1332 = vmatpush1.msra.mxu0 0.0
        %1333 = vmatprep.subr.mxu0 0.0
        %1334 = vmatpush1.msra.mxu0 0.0
        %1335 = vmatprep.subr.mxu0 0.0
        %1336 = vmatpush1.msra.mxu0 0.0
        %1337 = vmatprep.subr.mxu0 0.0
        %1338 = vmatpush1.msra.mxu0 0.0
        %1339 = vmatprep.subr.mxu0 0.0
        %1340 = vmatpush1.msra.mxu0 0.0
        %1341 = vmatprep.subr.mxu0 0.0
        %1342 = vmatpush1.msra.mxu0 0.0
        %1343 = vmatprep.subr.mxu0 0.0
        %1344 = vmatpush1.msra.mxu0 0.0
        %1345 = vmatprep.subr.mxu0 0.0
        %1346 = vmatpush1.msra.mxu0 0.0
        %1347 = vmatprep.subr.mxu0 0.0
        %1348 = vmatpush1.msra.mxu0 0.0
        %1349 = vmatprep.subr.mxu0 0.0
        %1350 = vmatpush1.msra.mxu0 0.0
        %1351 = vmatprep.subr.mxu0 0.0
        %1352 = vmatpush1.msra.mxu0 %v1309
        %1353 = vmatprep.subr.mxu0 0.0
        %1354 = vmatpush1.msra.mxu0 %v1308
        %1355 = vmatprep.subr.mxu0 0.0
        %1356 = vmatpush2.msra.mxu0 0.0
        %1357 = vmatprep.subr.mxu0 0.0
        %1358 = vmatpush2.msra.mxu0 0.0
        %1359 = vmatprep.subr.mxu0 0.0
        %1360 = vmatpush2.msra.mxu0 0.0
        %1361 = vmatprep.subr.mxu0 0.0
        %1362 = vmatpush2.msra.mxu0 0.0
        %1363 = vmatprep.subr.mxu0 0.0
        %1364 = vmatpush2.msra.mxu0 0.0
        %1365 = vmatprep.subr.mxu0 0.0
        %1366 = vmatpush2.msra.mxu0 0.0
        %1367 = vmatprep.subr.mxu0 0.0
        %1368 = vmatpush2.msra.mxu0 0.0
        %1369 = vmatprep.subr.mxu0 0.0
        %1370 = vmatpush2.msra.mxu0 0.0
        %1371 = vmatprep.subr.mxu0 0.0
        %1372 = vmatpush2.msra.mxu0 0.0
        %1373 = vmatprep.subr.mxu0 0.0
        %1374 = vmatpush2.msra.mxu0 0.0
        %1375 = vmatprep.subr.mxu0 0.0
        %1376 = vmatpush2.msra.mxu0 0.0
        %1377 = vmatprep.subr.mxu0 0.0
        %1378 = vmatpush2.msra.mxu0 0.0
        %1379 = vmatprep.subr.mxu0 0.0
        %1380 = vmatpush2.msra.mxu0 0.0
        %1381 = vmatprep.subr.mxu0 0.0
        %1382 = vmatpush2.msra.mxu0 0.0
        %1383 = vmatprep.subr.mxu0 0.0
        %1384 = vmatpush2.msra.mxu0 0.0
        %1385 = vmatprep.subr.mxu0 0.0
        %1386 = vmatpush2.msra.mxu0 0.0
        %1387 = vmatprep.mubr.f32.mxu0 0.0
        %1388 = vmatmul.mubr.f32.gmra.mxu0 %v1318
        %v1389 = vpop.f32.mrf.mxu0
        %v1390 = vadd.f32 %v1315, %v1389
        %v1391 = vpop.f32.mrf.mxu0
        %1392 = vmatprep.mubr.f32.mxu0 0.0
        %1393 = vmatmul.mubr.f32.gmra.mxu0 %v1321
        %v1394 = vpop.f32.mrf.mxu0
        %v1395 = vadd.f32 %v1315, %v1394
        %v1396 = vpop.f32.mrf.mxu0
        %1397 = vdwg.mxu0
        %v1398 = vld [vmem:[%s10] sm:$0xff]
        %v1399 = vld [vmem:[%s10 + $0x8] sm:$0xff]
        %v1400 = vld [vmem:[%s10 + $0x10] sm:$0xff]
        %v1401 = vld [vmem:[%s10 + $0x18] sm:$0xff]
        %1402 = vmatprep.subr.mxu0 0.0
        %1403 = vmatpush1.msra.mxu0 0.0
        %1404 = vmatprep.subr.mxu0 0.0
        %1405 = vmatpush1.msra.mxu0 0.0
        %1406 = vmatprep.subr.mxu0 0.0
        %1407 = vmatpush1.msra.mxu0 0.0
        %1408 = vmatprep.subr.mxu0 0.0
        %1409 = vmatpush1.msra.mxu0 0.0
        %1410 = vmatprep.subr.mxu0 0.0
        %1411 = vmatpush1.msra.mxu0 0.0
        %1412 = vmatprep.subr.mxu0 0.0
        %1413 = vmatpush1.msra.mxu0 0.0
        %1414 = vmatprep.subr.mxu0 0.0
        %1415 = vmatpush1.msra.mxu0 0.0
        %1416 = vmatprep.subr.mxu0 0.0
        %1417 = vmatpush1.msra.mxu0 0.0
        %1418 = vmatprep.subr.mxu0 0.0
        %1419 = vmatpush1.msra.mxu0 0.0
        %1420 = vmatprep.subr.mxu0 0.0
        %1421 = vmatpush1.msra.mxu0 0.0
        %1422 = vmatprep.subr.mxu0 0.0
        %1423 = vmatpush1.msra.mxu0 0.0
        %1424 = vmatprep.subr.mxu0 0.0
        %1425 = vmatpush1.msra.mxu0 0.0
        %1426 = vmatprep.subr.mxu0 0.0
        %1427 = vmatpush1.msra.mxu0 %v1401
        %1428 = vmatprep.subr.mxu0 0.0
        %1429 = vmatpush1.msra.mxu0 %v1400
        %1430 = vmatprep.subr.mxu0 0.0
        %1431 = vmatpush1.msra.mxu0 %v1399
        %1432 = vmatprep.subr.mxu0 0.0
        %1433 = vmatpush1.msra.mxu0 %v1398
        %1434 = vmatprep.subr.mxu0 0.0
        %1435 = vmatpush2.msra.mxu0 0.0
        %1436 = vmatprep.subr.mxu0 0.0
        %1437 = vmatpush2.msra.mxu0 0.0
        %1438 = vmatprep.subr.mxu0 0.0
        %1439 = vmatpush2.msra.mxu0 0.0
        %1440 = vmatprep.subr.mxu0 0.0
        %1441 = vmatpush2.msra.mxu0 0.0
        %1442 = vmatprep.subr.mxu0 0.0
        %1443 = vmatpush2.msra.mxu0 0.0
        %1444 = vmatprep.subr.mxu0 0.0
        %1445 = vmatpush2.msra.mxu0 0.0
        %1446 = vmatprep.subr.mxu0 0.0
        %1447 = vmatpush2.msra.mxu0 0.0
        %1448 = vmatprep.subr.mxu0 0.0
        %1449 = vmatpush2.msra.mxu0 0.0
        %1450 = vmatprep.subr.mxu0 0.0
        %1451 = vmatpush2.msra.mxu0 0.0
        %1452 = vmatprep.subr.mxu0 0.0
        %1453 = vmatpush2.msra.mxu0 0.0
        %1454 = vmatprep.subr.mxu0 0.0
        %1455 = vmatpush2.msra.mxu0 0.0
        %1456 = vmatprep.subr.mxu0 0.0
        %1457 = vmatpush2.msra.mxu0 0.0
        %1458 = vmatprep.subr.mxu0 0.0
        %1459 = vmatpush2.msra.mxu0 0.0
        %1460 = vmatprep.subr.mxu0 0.0
        %1461 = vmatpush2.msra.mxu0 0.0
        %1462 = vmatprep.subr.mxu0 0.0
        %1463 = vmatpush2.msra.mxu0 0.0
        %1464 = vmatprep.subr.mxu0 0.0
        %1465 = vmatpush2.msra.mxu0 0.0
        %1466 = vmatprep.mubr.f32.mxu0 0.0
        %1467 = vmatmul.mubr.f32.gmra.mxu0 %v769
        %v1468 = vpop.f32.mrf.mxu0
        %v1469 = vadd.f32 0.0, %v1468
        %v1470 = vpop.f32.mrf.mxu0
        %1471 = vmatprep.mubr.f32.mxu0 0.0
        %1472 = vmatmul.mubr.f32.gmra.mxu0 %v769
        %v1473 = vpop.f32.mrf.mxu0
        %v1474 = vadd.f32 0.0, %v1473
        %v1475 = vpop.f32.mrf.mxu0
        %1476 = vdwg.mxu0
        %v1477 = vadd.f32 %v1390, %v1469
        %v1478 = vadd.f32 %v1395, %v1474
        %v1479 = vld [vmem:[%s11] sm:$0x1]
        %v1481 = vlaneseq
        %v1482 = vshrl.u32 %v1481, 7
        %v1483 = vsub.s32 0, %v1482
        %v1484 = vrot.slane %v1479, %v1483
        %v1486 = vadd.f32 %v1477, %v1484
        %v1487 = vadd.f32 %v1478, %v1484
        %v1488 = vsub.f32 0.0, %v1486
        %v1489 = vsub.f32 0.0, %v1487
        %v1490 = vmul.f32 %v1488, 1.442695
        %v1491 = vpow.pop %v1490
        %v1492 = vmul.f32 %v1489, 1.442695
        %v1493 = vpow.pop %v1492
        %v1494 = vadd.f32 %v1491, 1.0
        %v1495 = vadd.f32 %v1493, 1.0
        %v1496 = vrcp.pop %v1494
        %v1497 = vmul.f32 1.0, %v1496
        %v1498 = vrcp.pop %v1495
        %v1499 = vmul.f32 1.0, %v1498
        %v1500 = vtanh.pop %v1486
        %v1501 = vtanh.pop %v1487
        %v1502 = vmul.f32 %v1497, 0.0
        %v1503 = vmul.f32 %v1499, 0.0
        %1506 = vrot.lane.b32.xlu0 %v1500, 64
        %v1507 = vpop.permute.xlu0 %1506
        %1508 = vrot.lane.b32.xlu0 %v1501, 64
        %v1509 = vpop.permute.xlu0 %1508
        %v1512 = vmul.f32 %v1497, %v1507
        %v1513 = vmul.f32 %v1499, %v1509
        %1516 = vrot.lane.b32.xlu0 %v1512, 32
        %v1517 = vpop.permute.xlu0 %1516
        %1518 = vrot.lane.b32.xlu0 %v1513, 32
        %v1519 = vpop.permute.xlu0 %1518
        %v1522 = vadd.f32 %v1502, %v1517
        %v1523 = vadd.f32 %v1503, %v1519
        %v1524 = vtanh.pop %v1522
        %v1525 = vtanh.pop %v1523
        %1528 = vrot.lane.b32.xlu0 %v1524, 64
        %v1529 = vpop.permute.xlu0 %1528
        %1530 = vrot.lane.b32.xlu0 %v1525, 64
        %v1531 = vpop.permute.xlu0 %1530
        %v1534 = vmul.f32 %v1497, %v1529
        %v1535 = vmul.f32 %v1499, %v1531
        %1538 = vrot.lane.b32.xlu0 %v1534, 32
        %v1539 = vpop.permute.xlu0 %1538
        %1540 = vrot.lane.b32.xlu0 %v1535, 32
        %v1541 = vpop.permute.xlu0 %1540
        %v1542 = vsel %vm767, %v1539, 0
        %v1544 = vsel %vm767, %v1541, 0
        %1546 = vmatprep.subr.mxu0 0.0
        %1547 = vmatpush1.msra.mxu0 0.0
        %1548 = vmatprep.subr.mxu0 0.0
        %1549 = vmatpush1.msra.mxu0 0.0
        %1550 = vmatprep.subr.mxu0 0.0
        %1551 = vmatpush1.msra.mxu0 0.0
        %1552 = vmatprep.subr.mxu0 0.0
        %1553 = vmatpush1.msra.mxu0 0.0
        %1554 = vmatprep.subr.mxu0 0.0
        %1555 = vmatpush1.msra.mxu0 0.0
        %1556 = vmatprep.subr.mxu0 0.0
        %1557 = vmatpush1.msra.mxu0 0.0
        %1558 = vmatprep.subr.mxu0 0.0
        %1559 = vmatpush1.msra.mxu0 0.0
        %1560 = vmatprep.subr.mxu0 0.0
        %1561 = vmatpush1.msra.mxu0 0.0
        %1562 = vmatprep.subr.mxu0 0.0
        %1563 = vmatpush1.msra.mxu0 0.0
        %1564 = vmatprep.subr.mxu0 0.0
        %1565 = vmatpush1.msra.mxu0 0.0
        %1566 = vmatprep.subr.mxu0 0.0
        %1567 = vmatpush1.msra.mxu0 0.0
        %1568 = vmatprep.subr.mxu0 0.0
        %1569 = vmatpush1.msra.mxu0 0.0
        %1570 = vmatprep.subr.mxu0 0.0
        %1571 = vmatpush1.msra.mxu0 %v759
        %1572 = vmatprep.subr.mxu0 0.0
        %1573 = vmatpush1.msra.mxu0 %v758
        %1574 = vmatprep.subr.mxu0 0.0
        %1575 = vmatpush1.msra.mxu0 %v757
        %1576 = vmatprep.subr.mxu0 0.0
        %1577 = vmatpush1.msra.mxu0 %v756
        %1578 = vmatprep.subr.mxu0 0.0
        %1579 = vmatpush2.msra.mxu0 0.0
        %1580 = vmatprep.subr.mxu0 0.0
        %1581 = vmatpush2.msra.mxu0 0.0
        %1582 = vmatprep.subr.mxu0 0.0
        %1583 = vmatpush2.msra.mxu0 0.0
        %1584 = vmatprep.subr.mxu0 0.0
        %1585 = vmatpush2.msra.mxu0 0.0
        %1586 = vmatprep.subr.mxu0 0.0
        %1587 = vmatpush2.msra.mxu0 0.0
        %1588 = vmatprep.subr.mxu0 0.0
        %1589 = vmatpush2.msra.mxu0 0.0
        %1590 = vmatprep.subr.mxu0 0.0
        %1591 = vmatpush2.msra.mxu0 0.0
        %1592 = vmatprep.subr.mxu0 0.0
        %1593 = vmatpush2.msra.mxu0 0.0
        %1594 = vmatprep.subr.mxu0 0.0
        %1595 = vmatpush2.msra.mxu0 0.0
        %1596 = vmatprep.subr.mxu0 0.0
        %1597 = vmatpush2.msra.mxu0 0.0
        %1598 = vmatprep.subr.mxu0 0.0
        %1599 = vmatpush2.msra.mxu0 0.0
        %1600 = vmatprep.subr.mxu0 0.0
        %1601 = vmatpush2.msra.mxu0 0.0
        %1602 = vmatprep.subr.mxu0 0.0
        %1603 = vmatpush2.msra.mxu0 0.0
        %1604 = vmatprep.subr.mxu0 0.0
        %1605 = vmatpush2.msra.mxu0 0.0
        %1606 = vmatprep.subr.mxu0 0.0
        %1607 = vmatpush2.msra.mxu0 0.0
        %1608 = vmatprep.subr.mxu0 0.0
        %1609 = vmatpush2.msra.mxu0 0.0
        %1610 = vmatprep.mubr.f32.mxu0 0.0
        %1611 = vmatmul.mubr.f32.gmra.mxu0 %v1542
        %v1612 = vpop.f32.mrf.mxu0
        %v1613 = vadd.f32 %v765, %v1612
        %v1614 = vpop.f32.mrf.mxu0
        %1615 = vmatprep.mubr.f32.mxu0 0.0
        %1616 = vmatmul.mubr.f32.gmra.mxu0 %v1544
        %v1617 = vpop.f32.mrf.mxu0
        %v1618 = vadd.f32 %v765, %v1617
        %v1619 = vpop.f32.mrf.mxu0
        %1620 = vdwg.mxu0
        %v1621 = vadd.f32 %v677, %v1613
        %v1622 = vadd.f32 %v682, %v1618
        %v1623 = vadd.f32 %v687, %v1613
        %v1624 = vadd.f32 %v692, %v1618
        %v1625 = vadd.f32 %v697, %v1613
        %v1626 = vadd.f32 %v702, %v1618
        %v1627 = vadd.f32 %v707, %v1613
        %v1628 = vadd.f32 %v712, %v1618
        %v1629 = vadd.f32 %v717, %v1613
        %v1630 = vadd.f32 %v722, %v1618
        %v1631 = vadd.f32 %v727, %v1613
        %v1632 = vadd.f32 %v732, %v1618
        %v1633 = vadd.f32 %v737, %v1613
        %v1634 = vadd.f32 %v742, %v1618
        %v1635 = vadd.f32 %v747, %v1613
        %v1636 = vadd.f32 %v752, %v1618
        %v1637 = vtanh.pop %v1621
        %v1638 = vtanh.pop %v1622
        %v1639 = vtanh.pop %v1623
        %v1640 = vtanh.pop %v1624
        %v1641 = vtanh.pop %v1625
        %v1642 = vtanh.pop %v1626
        %v1643 = vtanh.pop %v1627
        %v1644 = vtanh.pop %v1628
        %v1645 = vtanh.pop %v1629
        %v1646 = vtanh.pop %v1630
        %v1647 = vtanh.pop %v1631
        %v1648 = vtanh.pop %v1632
        %v1649 = vtanh.pop %v1633
        %v1650 = vtanh.pop %v1634
        %v1651 = vtanh.pop %v1635
        %v1652 = vtanh.pop %v1636
        %v1653 = vmul.f32 %v1637, %v882
        %v1654 = vmul.f32 %v1638, %v882
        %v1655 = vmul.f32 %v1639, %v882
        %v1656 = vmul.f32 %v1640, %v882
        %v1657 = vmul.f32 %v1641, %v882
        %v1658 = vmul.f32 %v1642, %v882
        %v1659 = vmul.f32 %v1643, %v882
        %v1660 = vmul.f32 %v1644, %v882
        %v1661 = vmul.f32 %v1645, %v882
        %v1662 = vmul.f32 %v1646, %v882
        %v1663 = vmul.f32 %v1647, %v882
        %v1664 = vmul.f32 %v1648, %v882
        %v1665 = vmul.f32 %v1649, %v882
        %v1666 = vmul.f32 %v1650, %v882
        %v1667 = vmul.f32 %v1651, %v882
        %v1668 = vmul.f32 %v1652, %v882
        %v1669 = vsel %vm767, %v1653, 0.0
        %1670 = vadd.xlane.f32.xlu0 %v1669
        %v1671 = vpop.xlane.xlu0 %1670
        %v1672 = vsel %vm767, %v1654, 0.0
        %1673 = vadd.xlane.f32.xlu0 %v1672
        %v1674 = vpop.xlane.xlu0 %1673
        %v1675 = vsel %vm767, %v1655, 0.0
        %1676 = vadd.xlane.f32.xlu0 %v1675
        %v1677 = vpop.xlane.xlu0 %1676
        %v1678 = vsel %vm767, %v1656, 0.0
        %1679 = vadd.xlane.f32.xlu0 %v1678
        %v1680 = vpop.xlane.xlu0 %1679
        %v1681 = vsel %vm767, %v1657, 0.0
        %1682 = vadd.xlane.f32.xlu0 %v1681
        %v1683 = vpop.xlane.xlu0 %1682
        %v1684 = vsel %vm767, %v1658, 0.0
        %1685 = vadd.xlane.f32.xlu0 %v1684
        %v1686 = vpop.xlane.xlu0 %1685
        %v1687 = vsel %vm767, %v1659, 0.0
        %1688 = vadd.xlane.f32.xlu0 %v1687
        %v1689 = vpop.xlane.xlu0 %1688
        %v1690 = vsel %vm767, %v1660, 0.0
        %1691 = vadd.xlane.f32.xlu0 %v1690
        %v1692 = vpop.xlane.xlu0 %1691
        %v1693 = vsel %vm767, %v1661, 0.0
        %1694 = vadd.xlane.f32.xlu0 %v1693
        %v1695 = vpop.xlane.xlu0 %1694
        %v1696 = vsel %vm767, %v1662, 0.0
        %1697 = vadd.xlane.f32.xlu0 %v1696
        %v1698 = vpop.xlane.xlu0 %1697
        %v1699 = vsel %vm767, %v1663, 0.0
        %1700 = vadd.xlane.f32.xlu0 %v1699
        %v1701 = vpop.xlane.xlu0 %1700
        %v1702 = vsel %vm767, %v1664, 0.0
        %1703 = vadd.xlane.f32.xlu0 %v1702
        %v1704 = vpop.xlane.xlu0 %1703
        %v1705 = vsel %vm767, %v1665, 0.0
        %1706 = vadd.xlane.f32.xlu0 %v1705
        %v1707 = vpop.xlane.xlu0 %1706
        %v1708 = vsel %vm767, %v1666, 0.0
        %1709 = vadd.xlane.f32.xlu0 %v1708
        %v1710 = vpop.xlane.xlu0 %1709
        %v1711 = vsel %vm767, %v1667, 0.0
        %1712 = vadd.xlane.f32.xlu0 %v1711
        %v1713 = vpop.xlane.xlu0 %1712
        %v1714 = vsel %vm767, %v1668, 0.0
        %1715 = vadd.xlane.f32.xlu0 %v1714
        %v1716 = vpop.xlane.xlu0 %1715
        %v1717 = vadd.f32 %v1671, %v956
        %v1718 = vadd.f32 %v1674, %v956
        %v1719 = vadd.f32 %v1677, %v956
        %v1720 = vadd.f32 %v1680, %v956
        %v1721 = vadd.f32 %v1683, %v956
        %v1722 = vadd.f32 %v1686, %v956
        %v1723 = vadd.f32 %v1689, %v956
        %v1724 = vadd.f32 %v1692, %v956
        %v1725 = vadd.f32 %v1695, %v956
        %v1726 = vadd.f32 %v1698, %v956
        %v1727 = vadd.f32 %v1701, %v956
        %v1728 = vadd.f32 %v1704, %v956
        %v1729 = vadd.f32 %v1707, %v956
        %v1730 = vadd.f32 %v1710, %v956
        %v1731 = vadd.f32 %v1713, %v956
        %v1732 = vadd.f32 %v1716, %v956
        %v1749 = vlaneseq
        %v1750 = vshrl.u32 %v1749, 7
        %v1751 = vsub.s32 %v991, %v1750
        %v1752 = vrot.slane %v1717, %v1751
        %v1753 = vlaneseq
        %v1754 = vshrl.u32 %v1753, 7
        %v1755 = vsub.s32 %v996, %v1754
        %v1756 = vrot.slane %v1718, %v1755
        %v1757 = vsel %vm1001, %v1756, %v1752
        %v1758 = vlaneseq
        %v1759 = vshrl.u32 %v1758, 7
        %v1760 = vsub.s32 %v991, %v1759
        %v1761 = vrot.slane %v1719, %v1760
        %v1762 = vlaneseq
        %v1763 = vshrl.u32 %v1762, 7
        %v1764 = vsub.s32 %v996, %v1763
        %v1765 = vrot.slane %v1720, %v1764
        %v1766 = vsel %vm1001, %v1765, %v1761
        %v1767 = vlaneseq
        %v1768 = vshrl.u32 %v1767, 7
        %v1769 = vsub.s32 %v991, %v1768
        %v1770 = vrot.slane %v1721, %v1769
        %v1771 = vlaneseq
        %v1772 = vshrl.u32 %v1771, 7
        %v1773 = vsub.s32 %v996, %v1772
        %v1774 = vrot.slane %v1722, %v1773
        %v1775 = vsel %vm1001, %v1774, %v1770
        %v1776 = vlaneseq
        %v1777 = vshrl.u32 %v1776, 7
        %v1778 = vsub.s32 %v991, %v1777
        %v1779 = vrot.slane %v1723, %v1778
        %v1780 = vlaneseq
        %v1781 = vshrl.u32 %v1780, 7
        %v1782 = vsub.s32 %v996, %v1781
        %v1783 = vrot.slane %v1724, %v1782
        %v1784 = vsel %vm1001, %v1783, %v1779
        %v1785 = vlaneseq
        %v1786 = vshrl.u32 %v1785, 7
        %v1787 = vsub.s32 %v991, %v1786
        %v1788 = vrot.slane %v1725, %v1787
        %v1789 = vlaneseq
        %v1790 = vshrl.u32 %v1789, 7
        %v1791 = vsub.s32 %v996, %v1790
        %v1792 = vrot.slane %v1726, %v1791
        %v1793 = vsel %vm1001, %v1792, %v1788
        %v1794 = vlaneseq
        %v1795 = vshrl.u32 %v1794, 7
        %v1796 = vsub.s32 %v991, %v1795
        %v1797 = vrot.slane %v1727, %v1796
        %v1798 = vlaneseq
        %v1799 = vshrl.u32 %v1798, 7
        %v1800 = vsub.s32 %v996, %v1799
        %v1801 = vrot.slane %v1728, %v1800
        %v1802 = vsel %vm1001, %v1801, %v1797
        %v1803 = vlaneseq
        %v1804 = vshrl.u32 %v1803, 7
        %v1805 = vsub.s32 %v991, %v1804
        %v1806 = vrot.slane %v1729, %v1805
        %v1807 = vlaneseq
        %v1808 = vshrl.u32 %v1807, 7
        %v1809 = vsub.s32 %v996, %v1808
        %v1810 = vrot.slane %v1730, %v1809
        %v1811 = vsel %vm1001, %v1810, %v1806
        %v1812 = vlaneseq
        %v1813 = vshrl.u32 %v1812, 7
        %v1814 = vsub.s32 %v991, %v1813
        %v1815 = vrot.slane %v1731, %v1814
        %v1816 = vlaneseq
        %v1817 = vshrl.u32 %v1816, 7
        %v1818 = vsub.s32 %v996, %v1817
        %v1819 = vrot.slane %v1732, %v1818
        %v1820 = vsel %vm1001, %v1819, %v1815
        %v1821 = vsel %vm1066, %v1766, %v1757
        %v1822 = vsel %vm1068, %v1775, %v1821
        %v1823 = vsel %vm1070, %v1784, %v1822
        %v1824 = vsel %vm1072, %v1793, %v1823
        %v1825 = vsel %vm1074, %v1802, %v1824
        %v1826 = vsel %vm1076, %v1811, %v1825
        %v1827 = vsel %vm1078, %v1820, %v1826
        %1829 = vxpose.xlu0.b32.start [1/16] %v1827, 128
        %1830 = vxpose.xlu0.b32.cont [2/16] 0.0, 128
        %1831 = vxpose.xlu0.b32.cont [3/16] 0.0, 128
        %1832 = vxpose.xlu0.b32.cont [4/16] 0.0, 128
        %1833 = vxpose.xlu0.b32.cont [5/16] 0.0, 128
        %1834 = vxpose.xlu0.b32.cont [6/16] 0.0, 128
        %1835 = vxpose.xlu0.b32.cont [7/16] 0.0, 128
        %1836 = vxpose.xlu0.b32.cont [8/16] 0.0, 128
        %1837 = vxpose.xlu0.b32.cont [9/16] 0.0, 128
        %1838 = vxpose.xlu0.b32.cont [10/16] 0.0, 128
        %1839 = vxpose.xlu0.b32.cont [11/16] 0.0, 128
        %1840 = vxpose.xlu0.b32.cont [12/16] 0.0, 128
        %1841 = vxpose.xlu0.b32.cont [13/16] 0.0, 128
        %1842 = vxpose.xlu0.b32.cont [14/16] 0.0, 128
        %1843 = vxpose.xlu0.b32.cont [15/16] 0.0, 128
        %1844 = vxpose.xlu0.b32.end [16/16] 0.0, 128
        %v1845 = vpop.trf.xlu0
        %v1846 = vpop.trf.xlu0
        %v1847 = vpop.trf.xlu0
        %v1848 = vpop.trf.xlu0
        %v1849 = vpop.trf.xlu0
        %v1850 = vpop.trf.xlu0
        %v1851 = vpop.trf.xlu0
        %v1852 = vpop.trf.xlu0
        %v1853 = vpop.trf.xlu0
        %v1854 = vpop.trf.xlu0
        %v1855 = vpop.trf.xlu0
        %v1856 = vpop.trf.xlu0
        %v1857 = vpop.trf.xlu0
        %v1858 = vpop.trf.xlu0
        %v1859 = vpop.trf.xlu0
        %v1860 = vpop.trf.xlu0
        %v1861 = vmul.f32 %v1845, %v546
        %v1862 = vmul.f32 %v1846, %v547
        %v1863 = vsel %vm1115, %v1861, -inf
        %1864 = vmax.xlane.f32.xlu0 %v1863
        %v1865 = vpop.xlane.xlu0 %1864
        %v1866 = vsel %vm1115, %v1862, -inf
        %1867 = vmax.xlane.f32.xlu0 %v1866
        %v1868 = vpop.xlane.xlu0 %1867
        %v1869 = vsub.f32 %v1861, %v1865
        %v1870 = vsub.f32 %v1862, %v1868
        %v1871 = vmul.f32 %v1869, 1.442695
        %v1872 = vpow.pop %v1871
        %v1873 = vmul.f32 %v1870, 1.442695
        %v1874 = vpow.pop %v1873
        %v1875 = vmul.f32 %v1872, %v546
        %v1876 = vmul.f32 %v1874, %v547
        %v1877 = vsel %vm1115, %v1875, 0.0
        %1878 = vadd.xlane.f32.xlu0 %v1877
        %v1879 = vpop.xlane.xlu0 %1878
        %v1880 = vsel %vm1115, %v1876, 0.0
        %1881 = vadd.xlane.f32.xlu0 %v1880
        %v1882 = vpop.xlane.xlu0 %1881
        %v1883 = vadd.f32 %v1879, 1e-06
        %v1884 = vadd.f32 %v1882, 1e-06
        %v1885 = vrcp.pop %v1883
        %v1886 = vrcp.pop %v1884
        %v1887 = vmul.f32 %v1875, %v1885
        %v1888 = vmul.f32 %v1876, %v1886
        %1889 = vxpose.xlu0.b32.start [1/16] %v1887, 128
        %1890 = vxpose.xlu0.b32.cont [2/16] %v1888, 128
        %1891 = vxpose.xlu0.b32.cont [3/16] 0.0, 128
        %1892 = vxpose.xlu0.b32.cont [4/16] 0.0, 128
        %1893 = vxpose.xlu0.b32.cont [5/16] 0.0, 128
        %1894 = vxpose.xlu0.b32.cont [6/16] 0.0, 128
        %1895 = vxpose.xlu0.b32.cont [7/16] 0.0, 128
        %1896 = vxpose.xlu0.b32.cont [8/16] 0.0, 128
        %1897 = vxpose.xlu0.b32.cont [9/16] 0.0, 128
        %1898 = vxpose.xlu0.b32.cont [10/16] 0.0, 128
        %1899 = vxpose.xlu0.b32.cont [11/16] 0.0, 128
        %1900 = vxpose.xlu0.b32.cont [12/16] 0.0, 128
        %1901 = vxpose.xlu0.b32.cont [13/16] 0.0, 128
        %1902 = vxpose.xlu0.b32.cont [14/16] 0.0, 128
        %1903 = vxpose.xlu0.b32.cont [15/16] 0.0, 128
        %1904 = vxpose.xlu0.b32.end [16/16] 0.0, 128
        %v1905 = vpop.trf.xlu0
        %v1906 = vpop.trf.xlu0
        %v1907 = vpop.trf.xlu0
        %v1908 = vpop.trf.xlu0
        %v1909 = vpop.trf.xlu0
        %v1910 = vpop.trf.xlu0
        %v1911 = vpop.trf.xlu0
        %v1912 = vpop.trf.xlu0
        %v1913 = vpop.trf.xlu0
        %v1914 = vpop.trf.xlu0
        %v1915 = vpop.trf.xlu0
        %v1916 = vpop.trf.xlu0
        %v1917 = vpop.trf.xlu0
        %v1918 = vpop.trf.xlu0
        %v1919 = vpop.trf.xlu0
        %v1920 = vpop.trf.xlu0
        %v1921 = vlaneseq
        %v1922 = vshrl.u32 %v1921, 7
        %v1923 = vsub.s32 0, %v1922
        %v1924 = vrot.slane %v1905, %v1923
        %1926 = vbcast.lane.b32.xlu0 %v1924, 256
        %v1927 = vpop.permute.xlu0 %1926
        %s1929 = sor.u32 256, 8
        %1930 = vbcast.lane.b32.xlu0 %v1924, %s1929
        %v1931 = vpop.permute.xlu0 %1930
        %v1932 = vlaneseq
        %v1933 = vshrl.u32 %v1932, 7
        %v1934 = vsub.s32 1, %v1933
        %v1935 = vrot.slane %v1905, %v1934
        %1937 = vbcast.lane.b32.xlu0 %v1935, 256
        %v1938 = vpop.permute.xlu0 %1937
        %s1940 = sor.u32 256, 8
        %1941 = vbcast.lane.b32.xlu0 %v1935, %s1940
        %v1942 = vpop.permute.xlu0 %1941
        %v1943 = vlaneseq
        %v1944 = vshrl.u32 %v1943, 7
        %v1945 = vsub.s32 2, %v1944
        %v1946 = vrot.slane %v1905, %v1945
        %1948 = vbcast.lane.b32.xlu0 %v1946, 256
        %v1949 = vpop.permute.xlu0 %1948
        %s1951 = sor.u32 256, 8
        %1952 = vbcast.lane.b32.xlu0 %v1946, %s1951
        %v1953 = vpop.permute.xlu0 %1952
        %v1954 = vlaneseq
        %v1955 = vshrl.u32 %v1954, 7
        %v1956 = vsub.s32 3, %v1955
        %v1957 = vrot.slane %v1905, %v1956
        %1959 = vbcast.lane.b32.xlu0 %v1957, 256
        %v1960 = vpop.permute.xlu0 %1959
        %s1962 = sor.u32 256, 8
        %1963 = vbcast.lane.b32.xlu0 %v1957, %s1962
        %v1964 = vpop.permute.xlu0 %1963
        %v1965 = vlaneseq
        %v1966 = vshrl.u32 %v1965, 7
        %v1967 = vsub.s32 4, %v1966
        %v1968 = vrot.slane %v1905, %v1967
        %1970 = vbcast.lane.b32.xlu0 %v1968, 256
        %v1971 = vpop.permute.xlu0 %1970
        %s1973 = sor.u32 256, 8
        %1974 = vbcast.lane.b32.xlu0 %v1968, %s1973
        %v1975 = vpop.permute.xlu0 %1974
        %v1976 = vlaneseq
        %v1977 = vshrl.u32 %v1976, 7
        %v1978 = vsub.s32 5, %v1977
        %v1979 = vrot.slane %v1905, %v1978
        %1981 = vbcast.lane.b32.xlu0 %v1979, 256
        %v1982 = vpop.permute.xlu0 %1981
        %s1984 = sor.u32 256, 8
        %1985 = vbcast.lane.b32.xlu0 %v1979, %s1984
        %v1986 = vpop.permute.xlu0 %1985
        %v1987 = vlaneseq
        %v1988 = vshrl.u32 %v1987, 7
        %v1989 = vsub.s32 6, %v1988
        %v1990 = vrot.slane %v1905, %v1989
        %1992 = vbcast.lane.b32.xlu0 %v1990, 256
        %v1993 = vpop.permute.xlu0 %1992
        %s1995 = sor.u32 256, 8
        %1996 = vbcast.lane.b32.xlu0 %v1990, %s1995
        %v1997 = vpop.permute.xlu0 %1996
        %v1998 = vlaneseq
        %v1999 = vshrl.u32 %v1998, 7
        %v2000 = vsub.s32 7, %v1999
        %v2001 = vrot.slane %v1905, %v2000
        %2003 = vbcast.lane.b32.xlu0 %v2001, 256
        %v2004 = vpop.permute.xlu0 %2003
        %s2006 = sor.u32 256, 8
        %2007 = vbcast.lane.b32.xlu0 %v2001, %s2006
        %v2008 = vpop.permute.xlu0 %2007
        %v2009 = vmul.f32 %v1927, %v530
        %v2010 = vmul.f32 %v1931, %v531
        %v2011 = vmul.f32 %v1938, %v532
        %v2012 = vmul.f32 %v1942, %v533
        %v2013 = vmul.f32 %v1949, %v534
        %v2014 = vmul.f32 %v1953, %v535
        %v2015 = vmul.f32 %v1960, %v536
        %v2016 = vmul.f32 %v1964, %v537
        %v2017 = vmul.f32 %v1971, %v538
        %v2018 = vmul.f32 %v1975, %v539
        %v2019 = vmul.f32 %v1982, %v540
        %v2020 = vmul.f32 %v1986, %v541
        %v2021 = vmul.f32 %v1993, %v542
        %v2022 = vmul.f32 %v1997, %v543
        %v2023 = vmul.f32 %v2004, %v544
        %v2024 = vmul.f32 %v2008, %v545
        %v2025 = vsel %vm561, %v2009, 0.0
        %v2026 = vsel %vm561, %v2011, 0.0
        %v2027 = vadd.f32 %v2025, %v2026
        %v2028 = vsel %vm561, %v2013, 0.0
        %v2029 = vadd.f32 %v2027, %v2028
        %v2030 = vsel %vm561, %v2015, 0.0
        %v2031 = vadd.f32 %v2029, %v2030
        %v2032 = vsel %vm561, %v2017, 0.0
        %v2033 = vadd.f32 %v2031, %v2032
        %v2034 = vsel %vm561, %v2019, 0.0
        %v2035 = vadd.f32 %v2033, %v2034
        %v2036 = vsel %vm561, %v2021, 0.0
        %v2037 = vadd.f32 %v2035, %v2036
        %v2038 = vsel %vm561, %v2023, 0.0
        %v2039 = vadd.f32 %v2037, %v2038
        %v2040 = vsel %vm561, %v2010, 0.0
        %v2041 = vsel %vm561, %v2012, 0.0
        %v2042 = vadd.f32 %v2040, %v2041
        %v2043 = vsel %vm561, %v2014, 0.0
        %v2044 = vadd.f32 %v2042, %v2043
        %v2045 = vsel %vm561, %v2016, 0.0
        %v2046 = vadd.f32 %v2044, %v2045
        %v2047 = vsel %vm561, %v2018, 0.0
        %v2048 = vadd.f32 %v2046, %v2047
        %v2049 = vsel %vm561, %v2020, 0.0
        %v2050 = vadd.f32 %v2048, %v2049
        %v2051 = vsel %vm561, %v2022, 0.0
        %v2052 = vadd.f32 %v2050, %v2051
        %v2053 = vsel %vm561, %v2024, 0.0
        %v2054 = vadd.f32 %v2052, %v2053
        %v2056 = vsel %vm561, %v2039, 0
        %v2059 = vsel %vm561, %v2054, 0
        %2061 = vmatprep.subr.mxu0 0.0
        %2062 = vmatpush1.msra.mxu0 0.0
        %2063 = vmatprep.subr.mxu0 0.0
        %2064 = vmatpush1.msra.mxu0 0.0
        %2065 = vmatprep.subr.mxu0 0.0
        %2066 = vmatpush1.msra.mxu0 0.0
        %2067 = vmatprep.subr.mxu0 0.0
        %2068 = vmatpush1.msra.mxu0 0.0
        %2069 = vmatprep.subr.mxu0 0.0
        %2070 = vmatpush1.msra.mxu0 0.0
        %2071 = vmatprep.subr.mxu0 0.0
        %2072 = vmatpush1.msra.mxu0 0.0
        %2073 = vmatprep.subr.mxu0 0.0
        %2074 = vmatpush1.msra.mxu0 0.0
        %2075 = vmatprep.subr.mxu0 0.0
        %2076 = vmatpush1.msra.mxu0 0.0
        %2077 = vmatprep.subr.mxu0 0.0
        %2078 = vmatpush1.msra.mxu0 0.0
        %2079 = vmatprep.subr.mxu0 0.0
        %2080 = vmatpush1.msra.mxu0 0.0
        %2081 = vmatprep.subr.mxu0 0.0
        %2082 = vmatpush1.msra.mxu0 0.0
        %2083 = vmatprep.subr.mxu0 0.0
        %2084 = vmatpush1.msra.mxu0 0.0
        %2085 = vmatprep.subr.mxu0 0.0
        %2086 = vmatpush1.msra.mxu0 0.0
        %2087 = vmatprep.subr.mxu0 0.0
        %2088 = vmatpush1.msra.mxu0 0.0
        %2089 = vmatprep.subr.mxu0 0.0
        %2090 = vmatpush1.msra.mxu0 %v1309
        %2091 = vmatprep.subr.mxu0 0.0
        %2092 = vmatpush1.msra.mxu0 %v1308
        %2093 = vmatprep.subr.mxu0 0.0
        %2094 = vmatpush2.msra.mxu0 0.0
        %2095 = vmatprep.subr.mxu0 0.0
        %2096 = vmatpush2.msra.mxu0 0.0
        %2097 = vmatprep.subr.mxu0 0.0
        %2098 = vmatpush2.msra.mxu0 0.0
        %2099 = vmatprep.subr.mxu0 0.0
        %2100 = vmatpush2.msra.mxu0 0.0
        %2101 = vmatprep.subr.mxu0 0.0
        %2102 = vmatpush2.msra.mxu0 0.0
        %2103 = vmatprep.subr.mxu0 0.0
        %2104 = vmatpush2.msra.mxu0 0.0
        %2105 = vmatprep.subr.mxu0 0.0
        %2106 = vmatpush2.msra.mxu0 0.0
        %2107 = vmatprep.subr.mxu0 0.0
        %2108 = vmatpush2.msra.mxu0 0.0
        %2109 = vmatprep.subr.mxu0 0.0
        %2110 = vmatpush2.msra.mxu0 0.0
        %2111 = vmatprep.subr.mxu0 0.0
        %2112 = vmatpush2.msra.mxu0 0.0
        %2113 = vmatprep.subr.mxu0 0.0
        %2114 = vmatpush2.msra.mxu0 0.0
        %2115 = vmatprep.subr.mxu0 0.0
        %2116 = vmatpush2.msra.mxu0 0.0
        %2117 = vmatprep.subr.mxu0 0.0
        %2118 = vmatpush2.msra.mxu0 0.0
        %2119 = vmatprep.subr.mxu0 0.0
        %2120 = vmatpush2.msra.mxu0 0.0
        %2121 = vmatprep.subr.mxu0 0.0
        %2122 = vmatpush2.msra.mxu0 0.0
        %2123 = vmatprep.subr.mxu0 0.0
        %2124 = vmatpush2.msra.mxu0 0.0
        %2125 = vmatprep.mubr.f32.mxu0 0.0
        %2126 = vmatmul.mubr.f32.gmra.mxu0 %v2056
        %v2127 = vpop.f32.mrf.mxu0
        %v2128 = vadd.f32 %v1315, %v2127
        %v2129 = vpop.f32.mrf.mxu0
        %2130 = vmatprep.mubr.f32.mxu0 0.0
        %2131 = vmatmul.mubr.f32.gmra.mxu0 %v2059
        %v2132 = vpop.f32.mrf.mxu0
        %v2133 = vadd.f32 %v1315, %v2132
        %v2134 = vpop.f32.mrf.mxu0
        %2135 = vdwg.mxu0
        %2136 = vmatprep.subr.mxu0 0.0
        %2137 = vmatpush1.msra.mxu0 0.0
        %2138 = vmatprep.subr.mxu0 0.0
        %2139 = vmatpush1.msra.mxu0 0.0
        %2140 = vmatprep.subr.mxu0 0.0
        %2141 = vmatpush1.msra.mxu0 0.0
        %2142 = vmatprep.subr.mxu0 0.0
        %2143 = vmatpush1.msra.mxu0 0.0
        %2144 = vmatprep.subr.mxu0 0.0
        %2145 = vmatpush1.msra.mxu0 0.0
        %2146 = vmatprep.subr.mxu0 0.0
        %2147 = vmatpush1.msra.mxu0 0.0
        %2148 = vmatprep.subr.mxu0 0.0
        %2149 = vmatpush1.msra.mxu0 0.0
        %2150 = vmatprep.subr.mxu0 0.0
        %2151 = vmatpush1.msra.mxu0 0.0
        %2152 = vmatprep.subr.mxu0 0.0
        %2153 = vmatpush1.msra.mxu0 0.0
        %2154 = vmatprep.subr.mxu0 0.0
        %2155 = vmatpush1.msra.mxu0 0.0
        %2156 = vmatprep.subr.mxu0 0.0
        %2157 = vmatpush1.msra.mxu0 0.0
        %2158 = vmatprep.subr.mxu0 0.0
        %2159 = vmatpush1.msra.mxu0 0.0
        %2160 = vmatprep.subr.mxu0 0.0
        %2161 = vmatpush1.msra.mxu0 %v1401
        %2162 = vmatprep.subr.mxu0 0.0
        %2163 = vmatpush1.msra.mxu0 %v1400
        %2164 = vmatprep.subr.mxu0 0.0
        %2165 = vmatpush1.msra.mxu0 %v1399
        %2166 = vmatprep.subr.mxu0 0.0
        %2167 = vmatpush1.msra.mxu0 %v1398
        %2168 = vmatprep.subr.mxu0 0.0
        %2169 = vmatpush2.msra.mxu0 0.0
        %2170 = vmatprep.subr.mxu0 0.0
        %2171 = vmatpush2.msra.mxu0 0.0
        %2172 = vmatprep.subr.mxu0 0.0
        %2173 = vmatpush2.msra.mxu0 0.0
        %2174 = vmatprep.subr.mxu0 0.0
        %2175 = vmatpush2.msra.mxu0 0.0
        %2176 = vmatprep.subr.mxu0 0.0
        %2177 = vmatpush2.msra.mxu0 0.0
        %2178 = vmatprep.subr.mxu0 0.0
        %2179 = vmatpush2.msra.mxu0 0.0
        %2180 = vmatprep.subr.mxu0 0.0
        %2181 = vmatpush2.msra.mxu0 0.0
        %2182 = vmatprep.subr.mxu0 0.0
        %2183 = vmatpush2.msra.mxu0 0.0
        %2184 = vmatprep.subr.mxu0 0.0
        %2185 = vmatpush2.msra.mxu0 0.0
        %2186 = vmatprep.subr.mxu0 0.0
        %2187 = vmatpush2.msra.mxu0 0.0
        %2188 = vmatprep.subr.mxu0 0.0
        %2189 = vmatpush2.msra.mxu0 0.0
        %2190 = vmatprep.subr.mxu0 0.0
        %2191 = vmatpush2.msra.mxu0 0.0
        %2192 = vmatprep.subr.mxu0 0.0
        %2193 = vmatpush2.msra.mxu0 0.0
        %2194 = vmatprep.subr.mxu0 0.0
        %2195 = vmatpush2.msra.mxu0 0.0
        %2196 = vmatprep.subr.mxu0 0.0
        %2197 = vmatpush2.msra.mxu0 0.0
        %2198 = vmatprep.subr.mxu0 0.0
        %2199 = vmatpush2.msra.mxu0 0.0
        %2200 = vmatprep.mubr.f32.mxu0 0.0
        %2201 = vmatmul.mubr.f32.gmra.mxu0 %v1542
        %v2202 = vpop.f32.mrf.mxu0
        %v2203 = vadd.f32 0.0, %v2202
        %v2204 = vpop.f32.mrf.mxu0
        %2205 = vmatprep.mubr.f32.mxu0 0.0
        %2206 = vmatmul.mubr.f32.gmra.mxu0 %v1544
        %v2207 = vpop.f32.mrf.mxu0
        %v2208 = vadd.f32 0.0, %v2207
        %v2209 = vpop.f32.mrf.mxu0
        %2210 = vdwg.mxu0
        %v2211 = vadd.f32 %v2128, %v2203
        %v2212 = vadd.f32 %v2133, %v2208
        %v2213 = vadd.f32 %v2211, %v1484
        %v2214 = vadd.f32 %v2212, %v1484
        %v2215 = vsub.f32 0.0, %v2213
        %v2216 = vsub.f32 0.0, %v2214
        %v2217 = vmul.f32 %v2215, 1.442695
        %v2218 = vpow.pop %v2217
        %v2219 = vmul.f32 %v2216, 1.442695
        %v2220 = vpow.pop %v2219
        %v2221 = vadd.f32 %v2218, 1.0
        %v2222 = vadd.f32 %v2220, 1.0
        %v2223 = vrcp.pop %v2221
        %v2224 = vmul.f32 1.0, %v2223
        %v2225 = vrcp.pop %v2222
        %v2226 = vmul.f32 1.0, %v2225
        %v2227 = vtanh.pop %v2213
        %v2228 = vtanh.pop %v2214
        %v2229 = vmul.f32 %v2224, %v1522
        %v2230 = vmul.f32 %v2226, %v1523
        %2233 = vrot.lane.b32.xlu0 %v2227, 64
        %v2234 = vpop.permute.xlu0 %2233
        %2235 = vrot.lane.b32.xlu0 %v2228, 64
        %v2236 = vpop.permute.xlu0 %2235
        %v2239 = vmul.f32 %v2224, %v2234
        %v2240 = vmul.f32 %v2226, %v2236
        %2243 = vrot.lane.b32.xlu0 %v2239, 32
        %v2244 = vpop.permute.xlu0 %2243
        %2245 = vrot.lane.b32.xlu0 %v2240, 32
        %v2246 = vpop.permute.xlu0 %2245
        %v2249 = vadd.f32 %v2229, %v2244
        %v2250 = vadd.f32 %v2230, %v2246
        %v2251 = vtanh.pop %v2249
        %v2252 = vtanh.pop %v2250
        %2255 = vrot.lane.b32.xlu0 %v2251, 64
        %v2256 = vpop.permute.xlu0 %2255
        %2257 = vrot.lane.b32.xlu0 %v2252, 64
        %v2258 = vpop.permute.xlu0 %2257
        %v2261 = vmul.f32 %v2224, %v2256
        %v2262 = vmul.f32 %v2226, %v2258
        %2265 = vrot.lane.b32.xlu0 %v2261, 32
        %v2266 = vpop.permute.xlu0 %2265
        %2267 = vrot.lane.b32.xlu0 %v2262, 32
        %v2268 = vpop.permute.xlu0 %2267
        %v2269 = vsel %vm767, %v2266, 0
        %v2271 = vsel %vm767, %v2268, 0
        %2273 = vmatprep.subr.mxu0 0.0
        %2274 = vmatpush1.msra.mxu0 0.0
        %2275 = vmatprep.subr.mxu0 0.0
        %2276 = vmatpush1.msra.mxu0 0.0
        %2277 = vmatprep.subr.mxu0 0.0
        %2278 = vmatpush1.msra.mxu0 0.0
        %2279 = vmatprep.subr.mxu0 0.0
        %2280 = vmatpush1.msra.mxu0 0.0
        %2281 = vmatprep.subr.mxu0 0.0
        %2282 = vmatpush1.msra.mxu0 0.0
        %2283 = vmatprep.subr.mxu0 0.0
        %2284 = vmatpush1.msra.mxu0 0.0
        %2285 = vmatprep.subr.mxu0 0.0
        %2286 = vmatpush1.msra.mxu0 0.0
        %2287 = vmatprep.subr.mxu0 0.0
        %2288 = vmatpush1.msra.mxu0 0.0
        %2289 = vmatprep.subr.mxu0 0.0
        %2290 = vmatpush1.msra.mxu0 0.0
        %2291 = vmatprep.subr.mxu0 0.0
        %2292 = vmatpush1.msra.mxu0 0.0
        %2293 = vmatprep.subr.mxu0 0.0
        %2294 = vmatpush1.msra.mxu0 0.0
        %2295 = vmatprep.subr.mxu0 0.0
        %2296 = vmatpush1.msra.mxu0 0.0
        %2297 = vmatprep.subr.mxu0 0.0
        %2298 = vmatpush1.msra.mxu0 %v759
        %2299 = vmatprep.subr.mxu0 0.0
        %2300 = vmatpush1.msra.mxu0 %v758
        %2301 = vmatprep.subr.mxu0 0.0
        %2302 = vmatpush1.msra.mxu0 %v757
        %2303 = vmatprep.subr.mxu0 0.0
        %2304 = vmatpush1.msra.mxu0 %v756
        %2305 = vmatprep.subr.mxu0 0.0
        %2306 = vmatpush2.msra.mxu0 0.0
        %2307 = vmatprep.subr.mxu0 0.0
        %2308 = vmatpush2.msra.mxu0 0.0
        %2309 = vmatprep.subr.mxu0 0.0
        %2310 = vmatpush2.msra.mxu0 0.0
        %2311 = vmatprep.subr.mxu0 0.0
        %2312 = vmatpush2.msra.mxu0 0.0
        %2313 = vmatprep.subr.mxu0 0.0
        %2314 = vmatpush2.msra.mxu0 0.0
        %2315 = vmatprep.subr.mxu0 0.0
        %2316 = vmatpush2.msra.mxu0 0.0
        %2317 = vmatprep.subr.mxu0 0.0
        %2318 = vmatpush2.msra.mxu0 0.0
        %2319 = vmatprep.subr.mxu0 0.0
        %2320 = vmatpush2.msra.mxu0 0.0
        %2321 = vmatprep.subr.mxu0 0.0
        %2322 = vmatpush2.msra.mxu0 0.0
        %2323 = vmatprep.subr.mxu0 0.0
        %2324 = vmatpush2.msra.mxu0 0.0
        %2325 = vmatprep.subr.mxu0 0.0
        %2326 = vmatpush2.msra.mxu0 0.0
        %2327 = vmatprep.subr.mxu0 0.0
        %2328 = vmatpush2.msra.mxu0 0.0
        %2329 = vmatprep.subr.mxu0 0.0
        %2330 = vmatpush2.msra.mxu0 0.0
        %2331 = vmatprep.subr.mxu0 0.0
        %2332 = vmatpush2.msra.mxu0 0.0
        %2333 = vmatprep.subr.mxu0 0.0
        %2334 = vmatpush2.msra.mxu0 0.0
        %2335 = vmatprep.subr.mxu0 0.0
        %2336 = vmatpush2.msra.mxu0 0.0
        %2337 = vmatprep.mubr.f32.mxu0 0.0
        %2338 = vmatmul.mubr.f32.gmra.mxu0 %v2269
        %v2339 = vpop.f32.mrf.mxu0
        %v2340 = vadd.f32 %v765, %v2339
        %v2341 = vpop.f32.mrf.mxu0
        %2342 = vmatprep.mubr.f32.mxu0 0.0
        %2343 = vmatmul.mubr.f32.gmra.mxu0 %v2271
        %v2344 = vpop.f32.mrf.mxu0
        %v2345 = vadd.f32 %v765, %v2344
        %v2346 = vpop.f32.mrf.mxu0
        %2347 = vdwg.mxu0
        %v2348 = vadd.f32 %v677, %v2340
        %v2349 = vadd.f32 %v682, %v2345
        %v2350 = vadd.f32 %v687, %v2340
        %v2351 = vadd.f32 %v692, %v2345
        %v2352 = vadd.f32 %v697, %v2340
        %v2353 = vadd.f32 %v702, %v2345
        %v2354 = vadd.f32 %v707, %v2340
        %v2355 = vadd.f32 %v712, %v2345
        %v2356 = vadd.f32 %v717, %v2340
        %v2357 = vadd.f32 %v722, %v2345
        %v2358 = vadd.f32 %v727, %v2340
        %v2359 = vadd.f32 %v732, %v2345
        %v2360 = vadd.f32 %v737, %v2340
        %v2361 = vadd.f32 %v742, %v2345
        %v2362 = vadd.f32 %v747, %v2340
        %v2363 = vadd.f32 %v752, %v2345
        %v2364 = vtanh.pop %v2348
        %v2365 = vtanh.pop %v2349
        %v2366 = vtanh.pop %v2350
        %v2367 = vtanh.pop %v2351
        %v2368 = vtanh.pop %v2352
        %v2369 = vtanh.pop %v2353
        %v2370 = vtanh.pop %v2354
        %v2371 = vtanh.pop %v2355
        %v2372 = vtanh.pop %v2356
        %v2373 = vtanh.pop %v2357
        %v2374 = vtanh.pop %v2358
        %v2375 = vtanh.pop %v2359
        %v2376 = vtanh.pop %v2360
        %v2377 = vtanh.pop %v2361
        %v2378 = vtanh.pop %v2362
        %v2379 = vtanh.pop %v2363
        %v2380 = vmul.f32 %v2364, %v882
        %v2381 = vmul.f32 %v2365, %v882
        %v2382 = vmul.f32 %v2366, %v882
        %v2383 = vmul.f32 %v2367, %v882
        %v2384 = vmul.f32 %v2368, %v882
        %v2385 = vmul.f32 %v2369, %v882
        %v2386 = vmul.f32 %v2370, %v882
        %v2387 = vmul.f32 %v2371, %v882
        %v2388 = vmul.f32 %v2372, %v882
        %v2389 = vmul.f32 %v2373, %v882
        %v2390 = vmul.f32 %v2374, %v882
        %v2391 = vmul.f32 %v2375, %v882
        %v2392 = vmul.f32 %v2376, %v882
        %v2393 = vmul.f32 %v2377, %v882
        %v2394 = vmul.f32 %v2378, %v882
        %v2395 = vmul.f32 %v2379, %v882
        %v2396 = vsel %vm767, %v2380, 0.0
        %2397 = vadd.xlane.f32.xlu0 %v2396
        %v2398 = vpop.xlane.xlu0 %2397
        %v2399 = vsel %vm767, %v2381, 0.0
        %2400 = vadd.xlane.f32.xlu0 %v2399
        %v2401 = vpop.xlane.xlu0 %2400
        %v2402 = vsel %vm767, %v2382, 0.0
        %2403 = vadd.xlane.f32.xlu0 %v2402
        %v2404 = vpop.xlane.xlu0 %2403
        %v2405 = vsel %vm767, %v2383, 0.0
        %2406 = vadd.xlane.f32.xlu0 %v2405
        %v2407 = vpop.xlane.xlu0 %2406
        %v2408 = vsel %vm767, %v2384, 0.0
        %2409 = vadd.xlane.f32.xlu0 %v2408
        %v2410 = vpop.xlane.xlu0 %2409
        %v2411 = vsel %vm767, %v2385, 0.0
        %2412 = vadd.xlane.f32.xlu0 %v2411
        %v2413 = vpop.xlane.xlu0 %2412
        %v2414 = vsel %vm767, %v2386, 0.0
        %2415 = vadd.xlane.f32.xlu0 %v2414
        %v2416 = vpop.xlane.xlu0 %2415
        %v2417 = vsel %vm767, %v2387, 0.0
        %2418 = vadd.xlane.f32.xlu0 %v2417
        %v2419 = vpop.xlane.xlu0 %2418
        %v2420 = vsel %vm767, %v2388, 0.0
        %2421 = vadd.xlane.f32.xlu0 %v2420
        %v2422 = vpop.xlane.xlu0 %2421
        %v2423 = vsel %vm767, %v2389, 0.0
        %2424 = vadd.xlane.f32.xlu0 %v2423
        %v2425 = vpop.xlane.xlu0 %2424
        %v2426 = vsel %vm767, %v2390, 0.0
        %2427 = vadd.xlane.f32.xlu0 %v2426
        %v2428 = vpop.xlane.xlu0 %2427
        %v2429 = vsel %vm767, %v2391, 0.0
        %2430 = vadd.xlane.f32.xlu0 %v2429
        %v2431 = vpop.xlane.xlu0 %2430
        %v2432 = vsel %vm767, %v2392, 0.0
        %2433 = vadd.xlane.f32.xlu0 %v2432
        %v2434 = vpop.xlane.xlu0 %2433
        %v2435 = vsel %vm767, %v2393, 0.0
        %2436 = vadd.xlane.f32.xlu0 %v2435
        %v2437 = vpop.xlane.xlu0 %2436
        %v2438 = vsel %vm767, %v2394, 0.0
        %2439 = vadd.xlane.f32.xlu0 %v2438
        %v2440 = vpop.xlane.xlu0 %2439
        %v2441 = vsel %vm767, %v2395, 0.0
        %2442 = vadd.xlane.f32.xlu0 %v2441
        %v2443 = vpop.xlane.xlu0 %2442
        %v2444 = vadd.f32 %v2398, %v956
        %v2445 = vadd.f32 %v2401, %v956
        %v2446 = vadd.f32 %v2404, %v956
        %v2447 = vadd.f32 %v2407, %v956
        %v2448 = vadd.f32 %v2410, %v956
        %v2449 = vadd.f32 %v2413, %v956
        %v2450 = vadd.f32 %v2416, %v956
        %v2451 = vadd.f32 %v2419, %v956
        %v2452 = vadd.f32 %v2422, %v956
        %v2453 = vadd.f32 %v2425, %v956
        %v2454 = vadd.f32 %v2428, %v956
        %v2455 = vadd.f32 %v2431, %v956
        %v2456 = vadd.f32 %v2434, %v956
        %v2457 = vadd.f32 %v2437, %v956
        %v2458 = vadd.f32 %v2440, %v956
        %v2459 = vadd.f32 %v2443, %v956
        %v2476 = vlaneseq
        %v2477 = vshrl.u32 %v2476, 7
        %v2478 = vsub.s32 %v991, %v2477
        %v2479 = vrot.slane %v2444, %v2478
        %v2480 = vlaneseq
        %v2481 = vshrl.u32 %v2480, 7
        %v2482 = vsub.s32 %v996, %v2481
        %v2483 = vrot.slane %v2445, %v2482
        %v2484 = vsel %vm1001, %v2483, %v2479
        %v2485 = vlaneseq
        %v2486 = vshrl.u32 %v2485, 7
        %v2487 = vsub.s32 %v991, %v2486
        %v2488 = vrot.slane %v2446, %v2487
        %v2489 = vlaneseq
        %v2490 = vshrl.u32 %v2489, 7
        %v2491 = vsub.s32 %v996, %v2490
        %v2492 = vrot.slane %v2447, %v2491
        %v2493 = vsel %vm1001, %v2492, %v2488
        %v2494 = vlaneseq
        %v2495 = vshrl.u32 %v2494, 7
        %v2496 = vsub.s32 %v991, %v2495
        %v2497 = vrot.slane %v2448, %v2496
        %v2498 = vlaneseq
        %v2499 = vshrl.u32 %v2498, 7
        %v2500 = vsub.s32 %v996, %v2499
        %v2501 = vrot.slane %v2449, %v2500
        %v2502 = vsel %vm1001, %v2501, %v2497
        %v2503 = vlaneseq
        %v2504 = vshrl.u32 %v2503, 7
        %v2505 = vsub.s32 %v991, %v2504
        %v2506 = vrot.slane %v2450, %v2505
        %v2507 = vlaneseq
        %v2508 = vshrl.u32 %v2507, 7
        %v2509 = vsub.s32 %v996, %v2508
        %v2510 = vrot.slane %v2451, %v2509
        %v2511 = vsel %vm1001, %v2510, %v2506
        %v2512 = vlaneseq
        %v2513 = vshrl.u32 %v2512, 7
        %v2514 = vsub.s32 %v991, %v2513
        %v2515 = vrot.slane %v2452, %v2514
        %v2516 = vlaneseq
        %v2517 = vshrl.u32 %v2516, 7
        %v2518 = vsub.s32 %v996, %v2517
        %v2519 = vrot.slane %v2453, %v2518
        %v2520 = vsel %vm1001, %v2519, %v2515
        %v2521 = vlaneseq
        %v2522 = vshrl.u32 %v2521, 7
        %v2523 = vsub.s32 %v991, %v2522
        %v2524 = vrot.slane %v2454, %v2523
        %v2525 = vlaneseq
        %v2526 = vshrl.u32 %v2525, 7
        %v2527 = vsub.s32 %v996, %v2526
        %v2528 = vrot.slane %v2455, %v2527
        %v2529 = vsel %vm1001, %v2528, %v2524
        %v2530 = vlaneseq
        %v2531 = vshrl.u32 %v2530, 7
        %v2532 = vsub.s32 %v991, %v2531
        %v2533 = vrot.slane %v2456, %v2532
        %v2534 = vlaneseq
        %v2535 = vshrl.u32 %v2534, 7
        %v2536 = vsub.s32 %v996, %v2535
        %v2537 = vrot.slane %v2457, %v2536
        %v2538 = vsel %vm1001, %v2537, %v2533
        %v2539 = vlaneseq
        %v2540 = vshrl.u32 %v2539, 7
        %v2541 = vsub.s32 %v991, %v2540
        %v2542 = vrot.slane %v2458, %v2541
        %v2543 = vlaneseq
        %v2544 = vshrl.u32 %v2543, 7
        %v2545 = vsub.s32 %v996, %v2544
        %v2546 = vrot.slane %v2459, %v2545
        %v2547 = vsel %vm1001, %v2546, %v2542
        %v2548 = vsel %vm1066, %v2493, %v2484
        %v2549 = vsel %vm1068, %v2502, %v2548
        %v2550 = vsel %vm1070, %v2511, %v2549
        %v2551 = vsel %vm1072, %v2520, %v2550
        %v2552 = vsel %vm1074, %v2529, %v2551
        %v2553 = vsel %vm1076, %v2538, %v2552
        %v2554 = vsel %vm1078, %v2547, %v2553
        %2556 = vxpose.xlu0.b32.start [1/16] %v2554, 128
        %2557 = vxpose.xlu0.b32.cont [2/16] 0.0, 128
        %2558 = vxpose.xlu0.b32.cont [3/16] 0.0, 128
        %2559 = vxpose.xlu0.b32.cont [4/16] 0.0, 128
        %2560 = vxpose.xlu0.b32.cont [5/16] 0.0, 128
        %2561 = vxpose.xlu0.b32.cont [6/16] 0.0, 128
        %2562 = vxpose.xlu0.b32.cont [7/16] 0.0, 128
        %2563 = vxpose.xlu0.b32.cont [8/16] 0.0, 128
        %2564 = vxpose.xlu0.b32.cont [9/16] 0.0, 128
        %2565 = vxpose.xlu0.b32.cont [10/16] 0.0, 128
        %2566 = vxpose.xlu0.b32.cont [11/16] 0.0, 128
        %2567 = vxpose.xlu0.b32.cont [12/16] 0.0, 128
        %2568 = vxpose.xlu0.b32.cont [13/16] 0.0, 128
        %2569 = vxpose.xlu0.b32.cont [14/16] 0.0, 128
        %2570 = vxpose.xlu0.b32.cont [15/16] 0.0, 128
        %2571 = vxpose.xlu0.b32.end [16/16] 0.0, 128
        %v2572 = vpop.trf.xlu0
        %v2573 = vpop.trf.xlu0
        %v2574 = vpop.trf.xlu0
        %v2575 = vpop.trf.xlu0
        %v2576 = vpop.trf.xlu0
        %v2577 = vpop.trf.xlu0
        %v2578 = vpop.trf.xlu0
        %v2579 = vpop.trf.xlu0
        %v2580 = vpop.trf.xlu0
        %v2581 = vpop.trf.xlu0
        %v2582 = vpop.trf.xlu0
        %v2583 = vpop.trf.xlu0
        %v2584 = vpop.trf.xlu0
        %v2585 = vpop.trf.xlu0
        %v2586 = vpop.trf.xlu0
        %v2587 = vpop.trf.xlu0
        %v2588 = vmul.f32 %v2572, %v546
        %v2589 = vmul.f32 %v2573, %v547
        %v2590 = vsel %vm1115, %v2588, -inf
        %2591 = vmax.xlane.f32.xlu0 %v2590
        %v2592 = vpop.xlane.xlu0 %2591
        %v2593 = vsel %vm1115, %v2589, -inf
        %2594 = vmax.xlane.f32.xlu0 %v2593
        %v2595 = vpop.xlane.xlu0 %2594
        %v2596 = vsub.f32 %v2588, %v2592
        %v2597 = vsub.f32 %v2589, %v2595
        %v2598 = vmul.f32 %v2596, 1.442695
        %v2599 = vpow.pop %v2598
        %v2600 = vmul.f32 %v2597, 1.442695
        %v2601 = vpow.pop %v2600
        %v2602 = vmul.f32 %v2599, %v546
        %v2603 = vmul.f32 %v2601, %v547
        %v2604 = vsel %vm1115, %v2602, 0.0
        %2605 = vadd.xlane.f32.xlu0 %v2604
        %v2606 = vpop.xlane.xlu0 %2605
        %v2607 = vsel %vm1115, %v2603, 0.0
        %2608 = vadd.xlane.f32.xlu0 %v2607
        %v2609 = vpop.xlane.xlu0 %2608
        %v2610 = vadd.f32 %v2606, 1e-06
        %v2611 = vadd.f32 %v2609, 1e-06
        %v2612 = vrcp.pop %v2610
        %v2613 = vrcp.pop %v2611
        %v2614 = vmul.f32 %v2602, %v2612
        %v2615 = vmul.f32 %v2603, %v2613
        %2616 = vxpose.xlu0.b32.start [1/16] %v2614, 128
        %2617 = vxpose.xlu0.b32.cont [2/16] %v2615, 128
        %2618 = vxpose.xlu0.b32.cont [3/16] 0.0, 128
        %2619 = vxpose.xlu0.b32.cont [4/16] 0.0, 128
        %2620 = vxpose.xlu0.b32.cont [5/16] 0.0, 128
        %2621 = vxpose.xlu0.b32.cont [6/16] 0.0, 128
        %2622 = vxpose.xlu0.b32.cont [7/16] 0.0, 128
        %2623 = vxpose.xlu0.b32.cont [8/16] 0.0, 128
        %2624 = vxpose.xlu0.b32.cont [9/16] 0.0, 128
        %2625 = vxpose.xlu0.b32.cont [10/16] 0.0, 128
        %2626 = vxpose.xlu0.b32.cont [11/16] 0.0, 128
        %2627 = vxpose.xlu0.b32.cont [12/16] 0.0, 128
        %2628 = vxpose.xlu0.b32.cont [13/16] 0.0, 128
        %2629 = vxpose.xlu0.b32.cont [14/16] 0.0, 128
        %2630 = vxpose.xlu0.b32.cont [15/16] 0.0, 128
        %2631 = vxpose.xlu0.b32.end [16/16] 0.0, 128
        %v2632 = vpop.trf.xlu0
        %v2633 = vpop.trf.xlu0
        %v2634 = vpop.trf.xlu0
        %v2635 = vpop.trf.xlu0
        %v2636 = vpop.trf.xlu0
        %v2637 = vpop.trf.xlu0
        %v2638 = vpop.trf.xlu0
        %v2639 = vpop.trf.xlu0
        %v2640 = vpop.trf.xlu0
        %v2641 = vpop.trf.xlu0
        %v2642 = vpop.trf.xlu0
        %v2643 = vpop.trf.xlu0
        %v2644 = vpop.trf.xlu0
        %v2645 = vpop.trf.xlu0
        %v2646 = vpop.trf.xlu0
        %v2647 = vpop.trf.xlu0
        %v2648 = vlaneseq
        %v2649 = vshrl.u32 %v2648, 7
        %v2650 = vsub.s32 0, %v2649
        %v2651 = vrot.slane %v2632, %v2650
        %2653 = vbcast.lane.b32.xlu0 %v2651, 256
        %v2654 = vpop.permute.xlu0 %2653
        %s2656 = sor.u32 256, 8
        %2657 = vbcast.lane.b32.xlu0 %v2651, %s2656
        %v2658 = vpop.permute.xlu0 %2657
        %v2659 = vlaneseq
        %v2660 = vshrl.u32 %v2659, 7
        %v2661 = vsub.s32 1, %v2660
        %v2662 = vrot.slane %v2632, %v2661
        %2664 = vbcast.lane.b32.xlu0 %v2662, 256
        %v2665 = vpop.permute.xlu0 %2664
        %s2667 = sor.u32 256, 8
        %2668 = vbcast.lane.b32.xlu0 %v2662, %s2667
        %v2669 = vpop.permute.xlu0 %2668
        %v2670 = vlaneseq
        %v2671 = vshrl.u32 %v2670, 7
        %v2672 = vsub.s32 2, %v2671
        %v2673 = vrot.slane %v2632, %v2672
        %2675 = vbcast.lane.b32.xlu0 %v2673, 256
        %v2676 = vpop.permute.xlu0 %2675
        %s2678 = sor.u32 256, 8
        %2679 = vbcast.lane.b32.xlu0 %v2673, %s2678
        %v2680 = vpop.permute.xlu0 %2679
        %v2681 = vlaneseq
        %v2682 = vshrl.u32 %v2681, 7
        %v2683 = vsub.s32 3, %v2682
        %v2684 = vrot.slane %v2632, %v2683
        %2686 = vbcast.lane.b32.xlu0 %v2684, 256
        %v2687 = vpop.permute.xlu0 %2686
        %s2689 = sor.u32 256, 8
        %2690 = vbcast.lane.b32.xlu0 %v2684, %s2689
        %v2691 = vpop.permute.xlu0 %2690
        %v2692 = vlaneseq
        %v2693 = vshrl.u32 %v2692, 7
        %v2694 = vsub.s32 4, %v2693
        %v2695 = vrot.slane %v2632, %v2694
        %2697 = vbcast.lane.b32.xlu0 %v2695, 256
        %v2698 = vpop.permute.xlu0 %2697
        %s2700 = sor.u32 256, 8
        %2701 = vbcast.lane.b32.xlu0 %v2695, %s2700
        %v2702 = vpop.permute.xlu0 %2701
        %v2703 = vlaneseq
        %v2704 = vshrl.u32 %v2703, 7
        %v2705 = vsub.s32 5, %v2704
        %v2706 = vrot.slane %v2632, %v2705
        %2708 = vbcast.lane.b32.xlu0 %v2706, 256
        %v2709 = vpop.permute.xlu0 %2708
        %s2711 = sor.u32 256, 8
        %2712 = vbcast.lane.b32.xlu0 %v2706, %s2711
        %v2713 = vpop.permute.xlu0 %2712
        %v2714 = vlaneseq
        %v2715 = vshrl.u32 %v2714, 7
        %v2716 = vsub.s32 6, %v2715
        %v2717 = vrot.slane %v2632, %v2716
        %2719 = vbcast.lane.b32.xlu0 %v2717, 256
        %v2720 = vpop.permute.xlu0 %2719
        %s2722 = sor.u32 256, 8
        %2723 = vbcast.lane.b32.xlu0 %v2717, %s2722
        %v2724 = vpop.permute.xlu0 %2723
        %v2725 = vlaneseq
        %v2726 = vshrl.u32 %v2725, 7
        %v2727 = vsub.s32 7, %v2726
        %v2728 = vrot.slane %v2632, %v2727
        %2730 = vbcast.lane.b32.xlu0 %v2728, 256
        %v2731 = vpop.permute.xlu0 %2730
        %s2733 = sor.u32 256, 8
        %2734 = vbcast.lane.b32.xlu0 %v2728, %s2733
        %v2735 = vpop.permute.xlu0 %2734
        %v2736 = vmul.f32 %v2654, %v530
        %v2737 = vmul.f32 %v2658, %v531
        %v2738 = vmul.f32 %v2665, %v532
        %v2739 = vmul.f32 %v2669, %v533
        %v2740 = vmul.f32 %v2676, %v534
        %v2741 = vmul.f32 %v2680, %v535
        %v2742 = vmul.f32 %v2687, %v536
        %v2743 = vmul.f32 %v2691, %v537
        %v2744 = vmul.f32 %v2698, %v538
        %v2745 = vmul.f32 %v2702, %v539
        %v2746 = vmul.f32 %v2709, %v540
        %v2747 = vmul.f32 %v2713, %v541
        %v2748 = vmul.f32 %v2720, %v542
        %v2749 = vmul.f32 %v2724, %v543
        %v2750 = vmul.f32 %v2731, %v544
        %v2751 = vmul.f32 %v2735, %v545
        %v2752 = vsel %vm561, %v2736, 0.0
        %v2753 = vsel %vm561, %v2738, 0.0
        %v2754 = vadd.f32 %v2752, %v2753
        %v2755 = vsel %vm561, %v2740, 0.0
        %v2756 = vadd.f32 %v2754, %v2755
        %v2757 = vsel %vm561, %v2742, 0.0
        %v2758 = vadd.f32 %v2756, %v2757
        %v2759 = vsel %vm561, %v2744, 0.0
        %v2760 = vadd.f32 %v2758, %v2759
        %v2761 = vsel %vm561, %v2746, 0.0
        %v2762 = vadd.f32 %v2760, %v2761
        %v2763 = vsel %vm561, %v2748, 0.0
        %v2764 = vadd.f32 %v2762, %v2763
        %v2765 = vsel %vm561, %v2750, 0.0
        %v2766 = vadd.f32 %v2764, %v2765
        %v2767 = vsel %vm561, %v2737, 0.0
        %v2768 = vsel %vm561, %v2739, 0.0
        %v2769 = vadd.f32 %v2767, %v2768
        %v2770 = vsel %vm561, %v2741, 0.0
        %v2771 = vadd.f32 %v2769, %v2770
        %v2772 = vsel %vm561, %v2743, 0.0
        %v2773 = vadd.f32 %v2771, %v2772
        %v2774 = vsel %vm561, %v2745, 0.0
        %v2775 = vadd.f32 %v2773, %v2774
        %v2776 = vsel %vm561, %v2747, 0.0
        %v2777 = vadd.f32 %v2775, %v2776
        %v2778 = vsel %vm561, %v2749, 0.0
        %v2779 = vadd.f32 %v2777, %v2778
        %v2780 = vsel %vm561, %v2751, 0.0
        %v2781 = vadd.f32 %v2779, %v2780
        %v2783 = vsel %vm561, %v2766, 0
        %v2786 = vsel %vm561, %v2781, 0
        %2788 = vmatprep.subr.mxu0 0.0
        %2789 = vmatpush1.msra.mxu0 0.0
        %2790 = vmatprep.subr.mxu0 0.0
        %2791 = vmatpush1.msra.mxu0 0.0
        %2792 = vmatprep.subr.mxu0 0.0
        %2793 = vmatpush1.msra.mxu0 0.0
        %2794 = vmatprep.subr.mxu0 0.0
        %2795 = vmatpush1.msra.mxu0 0.0
        %2796 = vmatprep.subr.mxu0 0.0
        %2797 = vmatpush1.msra.mxu0 0.0
        %2798 = vmatprep.subr.mxu0 0.0
        %2799 = vmatpush1.msra.mxu0 0.0
        %2800 = vmatprep.subr.mxu0 0.0
        %2801 = vmatpush1.msra.mxu0 0.0
        %2802 = vmatprep.subr.mxu0 0.0
        %2803 = vmatpush1.msra.mxu0 0.0
        %2804 = vmatprep.subr.mxu0 0.0
        %2805 = vmatpush1.msra.mxu0 0.0
        %2806 = vmatprep.subr.mxu0 0.0
        %2807 = vmatpush1.msra.mxu0 0.0
        %2808 = vmatprep.subr.mxu0 0.0
        %2809 = vmatpush1.msra.mxu0 0.0
        %2810 = vmatprep.subr.mxu0 0.0
        %2811 = vmatpush1.msra.mxu0 0.0
        %2812 = vmatprep.subr.mxu0 0.0
        %2813 = vmatpush1.msra.mxu0 0.0
        %2814 = vmatprep.subr.mxu0 0.0
        %2815 = vmatpush1.msra.mxu0 0.0
        %2816 = vmatprep.subr.mxu0 0.0
        %2817 = vmatpush1.msra.mxu0 %v1309
        %2818 = vmatprep.subr.mxu0 0.0
        %2819 = vmatpush1.msra.mxu0 %v1308
        %2820 = vmatprep.subr.mxu0 0.0
        %2821 = vmatpush2.msra.mxu0 0.0
        %2822 = vmatprep.subr.mxu0 0.0
        %2823 = vmatpush2.msra.mxu0 0.0
        %2824 = vmatprep.subr.mxu0 0.0
        %2825 = vmatpush2.msra.mxu0 0.0
        %2826 = vmatprep.subr.mxu0 0.0
        %2827 = vmatpush2.msra.mxu0 0.0
        %2828 = vmatprep.subr.mxu0 0.0
        %2829 = vmatpush2.msra.mxu0 0.0
        %2830 = vmatprep.subr.mxu0 0.0
        %2831 = vmatpush2.msra.mxu0 0.0
        %2832 = vmatprep.subr.mxu0 0.0
        %2833 = vmatpush2.msra.mxu0 0.0
        %2834 = vmatprep.subr.mxu0 0.0
        %2835 = vmatpush2.msra.mxu0 0.0
        %2836 = vmatprep.subr.mxu0 0.0
        %2837 = vmatpush2.msra.mxu0 0.0
        %2838 = vmatprep.subr.mxu0 0.0
        %2839 = vmatpush2.msra.mxu0 0.0
        %2840 = vmatprep.subr.mxu0 0.0
        %2841 = vmatpush2.msra.mxu0 0.0
        %2842 = vmatprep.subr.mxu0 0.0
        %2843 = vmatpush2.msra.mxu0 0.0
        %2844 = vmatprep.subr.mxu0 0.0
        %2845 = vmatpush2.msra.mxu0 0.0
        %2846 = vmatprep.subr.mxu0 0.0
        %2847 = vmatpush2.msra.mxu0 0.0
        %2848 = vmatprep.subr.mxu0 0.0
        %2849 = vmatpush2.msra.mxu0 0.0
        %2850 = vmatprep.subr.mxu0 0.0
        %2851 = vmatpush2.msra.mxu0 0.0
        %2852 = vmatprep.mubr.f32.mxu0 0.0
        %2853 = vmatmul.mubr.f32.gmra.mxu0 %v2783
        %v2854 = vpop.f32.mrf.mxu0
        %v2855 = vadd.f32 %v1315, %v2854
        %v2856 = vpop.f32.mrf.mxu0
        %2857 = vmatprep.mubr.f32.mxu0 0.0
        %2858 = vmatmul.mubr.f32.gmra.mxu0 %v2786
        %v2859 = vpop.f32.mrf.mxu0
        %v2860 = vadd.f32 %v1315, %v2859
        %v2861 = vpop.f32.mrf.mxu0
        %2862 = vdwg.mxu0
        %2863 = vmatprep.subr.mxu0 0.0
        %2864 = vmatpush1.msra.mxu0 0.0
        %2865 = vmatprep.subr.mxu0 0.0
        %2866 = vmatpush1.msra.mxu0 0.0
        %2867 = vmatprep.subr.mxu0 0.0
        %2868 = vmatpush1.msra.mxu0 0.0
        %2869 = vmatprep.subr.mxu0 0.0
        %2870 = vmatpush1.msra.mxu0 0.0
        %2871 = vmatprep.subr.mxu0 0.0
        %2872 = vmatpush1.msra.mxu0 0.0
        %2873 = vmatprep.subr.mxu0 0.0
        %2874 = vmatpush1.msra.mxu0 0.0
        %2875 = vmatprep.subr.mxu0 0.0
        %2876 = vmatpush1.msra.mxu0 0.0
        %2877 = vmatprep.subr.mxu0 0.0
        %2878 = vmatpush1.msra.mxu0 0.0
        %2879 = vmatprep.subr.mxu0 0.0
        %2880 = vmatpush1.msra.mxu0 0.0
        %2881 = vmatprep.subr.mxu0 0.0
        %2882 = vmatpush1.msra.mxu0 0.0
        %2883 = vmatprep.subr.mxu0 0.0
        %2884 = vmatpush1.msra.mxu0 0.0
        %2885 = vmatprep.subr.mxu0 0.0
        %2886 = vmatpush1.msra.mxu0 0.0
        %2887 = vmatprep.subr.mxu0 0.0
        %2888 = vmatpush1.msra.mxu0 %v1401
        %2889 = vmatprep.subr.mxu0 0.0
        %2890 = vmatpush1.msra.mxu0 %v1400
        %2891 = vmatprep.subr.mxu0 0.0
        %2892 = vmatpush1.msra.mxu0 %v1399
        %2893 = vmatprep.subr.mxu0 0.0
        %2894 = vmatpush1.msra.mxu0 %v1398
        %2895 = vmatprep.subr.mxu0 0.0
        %2896 = vmatpush2.msra.mxu0 0.0
        %2897 = vmatprep.subr.mxu0 0.0
        %2898 = vmatpush2.msra.mxu0 0.0
        %2899 = vmatprep.subr.mxu0 0.0
        %2900 = vmatpush2.msra.mxu0 0.0
        %2901 = vmatprep.subr.mxu0 0.0
        %2902 = vmatpush2.msra.mxu0 0.0
        %2903 = vmatprep.subr.mxu0 0.0
        %2904 = vmatpush2.msra.mxu0 0.0
        %2905 = vmatprep.subr.mxu0 0.0
        %2906 = vmatpush2.msra.mxu0 0.0
        %2907 = vmatprep.subr.mxu0 0.0
        %2908 = vmatpush2.msra.mxu0 0.0
        %2909 = vmatprep.subr.mxu0 0.0
        %2910 = vmatpush2.msra.mxu0 0.0
        %2911 = vmatprep.subr.mxu0 0.0
        %2912 = vmatpush2.msra.mxu0 0.0
        %2913 = vmatprep.subr.mxu0 0.0
        %2914 = vmatpush2.msra.mxu0 0.0
        %2915 = vmatprep.subr.mxu0 0.0
        %2916 = vmatpush2.msra.mxu0 0.0
        %2917 = vmatprep.subr.mxu0 0.0
        %2918 = vmatpush2.msra.mxu0 0.0
        %2919 = vmatprep.subr.mxu0 0.0
        %2920 = vmatpush2.msra.mxu0 0.0
        %2921 = vmatprep.subr.mxu0 0.0
        %2922 = vmatpush2.msra.mxu0 0.0
        %2923 = vmatprep.subr.mxu0 0.0
        %2924 = vmatpush2.msra.mxu0 0.0
        %2925 = vmatprep.subr.mxu0 0.0
        %2926 = vmatpush2.msra.mxu0 0.0
        %2927 = vmatprep.mubr.f32.mxu0 0.0
        %2928 = vmatmul.mubr.f32.gmra.mxu0 %v2269
        %v2929 = vpop.f32.mrf.mxu0
        %v2930 = vadd.f32 0.0, %v2929
        %v2931 = vpop.f32.mrf.mxu0
        %2932 = vmatprep.mubr.f32.mxu0 0.0
        %2933 = vmatmul.mubr.f32.gmra.mxu0 %v2271
        %v2934 = vpop.f32.mrf.mxu0
        %v2935 = vadd.f32 0.0, %v2934
        %v2936 = vpop.f32.mrf.mxu0
        %2937 = vdwg.mxu0
        %v2938 = vadd.f32 %v2855, %v2930
        %v2939 = vadd.f32 %v2860, %v2935
        %v2940 = vadd.f32 %v2938, %v1484
        %v2941 = vadd.f32 %v2939, %v1484
        %v2942 = vsub.f32 0.0, %v2940
        %v2943 = vsub.f32 0.0, %v2941
        %v2944 = vmul.f32 %v2942, 1.442695
        %v2945 = vpow.pop %v2944
        %v2946 = vmul.f32 %v2943, 1.442695
        %v2947 = vpow.pop %v2946
        %v2948 = vadd.f32 %v2945, 1.0
        %v2949 = vadd.f32 %v2947, 1.0
        %v2950 = vrcp.pop %v2948
        %v2951 = vmul.f32 1.0, %v2950
        %v2952 = vrcp.pop %v2949
        %v2953 = vmul.f32 1.0, %v2952
        %v2954 = vtanh.pop %v2940
        %v2955 = vtanh.pop %v2941
        %v2956 = vmul.f32 %v2951, %v2249
        %v2957 = vmul.f32 %v2953, %v2250
        %2960 = vrot.lane.b32.xlu0 %v2954, 64
        %v2961 = vpop.permute.xlu0 %2960
        %2962 = vrot.lane.b32.xlu0 %v2955, 64
        %v2963 = vpop.permute.xlu0 %2962
        %v2966 = vmul.f32 %v2951, %v2961
        %v2967 = vmul.f32 %v2953, %v2963
        %2970 = vrot.lane.b32.xlu0 %v2966, 32
        %v2971 = vpop.permute.xlu0 %2970
        %2972 = vrot.lane.b32.xlu0 %v2967, 32
        %v2973 = vpop.permute.xlu0 %2972
        %v2976 = vadd.f32 %v2956, %v2971
        %v2977 = vadd.f32 %v2957, %v2973
        %v2978 = vtanh.pop %v2976
        %v2979 = vtanh.pop %v2977
        %2982 = vrot.lane.b32.xlu0 %v2978, 64
        %v2983 = vpop.permute.xlu0 %2982
        %2984 = vrot.lane.b32.xlu0 %v2979, 64
        %v2985 = vpop.permute.xlu0 %2984
        %v2988 = vmul.f32 %v2951, %v2983
        %v2989 = vmul.f32 %v2953, %v2985
        %2992 = vrot.lane.b32.xlu0 %v2988, 32
        %v2993 = vpop.permute.xlu0 %2992
        %2994 = vrot.lane.b32.xlu0 %v2989, 32
        %v2995 = vpop.permute.xlu0 %2994
        %v2996 = vsel %vm767, %v2993, 0
        %v2998 = vsel %vm767, %v2995, 0
        %3000 = vmatprep.subr.mxu0 0.0
        %3001 = vmatpush1.msra.mxu0 0.0
        %3002 = vmatprep.subr.mxu0 0.0
        %3003 = vmatpush1.msra.mxu0 0.0
        %3004 = vmatprep.subr.mxu0 0.0
        %3005 = vmatpush1.msra.mxu0 0.0
        %3006 = vmatprep.subr.mxu0 0.0
        %3007 = vmatpush1.msra.mxu0 0.0
        %3008 = vmatprep.subr.mxu0 0.0
        %3009 = vmatpush1.msra.mxu0 0.0
        %3010 = vmatprep.subr.mxu0 0.0
        %3011 = vmatpush1.msra.mxu0 0.0
        %3012 = vmatprep.subr.mxu0 0.0
        %3013 = vmatpush1.msra.mxu0 0.0
        %3014 = vmatprep.subr.mxu0 0.0
        %3015 = vmatpush1.msra.mxu0 0.0
        %3016 = vmatprep.subr.mxu0 0.0
        %3017 = vmatpush1.msra.mxu0 0.0
        %3018 = vmatprep.subr.mxu0 0.0
        %3019 = vmatpush1.msra.mxu0 0.0
        %3020 = vmatprep.subr.mxu0 0.0
        %3021 = vmatpush1.msra.mxu0 0.0
        %3022 = vmatprep.subr.mxu0 0.0
        %3023 = vmatpush1.msra.mxu0 0.0
        %3024 = vmatprep.subr.mxu0 0.0
        %3025 = vmatpush1.msra.mxu0 %v759
        %3026 = vmatprep.subr.mxu0 0.0
        %3027 = vmatpush1.msra.mxu0 %v758
        %3028 = vmatprep.subr.mxu0 0.0
        %3029 = vmatpush1.msra.mxu0 %v757
        %3030 = vmatprep.subr.mxu0 0.0
        %3031 = vmatpush1.msra.mxu0 %v756
        %3032 = vmatprep.subr.mxu0 0.0
        %3033 = vmatpush2.msra.mxu0 0.0
        %3034 = vmatprep.subr.mxu0 0.0
        %3035 = vmatpush2.msra.mxu0 0.0
        %3036 = vmatprep.subr.mxu0 0.0
        %3037 = vmatpush2.msra.mxu0 0.0
        %3038 = vmatprep.subr.mxu0 0.0
        %3039 = vmatpush2.msra.mxu0 0.0
        %3040 = vmatprep.subr.mxu0 0.0
        %3041 = vmatpush2.msra.mxu0 0.0
        %3042 = vmatprep.subr.mxu0 0.0
        %3043 = vmatpush2.msra.mxu0 0.0
        %3044 = vmatprep.subr.mxu0 0.0
        %3045 = vmatpush2.msra.mxu0 0.0
        %3046 = vmatprep.subr.mxu0 0.0
        %3047 = vmatpush2.msra.mxu0 0.0
        %3048 = vmatprep.subr.mxu0 0.0
        %3049 = vmatpush2.msra.mxu0 0.0
        %3050 = vmatprep.subr.mxu0 0.0
        %3051 = vmatpush2.msra.mxu0 0.0
        %3052 = vmatprep.subr.mxu0 0.0
        %3053 = vmatpush2.msra.mxu0 0.0
        %3054 = vmatprep.subr.mxu0 0.0
        %3055 = vmatpush2.msra.mxu0 0.0
        %3056 = vmatprep.subr.mxu0 0.0
        %3057 = vmatpush2.msra.mxu0 0.0
        %3058 = vmatprep.subr.mxu0 0.0
        %3059 = vmatpush2.msra.mxu0 0.0
        %3060 = vmatprep.subr.mxu0 0.0
        %3061 = vmatpush2.msra.mxu0 0.0
        %3062 = vmatprep.subr.mxu0 0.0
        %3063 = vmatpush2.msra.mxu0 0.0
        %3064 = vmatprep.mubr.f32.mxu0 0.0
        %3065 = vmatmul.mubr.f32.gmra.mxu0 %v2996
        %v3066 = vpop.f32.mrf.mxu0
        %v3067 = vadd.f32 %v765, %v3066
        %v3068 = vpop.f32.mrf.mxu0
        %3069 = vmatprep.mubr.f32.mxu0 0.0
        %3070 = vmatmul.mubr.f32.gmra.mxu0 %v2998
        %v3071 = vpop.f32.mrf.mxu0
        %v3072 = vadd.f32 %v765, %v3071
        %v3073 = vpop.f32.mrf.mxu0
        %3074 = vdwg.mxu0
        %v3075 = vadd.f32 %v677, %v3067
        %v3076 = vadd.f32 %v682, %v3072
        %v3077 = vadd.f32 %v687, %v3067
        %v3078 = vadd.f32 %v692, %v3072
        %v3079 = vadd.f32 %v697, %v3067
        %v3080 = vadd.f32 %v702, %v3072
        %v3081 = vadd.f32 %v707, %v3067
        %v3082 = vadd.f32 %v712, %v3072
        %v3083 = vadd.f32 %v717, %v3067
        %v3084 = vadd.f32 %v722, %v3072
        %v3085 = vadd.f32 %v727, %v3067
        %v3086 = vadd.f32 %v732, %v3072
        %v3087 = vadd.f32 %v737, %v3067
        %v3088 = vadd.f32 %v742, %v3072
        %v3089 = vadd.f32 %v747, %v3067
        %v3090 = vadd.f32 %v752, %v3072
        %v3091 = vtanh.pop %v3075
        %v3092 = vtanh.pop %v3076
        %v3093 = vtanh.pop %v3077
        %v3094 = vtanh.pop %v3078
        %v3095 = vtanh.pop %v3079
        %v3096 = vtanh.pop %v3080
        %v3097 = vtanh.pop %v3081
        %v3098 = vtanh.pop %v3082
        %v3099 = vtanh.pop %v3083
        %v3100 = vtanh.pop %v3084
        %v3101 = vtanh.pop %v3085
        %v3102 = vtanh.pop %v3086
        %v3103 = vtanh.pop %v3087
        %v3104 = vtanh.pop %v3088
        %v3105 = vtanh.pop %v3089
        %v3106 = vtanh.pop %v3090
        %v3107 = vmul.f32 %v3091, %v882
        %v3108 = vmul.f32 %v3092, %v882
        %v3109 = vmul.f32 %v3093, %v882
        %v3110 = vmul.f32 %v3094, %v882
        %v3111 = vmul.f32 %v3095, %v882
        %v3112 = vmul.f32 %v3096, %v882
        %v3113 = vmul.f32 %v3097, %v882
        %v3114 = vmul.f32 %v3098, %v882
        %v3115 = vmul.f32 %v3099, %v882
        %v3116 = vmul.f32 %v3100, %v882
        %v3117 = vmul.f32 %v3101, %v882
        %v3118 = vmul.f32 %v3102, %v882
        %v3119 = vmul.f32 %v3103, %v882
        %v3120 = vmul.f32 %v3104, %v882
        %v3121 = vmul.f32 %v3105, %v882
        %v3122 = vmul.f32 %v3106, %v882
        %v3123 = vsel %vm767, %v3107, 0.0
        %3124 = vadd.xlane.f32.xlu0 %v3123
        %v3125 = vpop.xlane.xlu0 %3124
        %v3126 = vsel %vm767, %v3108, 0.0
        %3127 = vadd.xlane.f32.xlu0 %v3126
        %v3128 = vpop.xlane.xlu0 %3127
        %v3129 = vsel %vm767, %v3109, 0.0
        %3130 = vadd.xlane.f32.xlu0 %v3129
        %v3131 = vpop.xlane.xlu0 %3130
        %v3132 = vsel %vm767, %v3110, 0.0
        %3133 = vadd.xlane.f32.xlu0 %v3132
        %v3134 = vpop.xlane.xlu0 %3133
        %v3135 = vsel %vm767, %v3111, 0.0
        %3136 = vadd.xlane.f32.xlu0 %v3135
        %v3137 = vpop.xlane.xlu0 %3136
        %v3138 = vsel %vm767, %v3112, 0.0
        %3139 = vadd.xlane.f32.xlu0 %v3138
        %v3140 = vpop.xlane.xlu0 %3139
        %v3141 = vsel %vm767, %v3113, 0.0
        %3142 = vadd.xlane.f32.xlu0 %v3141
        %v3143 = vpop.xlane.xlu0 %3142
        %v3144 = vsel %vm767, %v3114, 0.0
        %3145 = vadd.xlane.f32.xlu0 %v3144
        %v3146 = vpop.xlane.xlu0 %3145
        %v3147 = vsel %vm767, %v3115, 0.0
        %3148 = vadd.xlane.f32.xlu0 %v3147
        %v3149 = vpop.xlane.xlu0 %3148
        %v3150 = vsel %vm767, %v3116, 0.0
        %3151 = vadd.xlane.f32.xlu0 %v3150
        %v3152 = vpop.xlane.xlu0 %3151
        %v3153 = vsel %vm767, %v3117, 0.0
        %3154 = vadd.xlane.f32.xlu0 %v3153
        %v3155 = vpop.xlane.xlu0 %3154
        %v3156 = vsel %vm767, %v3118, 0.0
        %3157 = vadd.xlane.f32.xlu0 %v3156
        %v3158 = vpop.xlane.xlu0 %3157
        %v3159 = vsel %vm767, %v3119, 0.0
        %3160 = vadd.xlane.f32.xlu0 %v3159
        %v3161 = vpop.xlane.xlu0 %3160
        %v3162 = vsel %vm767, %v3120, 0.0
        %3163 = vadd.xlane.f32.xlu0 %v3162
        %v3164 = vpop.xlane.xlu0 %3163
        %v3165 = vsel %vm767, %v3121, 0.0
        %3166 = vadd.xlane.f32.xlu0 %v3165
        %v3167 = vpop.xlane.xlu0 %3166
        %v3168 = vsel %vm767, %v3122, 0.0
        %3169 = vadd.xlane.f32.xlu0 %v3168
        %v3170 = vpop.xlane.xlu0 %3169
        %v3171 = vadd.f32 %v3125, %v956
        %v3172 = vadd.f32 %v3128, %v956
        %v3173 = vadd.f32 %v3131, %v956
        %v3174 = vadd.f32 %v3134, %v956
        %v3175 = vadd.f32 %v3137, %v956
        %v3176 = vadd.f32 %v3140, %v956
        %v3177 = vadd.f32 %v3143, %v956
        %v3178 = vadd.f32 %v3146, %v956
        %v3179 = vadd.f32 %v3149, %v956
        %v3180 = vadd.f32 %v3152, %v956
        %v3181 = vadd.f32 %v3155, %v956
        %v3182 = vadd.f32 %v3158, %v956
        %v3183 = vadd.f32 %v3161, %v956
        %v3184 = vadd.f32 %v3164, %v956
        %v3185 = vadd.f32 %v3167, %v956
        %v3186 = vadd.f32 %v3170, %v956
        %v3203 = vlaneseq
        %v3204 = vshrl.u32 %v3203, 7
        %v3205 = vsub.s32 %v991, %v3204
        %v3206 = vrot.slane %v3171, %v3205
        %v3207 = vlaneseq
        %v3208 = vshrl.u32 %v3207, 7
        %v3209 = vsub.s32 %v996, %v3208
        %v3210 = vrot.slane %v3172, %v3209
        %v3211 = vsel %vm1001, %v3210, %v3206
        %v3212 = vlaneseq
        %v3213 = vshrl.u32 %v3212, 7
        %v3214 = vsub.s32 %v991, %v3213
        %v3215 = vrot.slane %v3173, %v3214
        %v3216 = vlaneseq
        %v3217 = vshrl.u32 %v3216, 7
        %v3218 = vsub.s32 %v996, %v3217
        %v3219 = vrot.slane %v3174, %v3218
        %v3220 = vsel %vm1001, %v3219, %v3215
        %v3221 = vlaneseq
        %v3222 = vshrl.u32 %v3221, 7
        %v3223 = vsub.s32 %v991, %v3222
        %v3224 = vrot.slane %v3175, %v3223
        %v3225 = vlaneseq
        %v3226 = vshrl.u32 %v3225, 7
        %v3227 = vsub.s32 %v996, %v3226
        %v3228 = vrot.slane %v3176, %v3227
        %v3229 = vsel %vm1001, %v3228, %v3224
        %v3230 = vlaneseq
        %v3231 = vshrl.u32 %v3230, 7
        %v3232 = vsub.s32 %v991, %v3231
        %v3233 = vrot.slane %v3177, %v3232
        %v3234 = vlaneseq
        %v3235 = vshrl.u32 %v3234, 7
        %v3236 = vsub.s32 %v996, %v3235
        %v3237 = vrot.slane %v3178, %v3236
        %v3238 = vsel %vm1001, %v3237, %v3233
        %v3239 = vlaneseq
        %v3240 = vshrl.u32 %v3239, 7
        %v3241 = vsub.s32 %v991, %v3240
        %v3242 = vrot.slane %v3179, %v3241
        %v3243 = vlaneseq
        %v3244 = vshrl.u32 %v3243, 7
        %v3245 = vsub.s32 %v996, %v3244
        %v3246 = vrot.slane %v3180, %v3245
        %v3247 = vsel %vm1001, %v3246, %v3242
        %v3248 = vlaneseq
        %v3249 = vshrl.u32 %v3248, 7
        %v3250 = vsub.s32 %v991, %v3249
        %v3251 = vrot.slane %v3181, %v3250
        %v3252 = vlaneseq
        %v3253 = vshrl.u32 %v3252, 7
        %v3254 = vsub.s32 %v996, %v3253
        %v3255 = vrot.slane %v3182, %v3254
        %v3256 = vsel %vm1001, %v3255, %v3251
        %v3257 = vlaneseq
        %v3258 = vshrl.u32 %v3257, 7
        %v3259 = vsub.s32 %v991, %v3258
        %v3260 = vrot.slane %v3183, %v3259
        %v3261 = vlaneseq
        %v3262 = vshrl.u32 %v3261, 7
        %v3263 = vsub.s32 %v996, %v3262
        %v3264 = vrot.slane %v3184, %v3263
        %v3265 = vsel %vm1001, %v3264, %v3260
        %v3266 = vlaneseq
        %v3267 = vshrl.u32 %v3266, 7
        %v3268 = vsub.s32 %v991, %v3267
        %v3269 = vrot.slane %v3185, %v3268
        %v3270 = vlaneseq
        %v3271 = vshrl.u32 %v3270, 7
        %v3272 = vsub.s32 %v996, %v3271
        %v3273 = vrot.slane %v3186, %v3272
        %v3274 = vsel %vm1001, %v3273, %v3269
        %v3275 = vsel %vm1066, %v3220, %v3211
        %v3276 = vsel %vm1068, %v3229, %v3275
        %v3277 = vsel %vm1070, %v3238, %v3276
        %v3278 = vsel %vm1072, %v3247, %v3277
        %v3279 = vsel %vm1074, %v3256, %v3278
        %v3280 = vsel %vm1076, %v3265, %v3279
        %v3281 = vsel %vm1078, %v3274, %v3280
        %3283 = vxpose.xlu0.b32.start [1/16] %v3281, 128
        %3284 = vxpose.xlu0.b32.cont [2/16] 0.0, 128
        %3285 = vxpose.xlu0.b32.cont [3/16] 0.0, 128
        %3286 = vxpose.xlu0.b32.cont [4/16] 0.0, 128
        %3287 = vxpose.xlu0.b32.cont [5/16] 0.0, 128
        %3288 = vxpose.xlu0.b32.cont [6/16] 0.0, 128
        %3289 = vxpose.xlu0.b32.cont [7/16] 0.0, 128
        %3290 = vxpose.xlu0.b32.cont [8/16] 0.0, 128
        %3291 = vxpose.xlu0.b32.cont [9/16] 0.0, 128
        %3292 = vxpose.xlu0.b32.cont [10/16] 0.0, 128
        %3293 = vxpose.xlu0.b32.cont [11/16] 0.0, 128
        %3294 = vxpose.xlu0.b32.cont [12/16] 0.0, 128
        %3295 = vxpose.xlu0.b32.cont [13/16] 0.0, 128
        %3296 = vxpose.xlu0.b32.cont [14/16] 0.0, 128
        %3297 = vxpose.xlu0.b32.cont [15/16] 0.0, 128
        %3298 = vxpose.xlu0.b32.end [16/16] 0.0, 128
        %v3299 = vpop.trf.xlu0
        %v3300 = vpop.trf.xlu0
        %v3301 = vpop.trf.xlu0
        %v3302 = vpop.trf.xlu0
        %v3303 = vpop.trf.xlu0
        %v3304 = vpop.trf.xlu0
        %v3305 = vpop.trf.xlu0
        %v3306 = vpop.trf.xlu0
        %v3307 = vpop.trf.xlu0
        %v3308 = vpop.trf.xlu0
        %v3309 = vpop.trf.xlu0
        %v3310 = vpop.trf.xlu0
        %v3311 = vpop.trf.xlu0
        %v3312 = vpop.trf.xlu0
        %v3313 = vpop.trf.xlu0
        %v3314 = vpop.trf.xlu0
        %v3315 = vmul.f32 %v3299, %v546
        %v3316 = vmul.f32 %v3300, %v547
        %v3317 = vsel %vm1115, %v3315, -inf
        %3318 = vmax.xlane.f32.xlu0 %v3317
        %v3319 = vpop.xlane.xlu0 %3318
        %v3320 = vsel %vm1115, %v3316, -inf
        %3321 = vmax.xlane.f32.xlu0 %v3320
        %v3322 = vpop.xlane.xlu0 %3321
        %v3323 = vsub.f32 %v3315, %v3319
        %v3324 = vsub.f32 %v3316, %v3322
        %v3325 = vmul.f32 %v3323, 1.442695
        %v3326 = vpow.pop %v3325
        %v3327 = vmul.f32 %v3324, 1.442695
        %v3328 = vpow.pop %v3327
        %v3329 = vmul.f32 %v3326, %v546
        %v3330 = vmul.f32 %v3328, %v547
        %v3331 = vsel %vm1115, %v3329, 0.0
        %3332 = vadd.xlane.f32.xlu0 %v3331
        %v3333 = vpop.xlane.xlu0 %3332
        %v3334 = vsel %vm1115, %v3330, 0.0
        %3335 = vadd.xlane.f32.xlu0 %v3334
        %v3336 = vpop.xlane.xlu0 %3335
        %v3337 = vadd.f32 %v3333, 1e-06
        %v3338 = vadd.f32 %v3336, 1e-06
        %v3339 = vrcp.pop %v3337
        %v3340 = vrcp.pop %v3338
        %v3341 = vmul.f32 %v3329, %v3339
        %v3342 = vmul.f32 %v3330, %v3340
        %v3343 = vadd.f32 %v2614, %v550
        %v3344 = vadd.f32 %v2615, %v551
        %3345 = vst.msk [vmem:[%s521] sm:$0xff] %vm1115, %v3343
        %3346 = vst.msk [vmem:[%s521 + $0x8] sm:$0xff] %vm1115, %v3344
        %v3347 = vadd.f32 %v3341, %v550
        %v3348 = vadd.f32 %v3342, %v551
        %s3349 = scalar_lea.vmem %s521, 16 [#allocation4]
        %3350 = vst.msk [vmem:[%s3349] sm:$0xff] %vm1115, %v3347
        %3351 = vst.msk [vmem:[%s3349 + $0x8] sm:$0xff] %vm1115, %v3348
        %s3352 = sand.u32 %s295, 1
        %s3353 = sand.u32 %s295, 1
        %s3354 = smul.addr %s3353, 32
        %s3355 = scalar_lea.vmem [#allocation4], %s3354
        // Predicated region
        $region107: #{tpu_custom_call.1} parent=101 // pred_check
          %p3356 = pneg %p305
        $region108: #{tpu_custom_call.1} parent=101 // pred_check_branch
          %3358 = sbr.rel (%p3356) target = $region110
        $region109: #{tpu_custom_call.1} parent=101 // pred_region
          %s3359 = smul.u32 2, %s25
          %s3360 = smul.addr %s3359, 8
          %s3361 = scalar_lea.vmem %s12, %s3360
          // Predicated region
          $region111: #{tpu_custom_call.1} parent=109 // pred_check
            _
          $region112: #{tpu_custom_call.1} parent=109 // pred_check_branch
            %3363 = sbr.rel (0) target = $region114
          $region113: #{tpu_custom_call.1} parent=109 // pred_region
            // Predicated region
            $region115: #{tpu_custom_call.1} parent=113 // pred_check
              _
            $region116: #{tpu_custom_call.1} parent=113 // pred_check_branch
              %3365 = sbr.rel (0) target = $region118
            $region117: #{tpu_custom_call.1} parent=113 // pred_region
              // Predicated region
              $region130: #{tpu_custom_call.1} parent=117 // pred_check
                _
              $region131: #{tpu_custom_call.1} parent=117 // pred_check_branch
                %3387 = sbr.rel (0) target = $region133
              $region132: #{tpu_custom_call.1} parent=117 // pred_region
                loop: start=0, step=1, limit=1
                $region134: #{tpu_custom_call.1} parent=132 // loop_pre_header
                  _
                $region135: #{tpu_custom_call.1} parent=132 // loop_header
                  %s3389 = sphi 0, %s3393
                  %p3390 = scmp.ge.s32.totalorder %s3389, 1
                  %s3394 = sphi %s3355, %s3355
                  %s3395 = sphi %s3361, %s3361
                $region136: #{tpu_custom_call.1} parent=132 // loop_header_branch
                  %3392 = sbr.rel (%p3390) target = $region140
                $region137: #{tpu_custom_call.1} parent=132 // loop_body
                  %v3396 = vld [vmem:[%s3394] sm:$0xff]
                  %3397 = vst [vmem:[%s3395] sm:$0xff] %v3396
                  %v3398 = vld [vmem:[%s3394 + $0x8] sm:$0xff]
                  %3399 = vst [vmem:[%s3395 + $0x8] sm:$0xff] %v3398
                  %v3400 = vld [vmem:[%s3394 + $0x10] sm:$0xff]
                  %3401 = vst [vmem:[%s3395 + $0x20] sm:$0xff] %v3400
                  %v3402 = vld [vmem:[%s3394 + $0x18] sm:$0xff]
                  %3403 = vst [vmem:[%s3395 + $0x28] sm:$0xff] %v3402
                $region138: #{tpu_custom_call.1} parent=132 // loop_footer
                  %s3393 = sadd.s32 1, %s3389
                $region139: #{tpu_custom_call.1} parent=132 // loop_footer_branch
                  %3388 = sbr.rel target = $region135
                $region140: #{tpu_custom_call.1} parent=132 // loop_exit
                  _
              $region133: #{tpu_custom_call.1} parent=117 // pred_fallthru
                _
              // Predicated region
              $region141: #{tpu_custom_call.1} parent=117 // pred_check
                _
              $region142: #{tpu_custom_call.1} parent=117 // pred_check_branch
                %3405 = sbr.rel target = $region144
              $region143: #{tpu_custom_call.1} parent=117 // pred_region
                _
              $region144: #{tpu_custom_call.1} parent=117 // pred_fallthru
                _
            $region118: #{tpu_custom_call.1} parent=113 // pred_fallthru
              _
            // Predicated region
            $region119: #{tpu_custom_call.1} parent=113 // pred_check
              _
            $region120: #{tpu_custom_call.1} parent=113 // pred_check_branch
              %3367 = sbr.rel target = $region122
            $region121: #{tpu_custom_call.1} parent=113 // pred_region
              %s3369 = ssub.s32 256, 1
              loop: start=0, step=1, limit=1
              $region123: #{tpu_custom_call.1} parent=121 // loop_pre_header
                _
              $region124: #{tpu_custom_call.1} parent=121 // loop_header
                %s3371 = sphi 0, %s3375
                %p3372 = scmp.ge.s32.totalorder %s3371, 1
                %s3376 = sphi %s3355, %s3355
                %s3377 = sphi %s3361, %s3361
              $region125: #{tpu_custom_call.1} parent=121 // loop_header_branch
                %3374 = sbr.rel (%p3372) target = $region129
              $region126: #{tpu_custom_call.1} parent=121 // loop_body
                %v3378 = vld [vmem:[%s3376] sm:%s3369]
                %3379 = vst [vmem:[%s3377] sm:%s3369] %v3378
                %v3380 = vld [vmem:[%s3376 + $0x8] sm:%s3369]
                %3381 = vst [vmem:[%s3377 + $0x8] sm:%s3369] %v3380
                %v3382 = vld [vmem:[%s3376 + $0x10] sm:%s3369]
                %3383 = vst [vmem:[%s3377 + $0x20] sm:%s3369] %v3382
                %v3384 = vld [vmem:[%s3376 + $0x18] sm:%s3369]
                %3385 = vst [vmem:[%s3377 + $0x28] sm:%s3369] %v3384
              $region127: #{tpu_custom_call.1} parent=121 // loop_footer
                %s3375 = sadd.s32 1, %s3371
              $region128: #{tpu_custom_call.1} parent=121 // loop_footer_branch
                %3370 = sbr.rel target = $region124
              $region129: #{tpu_custom_call.1} parent=121 // loop_exit
                _
            $region122: #{tpu_custom_call.1} parent=113 // pred_fallthru
              _
          $region114: #{tpu_custom_call.1} parent=109 // pred_fallthru
            _
          %3406 = vnop
        $region110: #{tpu_custom_call.1} parent=101 // pred_fallthru
          _
      $region102: #{tpu_custom_call.1} parent=5 // pred_fallthru
        _
      %p3407 = scmp.le.s32.totalorder 2, %s20
      // Predicated region
      $region145: #{tpu_custom_call.1} parent=5 // pred_check
        %p3408 = pneg %p3407
      $region146: #{tpu_custom_call.1} parent=5 // pred_check_branch
        %3410 = sbr.rel (%p3408) target = $region148
      $region147: #{tpu_custom_call.1} parent=5 // pred_region
        %s3411 = ssub.s32 %s20, 2
        // Predicated region
        $region149: #{tpu_custom_call.1} parent=147 // pred_check
          %p3412 = pneg %p311
        $region150: #{tpu_custom_call.1} parent=147 // pred_check_branch
          %3414 = sbr.rel (%p3412) target = $region152
        $region151: #{tpu_custom_call.1} parent=147 // pred_region
          %s3415 = sand.u32 %s296, 1
          %s3416 = sand.u32 %s296, 1
          %s3417 = smul.addr %s3416, 32
          %s3418 = scalar_lea.vmem [#allocation4], %s3417
        $region152: #{tpu_custom_call.1} parent=147 // pred_fallthru
          _
      $region148: #{tpu_custom_call.1} parent=5 // pred_fallthru
        _
    $region6: #{tpu_custom_call.1} parent=1 // loop_footer
      %s24 = sadd.s32 1, %s20
    $region7: #{tpu_custom_call.1} parent=1 // loop_footer_branch
      %19 = sbr.rel target = $region3
    $region8: #{tpu_custom_call.1} parent=1 // loop_exit
      _

</llo_original>
